<compile_context>
chip_gen: v7x
topology: tpu7x:2x2x1
jax: 0.10.0
libtpu: 0.0.40
codegen_flags: <defaults>
</compile_context>

<pallas_src>
import jax
import jax.numpy as jnp
from jax import lax
from jax.experimental import pallas as pl
from jax.experimental.pallas import tpu as pltpu
import numpy as np


def lstm_linear_kernel(x_ref, wih0_ref, whh0_ref, b0_ref,
                       wih1_ref, whh1_ref, b1_ref,
                       wout_ref, bout_ref, y_ref,
                       gx_s, h_all_s, h0_s, c0_s, h1_s, c1_s):
    """One sequence chunk of the 2-layer LSTM + Linear head.

    x_ref:   (Tc, Bp, Ip) bf16 input chunk
    weights: bf16, gate-packed (K, 4Hp); biases f32 (1, 4Hp)/(1, Op)
    y_ref:   (Tc, Bp, Op) f32 output chunk
    gx_s:    (Tc, Bp, 4Hp) f32 scratch — hoisted gate projections (reused per layer)
    h_all_s: (Tc, Bp, Hp)  f32 scratch — per-step h (reused: h0 then h1)
    h0_s/c0_s/h1_s/c1_s: (Bp, Hp) f32 — recurrent state carried across chunks
    """
    Tc, Bp, Ip = x_ref.shape
    Hp = whh0_ref.shape[0]

    # Zero-init the carried LSTM state on the first chunk only.
    @pl.when(pl.program_id(0) == 0)
    def _init():
        z = jnp.zeros((Bp, Hp), jnp.float32)
        h0_s[...] = z
        c0_s[...] = z
        h1_s[...] = z
        c1_s[...] = z

    def gates_to_hc(gates, c):
        # PyTorch gate order [i, f, g, o]; Hp % 128 == 0 => lane-aligned slices.
        i = jax.nn.sigmoid(gates[:, 0 * Hp:1 * Hp])
        f = jax.nn.sigmoid(gates[:, 1 * Hp:2 * Hp])
        g = jnp.tanh(gates[:, 2 * Hp:3 * Hp])
        o = jax.nn.sigmoid(gates[:, 3 * Hp:4 * Hp])
        c_new = f * c + i * g
        h_new = o * jnp.tanh(c_new)
        return h_new, c_new

    # ---- pass A: hoisted layer-0 input projection (one GEMM, bias folded) --
    x_flat = x_ref[...].reshape(Tc * Bp, Ip)                       # bf16 LHS
    gx_s[...] = (jnp.dot(x_flat, wih0_ref[...],
                         preferred_element_type=jnp.float32)
                 + b0_ref[...]).reshape(Tc, Bp, 4 * Hp)

    # ---- pass B: layer-0 recurrence (only h @ W_hh0 on the serial path) ----
    def step0(t, carry):
        h, c = carry
        g = gx_s[t] + jnp.dot(h.astype(jnp.bfloat16), whh0_ref[...],
                              preferred_element_type=jnp.float32)
        h, c = gates_to_hc(g, c)
        h_all_s[t] = h
        return (h, c)

    h, c = lax.fori_loop(0, Tc, step0, (h0_s[...], c0_s[...]), unroll=4)
    h0_s[...] = h
    c0_s[...] = c

    # ---- pass C: hoisted layer-1 input projection (one GEMM, b1 folded) ----
    h0_flat = h_all_s[...].reshape(Tc * Bp, Hp).astype(jnp.bfloat16)
    gx_s[...] = (jnp.dot(h0_flat, wih1_ref[...],
                         preferred_element_type=jnp.float32)
                 + b1_ref[...]).reshape(Tc, Bp, 4 * Hp)

    # ---- pass D: layer-1 recurrence -----------------------------------------
    def step1(t, carry):
        h, c = carry
        g = gx_s[t] + jnp.dot(h.astype(jnp.bfloat16), whh1_ref[...],
                              preferred_element_type=jnp.float32)
        h, c = gates_to_hc(g, c)
        h_all_s[t] = h
        return (h, c)

    h, c = lax.fori_loop(0, Tc, step1, (h1_s[...], c1_s[...]), unroll=4)
    h1_s[...] = h
    c1_s[...] = c

    # ---- pass E: hoisted Linear head (one GEMM, lane-dense store) ----------
    h1_flat = h_all_s[...].reshape(Tc * Bp, Hp).astype(jnp.bfloat16)
    y = (jnp.dot(h1_flat, wout_ref[...], preferred_element_type=jnp.float32)
         + bout_ref[...])
    y_ref[...] = y.reshape(Tc, Bp, -1).astype(y_ref.dtype)


# ----------------------------- wrapper -------------------------------------

def _round_up(n, m):
    return ((n + m - 1) // m) * m


def _pack_gate_weight(w, Hp, Kp):
    """PyTorch (4H, K) gate-stacked weight -> zero-padded bf16 (Kp, 4*Hp) for x @ W."""
    fourH, K = w.shape
    H = fourH // 4
    w4 = w.reshape(4, H, K)
    out = jnp.zeros((4, Hp, Kp), jnp.float32).at[:, :H, :K].set(w4)
    return out.transpose(2, 0, 1).reshape(Kp, 4 * Hp).astype(jnp.bfloat16)


def _pack_gate_bias(b_ih, b_hh, Hp):
    """Folded PyTorch (4H,) biases -> zero-padded f32 (1, 4*Hp)."""
    b = b_ih + b_hh
    H = b.shape[0] // 4
    out = jnp.zeros((4, Hp), jnp.float32).at[:, :H].set(b.reshape(4, H))
    return out.reshape(1, 4 * Hp)


def lstm_forward(x, params, seq_chunk=4):
    """x: (S, B, I) float32 -> (S, B, O) float32 (matches the PyTorch module)."""
    S, B, I = x.shape
    H = params["w_hh0"].shape[1]
    O = params["w_out"].shape[0]

    Bp = _round_up(B, 8)       # sublane
    Ip = _round_up(I, 128)     # lane
    Hp = _round_up(H, 128)     # lane -> lane-aligned gate slices
    Op = _round_up(O, 128)     # lane -> lane-dense output store

    Tc = min(seq_chunk, S)     # sequence-chunk size (grid axis)
    Sp = _round_up(S, Tc)      # pad S so the grid divides evenly; extra steps
    n_chunks = Sp // Tc        # run after all valid steps and are sliced off.

    # Zero-pad input (padded rows/lanes/steps are inert and sliced off at end);
    # bf16 LHS for the MXU, f32 accumulation inside the kernel.
    x_p = (jnp.zeros((Sp, Bp, Ip), jnp.float32)
           .at[:S, :B, :I].set(x).astype(jnp.bfloat16))

    wih0 = _pack_gate_weight(params["w_ih0"], Hp, Ip)        # (Ip, 4Hp) bf16
    whh0 = _pack_gate_weight(params["w_hh0"], Hp, Hp)        # (Hp, 4Hp) bf16
    b0 = _pack_gate_bias(params["b_ih0"], params["b_hh0"], Hp)
    wih1 = _pack_gate_weight(params["w_ih1"], Hp, Hp)
    whh1 = _pack_gate_weight(params["w_hh1"], Hp, Hp)
    b1 = _pack_gate_bias(params["b_ih1"], params["b_hh1"], Hp)
    wout = (jnp.zeros((Hp, Op), jnp.float32)
            .at[:H, :O].set(params["w_out"].T).astype(jnp.bfloat16))
    bout = jnp.zeros((1, Op), jnp.float32).at[:, :O].set(params["b_out"].reshape(1, O))

    full2d = lambda shape: pl.BlockSpec(shape, lambda s: (0, 0))

    grid_spec = pltpu.PrefetchScalarGridSpec(
        num_scalar_prefetch=0,
        grid=(n_chunks,),
        in_specs=[
            pl.BlockSpec((Tc, Bp, Ip), lambda s: (s, 0, 0)),   # x chunk
            full2d((Ip, 4 * Hp)),                              # wih0
            full2d((Hp, 4 * Hp)),                              # whh0
            full2d((1, 4 * Hp)),                               # b0
            full2d((Hp, 4 * Hp)),                              # wih1
            full2d((Hp, 4 * Hp)),                              # whh1
            full2d((1, 4 * Hp)),                               # b1
            full2d((Hp, Op)),                                  # wout
            full2d((1, Op)),                                   # bout
        ],
        out_specs=pl.BlockSpec((Tc, Bp, Op), lambda s: (s, 0, 0)),
        scratch_shapes=[
            pltpu.VMEM((Tc, Bp, 4 * Hp), jnp.float32),  # hoisted gates (reused per layer)
            pltpu.VMEM((Tc, Bp, Hp), jnp.float32),      # per-step h (reused: h0 then h1)
            pltpu.VMEM((Bp, Hp), jnp.float32),          # h0 carry
            pltpu.VMEM((Bp, Hp), jnp.float32),          # c0 carry
            pltpu.VMEM((Bp, Hp), jnp.float32),          # h1 carry
            pltpu.VMEM((Bp, Hp), jnp.float32),          # c1 carry
        ],
    )

    y_p = pl.pallas_call(
        lstm_linear_kernel,
        out_shape=jax.ShapeDtypeStruct((Sp, Bp, Op), jnp.float32),
        grid_spec=grid_spec,
        compiler_params=pltpu.CompilerParams(
            # Sequence chunks carry state -> must run sequentially.
            dimension_semantics=("arbitrary",),
            # Explicit VMEM budget (v5e default scoped limit is only 16 MiB;
            # chunk sizing must also respect v7x's 64 MiB physical VMEM).
            vmem_limit_bytes=32 * 1024 * 1024,
        ),
    )(x_p, wih0, whh0, b0, wih1, whh1, b1, wout, bout)
    return y_p[:S, :B, :O]


# ----------------------------- init & reference -----------------------------

def init_params(key, input_size=2, hidden_size=4, output_size=1):
    """Deterministic init mimicking PyTorch's U(-1/sqrt(H), 1/sqrt(H))."""
    H, I, O = hidden_size, input_size, output_size
    k = 1.0 / np.sqrt(H)
    keys = jax.random.split(key, 11)
    u = lambda kk, shape: jax.random.uniform(kk, shape, jnp.float32, -k, k)
    return {
        "w_ih0": u(keys[0], (4 * H, I)),
        "w_hh0": u(keys[1], (4 * H, H)),
        "b_ih0": u(keys[2], (4 * H,)),
        "b_hh0": u(keys[3], (4 * H,)),
        "w_ih1": u(keys[4], (4 * H, H)),
        "w_hh1": u(keys[5], (4 * H, H)),
        "b_ih1": u(keys[6], (4 * H,)),
        "b_hh1": u(keys[7], (4 * H,)),
        "w_out": u(keys[8], (O, H)),
        "b_out": u(keys[9], (O,)),
    }


def lstm_forward_ref(x, params):
    """Pure-JAX reference mirroring PyTorch nn.LSTM(2 layers) + nn.Linear."""
    S, B, I = x.shape
    H = params["w_hh0"].shape[1]

    def cell(x_t, h, c, w_ih, w_hh, b_ih, b_hh):
        gates = x_t @ w_ih.T + b_ih + h @ w_hh.T + b_hh
        i, f, g, o = jnp.split(gates, 4, axis=-1)
        i, f, o = jax.nn.sigmoid(i), jax.nn.sigmoid(f), jax.nn.sigmoid(o)
        g = jnp.tanh(g)
        c_new = f * c + i * g
        h_new = o * jnp.tanh(c_new)
        return h_new, c_new

    def scan_fn(carry, x_t):
        h0, c0, h1, c1 = carry
        h0, c0 = cell(x_t, h0, c0, params["w_ih0"], params["w_hh0"],
                      params["b_ih0"], params["b_hh0"])
        h1, c1 = cell(h0, h1, c1, params["w_ih1"], params["w_hh1"],
                      params["b_ih1"], params["b_hh1"])
        y_t = h1 @ params["w_out"].T + params["b_out"]
        return (h0, c0, h1, c1), y_t

    z = jnp.zeros((B, H), jnp.float32)
    _, y = lax.scan(scan_fn, (z, z, z, z), x)
    return y


if __name__ == "__main__":
    S, B, I, H, O = 8, 2, 2, 4, 1   # seq, batch, input_size, hidden_size, output_size

    key = jax.random.PRNGKey(0)
    k_param, k_x = jax.random.split(key)
    params = init_params(k_param, input_size=I, hidden_size=H, output_size=O)
    x = jax.random.normal(k_x, (S, B, I), dtype=jnp.float32)

    y = jax.block_until_ready(lstm_forward(x, params))
    y_ref = jax.block_until_ready(lstm_forward_ref(x, params))

    assert y.shape == (S, B, O), y.shape
    # Tolerance reflects bf16 matmul operands (f32 accumulation) vs f32 reference.
    if not np.allclose(np.asarray(y), np.asarray(y_ref), atol=2e-2, rtol=2e-2):
        raise AssertionError(
            f"mismatch, max abs diff = {np.max(np.abs(np.asarray(y) - np.asarray(y_ref)))}")
    print("KERNEL_OK")
</pallas_src>

<mosaic_0001>
module attributes {stable_mosaic.version = 11 : i64} {
  func.func @lstm_linear_kernel(%arg0: i32, %arg1: memref<4x8x128xbf16, #tpu.memory_space<vmem>>, %arg2: memref<128x512xbf16, #tpu.memory_space<vmem>>, %arg3: memref<128x512xbf16, #tpu.memory_space<vmem>>, %arg4: memref<1x512xf32, #tpu.memory_space<vmem>>, %arg5: memref<128x512xbf16, #tpu.memory_space<vmem>>, %arg6: memref<128x512xbf16, #tpu.memory_space<vmem>>, %arg7: memref<1x512xf32, #tpu.memory_space<vmem>>, %arg8: memref<128x128xbf16, #tpu.memory_space<vmem>>, %arg9: memref<1x128xf32, #tpu.memory_space<vmem>>, %arg10: memref<4x8x128xf32, #tpu.memory_space<vmem>>, %arg11: memref<4x8x512xf32, #tpu.memory_space<vmem>>, %arg12: memref<4x8x128xf32, #tpu.memory_space<vmem>>, %arg13: memref<8x128xf32, #tpu.memory_space<vmem>>, %arg14: memref<8x128xf32, #tpu.memory_space<vmem>>, %arg15: memref<8x128xf32, #tpu.memory_space<vmem>>, %arg16: memref<8x128xf32, #tpu.memory_space<vmem>>) attributes {dimension_semantics = [#tpu.dimension_semantics<arbitrary>], iteration_bounds = array<i64: 2>, scalar_prefetch = 0 : i64, scratch_operands = 6 : i64, tpu.core_type = #tpu.core_type<tc>, window_params = [{transform_indices = @transform_0, window_bounds = array<i64: 4, 8, 128>}, {pipeline_mode = #tpu.pipeline_mode<synchronous>, transform_indices = @transform_1, window_bounds = array<i64: 128, 512>}, {pipeline_mode = #tpu.pipeline_mode<synchronous>, transform_indices = @transform_2, window_bounds = array<i64: 128, 512>}, {pipeline_mode = #tpu.pipeline_mode<synchronous>, transform_indices = @transform_3, window_bounds = array<i64: 1, 512>}, {pipeline_mode = #tpu.pipeline_mode<synchronous>, transform_indices = @transform_4, window_bounds = array<i64: 128, 512>}, {pipeline_mode = #tpu.pipeline_mode<synchronous>, transform_indices = @transform_5, window_bounds = array<i64: 128, 512>}, {pipeline_mode = #tpu.pipeline_mode<synchronous>, transform_indices = @transform_6, window_bounds = array<i64: 1, 512>}, {pipeline_mode = #tpu.pipeline_mode<synchronous>, transform_indices = @transform_7, window_bounds = array<i64: 128, 128>}, {pipeline_mode = #tpu.pipeline_mode<synchronous>, transform_indices = @transform_8, window_bounds = array<i64: 1, 128>}, {transform_indices = @transform_9, window_bounds = array<i64: 4, 8, 128>}]} {
    %c0_i32 = arith.constant 0 : i32
    %0 = arith.cmpi eq, %arg0, %c0_i32 : i32
    %1 = arith.extui %0 : i1 to i32
    %c0_i32_0 = arith.constant 0 : i32
    %2 = arith.cmpi ne, %1, %c0_i32_0 : i32
    scf.if %2 {
      %cst_134 = arith.constant 0.000000e+00 : f32
      %328 = vector.broadcast %cst_134 : f32 to vector<8x128xf32>
      %c0_135 = arith.constant 0 : index
      %c0_136 = arith.constant 0 : index
      %329 = vector.load %arg13[%c0_135, %c0_136] : memref<8x128xf32, #tpu.memory_space<vmem>>, vector<8x128xf32>
      tpu.vector_store %arg13[%c0_135, %c0_136], %328 {strides = array<i32>} : memref<8x128xf32, #tpu.memory_space<vmem>>, vector<8x128xf32>,
      %c0_137 = arith.constant 0 : index
      %c0_138 = arith.constant 0 : index
      %330 = vector.load %arg14[%c0_137, %c0_138] : memref<8x128xf32, #tpu.memory_space<vmem>>, vector<8x128xf32>
      tpu.vector_store %arg14[%c0_137, %c0_138], %328 {strides = array<i32>} : memref<8x128xf32, #tpu.memory_space<vmem>>, vector<8x128xf32>,
      %c0_139 = arith.constant 0 : index
      %c0_140 = arith.constant 0 : index
      %331 = vector.load %arg15[%c0_139, %c0_140] : memref<8x128xf32, #tpu.memory_space<vmem>>, vector<8x128xf32>
      tpu.vector_store %arg15[%c0_139, %c0_140], %328 {strides = array<i32>} : memref<8x128xf32, #tpu.memory_space<vmem>>, vector<8x128xf32>,
      %c0_141 = arith.constant 0 : index
      %c0_142 = arith.constant 0 : index
      %332 = vector.load %arg16[%c0_141, %c0_142] : memref<8x128xf32, #tpu.memory_space<vmem>>, vector<8x128xf32>
      tpu.vector_store %arg16[%c0_141, %c0_142], %328 {strides = array<i32>} : memref<8x128xf32, #tpu.memory_space<vmem>>, vector<8x128xf32>,
    } else {
    }
    %c0 = arith.constant 0 : index
    %c0_1 = arith.constant 0 : index
    %c0_2 = arith.constant 0 : index
    %3 = vector.load %arg1[%c0, %c0_1, %c0_2] : memref<4x8x128xbf16, #tpu.memory_space<vmem>>, vector<4x8x128xbf16>
    %4 = vector.shape_cast %3 : vector<4x8x128xbf16> to vector<32x128xbf16>
    %c0_3 = arith.constant 0 : index
    %c0_4 = arith.constant 0 : index
    %5 = vector.load %arg2[%c0_3, %c0_4] : memref<128x512xbf16, #tpu.memory_space<vmem>>, vector<128x512xbf16>
    %cst = arith.constant dense<0.000000e+00> : vector<32x512xf32>
    %6 = tpu.matmul %4, %5, %cst {dimension_numbers = #tpu.dot_dimension_numbers<[1], [0], [0], [1], [0, 0, 1, 1], [], []>} : vector<32x128xbf16>, vector<128x512xbf16>, vector<32x512xf32> -> vector<32x512xf32>
    %c0_5 = arith.constant 0 : index
    %c0_6 = arith.constant 0 : index
    %7 = vector.load %arg4[%c0_5, %c0_6] : memref<1x512xf32, #tpu.memory_space<vmem>>, vector<1x512xf32>
    %8 = vector.broadcast %7 : vector<1x512xf32> to vector<32x512xf32>
    %9 = arith.addf %6, %8 : vector<32x512xf32>
    %10 = vector.shape_cast %9 : vector<32x512xf32> to vector<4x8x512xf32>
    %c0_7 = arith.constant 0 : index
    %c0_8 = arith.constant 0 : index
    %c0_9 = arith.constant 0 : index
    %11 = vector.load %arg11[%c0_7, %c0_8, %c0_9] : memref<4x8x512xf32, #tpu.memory_space<vmem>>, vector<4x8x512xf32>
    tpu.vector_store %arg11[%c0_7, %c0_8, %c0_9], %10 {strides = array<i32>} : memref<4x8x512xf32, #tpu.memory_space<vmem>>, vector<4x8x512xf32>,
    %c0_10 = arith.constant 0 : index
    %c0_11 = arith.constant 0 : index
    %12 = vector.load %arg13[%c0_10, %c0_11] : memref<8x128xf32, #tpu.memory_space<vmem>>, vector<8x128xf32>
    %c0_12 = arith.constant 0 : index
    %c0_13 = arith.constant 0 : index
    %13 = vector.load %arg14[%c0_12, %c0_13] : memref<8x128xf32, #tpu.memory_space<vmem>>, vector<8x128xf32>
    %c0_i32_14 = arith.constant 0 : i32
    %14 = arith.index_cast %c0_i32_14 : i32 to index
    %c0_15 = arith.constant 0 : index
    %c0_16 = arith.constant 0 : index
    %15 = vector.load %arg11[%14, %c0_15, %c0_16] : memref<4x8x512xf32, #tpu.memory_space<vmem>>, vector<1x8x512xf32>
    %16 = vector.shape_cast %15 : vector<1x8x512xf32> to vector<8x512xf32>
    %17 = arith.truncf %12 : vector<8x128xf32> to vector<8x128xbf16>
    %c0_17 = arith.constant 0 : index
    %c0_18 = arith.constant 0 : index
    %18 = vector.load %arg3[%c0_17, %c0_18] : memref<128x512xbf16, #tpu.memory_space<vmem>>, vector<128x512xbf16>
    %cst_19 = arith.constant dense<0.000000e+00> : vector<8x512xf32>
    %19 = tpu.matmul %17, %18, %cst_19 {dimension_numbers = #tpu.dot_dimension_numbers<[1], [0], [0], [1], [0, 0, 1, 1], [], []>} : vector<8x128xbf16>, vector<128x512xbf16>, vector<8x512xf32> -> vector<8x512xf32>
    %20 = arith.addf %16, %19 : vector<8x512xf32>
    %21 = vector.extract_strided_slice %20 {offsets = [0, 0], sizes = [8, 128], strides = [1, 1]} : vector<8x512xf32> to vector<8x128xf32>
    %22 = arith.negf %21 : vector<8x128xf32>
    %23 = math.exp %22 : vector<8x128xf32>
    %cst_20 = arith.constant 1.000000e+00 : f32
    %24 = vector.broadcast %cst_20 : f32 to vector<8x128xf32>
    %25 = arith.addf %24, %23 : vector<8x128xf32>
    %26 = arith.divf %24, %25 : vector<8x128xf32>
    %27 = vector.extract_strided_slice %20 {offsets = [0, 128], sizes = [8, 128], strides = [1, 1]} : vector<8x512xf32> to vector<8x128xf32>
    %28 = arith.negf %27 : vector<8x128xf32>
    %29 = math.exp %28 : vector<8x128xf32>
    %cst_21 = arith.constant 1.000000e+00 : f32
    %30 = vector.broadcast %cst_21 : f32 to vector<8x128xf32>
    %31 = arith.addf %30, %29 : vector<8x128xf32>
    %32 = arith.divf %30, %31 : vector<8x128xf32>
    %33 = vector.extract_strided_slice %20 {offsets = [0, 256], sizes = [8, 128], strides = [1, 1]} : vector<8x512xf32> to vector<8x128xf32>
    %34 = math.tanh %33 : vector<8x128xf32>
    %35 = vector.extract_strided_slice %20 {offsets = [0, 384], sizes = [8, 128], strides = [1, 1]} : vector<8x512xf32> to vector<8x128xf32>
    %36 = arith.negf %35 : vector<8x128xf32>
    %37 = math.exp %36 : vector<8x128xf32>
    %cst_22 = arith.constant 1.000000e+00 : f32
    %38 = vector.broadcast %cst_22 : f32 to vector<8x128xf32>
    %39 = arith.addf %38, %37 : vector<8x128xf32>
    %40 = arith.divf %38, %39 : vector<8x128xf32>
    %41 = arith.mulf %32, %13 : vector<8x128xf32>
    %42 = arith.mulf %26, %34 : vector<8x128xf32>
    %43 = arith.addf %41, %42 : vector<8x128xf32>
    %44 = math.tanh %43 : vector<8x128xf32>
    %45 = arith.mulf %40, %44 : vector<8x128xf32>
    %46 = arith.index_cast %c0_i32_14 : i32 to index
    %c0_23 = arith.constant 0 : index
    %c0_24 = arith.constant 0 : index
    %47 = vector.load %arg12[%46, %c0_23, %c0_24] : memref<4x8x128xf32, #tpu.memory_space<vmem>>, vector<1x8x128xf32>
    %48 = vector.shape_cast %47 : vector<1x8x128xf32> to vector<8x128xf32>
    %49 = vector.shape_cast %45 : vector<8x128xf32> to vector<1x8x128xf32>
    tpu.vector_store %arg12[%46, %c0_23, %c0_24], %49 {strides = array<i32>} : memref<4x8x128xf32, #tpu.memory_space<vmem>>, vector<1x8x128xf32>,
    %c1_i32 = arith.constant 1 : i32
    %50 = arith.index_cast %c1_i32 : i32 to index
    %c0_25 = arith.constant 0 : index
    %c0_26 = arith.constant 0 : index
    %51 = vector.load %arg11[%50, %c0_25, %c0_26] : memref<4x8x512xf32, #tpu.memory_space<vmem>>, vector<1x8x512xf32>
    %52 = vector.shape_cast %51 : vector<1x8x512xf32> to vector<8x512xf32>
    %53 = arith.truncf %45 : vector<8x128xf32> to vector<8x128xbf16>
    %c0_27 = arith.constant 0 : index
    %c0_28 = arith.constant 0 : index
    %54 = vector.load %arg3[%c0_27, %c0_28] : memref<128x512xbf16, #tpu.memory_space<vmem>>, vector<128x512xbf16>
    %cst_29 = arith.constant dense<0.000000e+00> : vector<8x512xf32>
    %55 = tpu.matmul %53, %54, %cst_29 {dimension_numbers = #tpu.dot_dimension_numbers<[1], [0], [0], [1], [0, 0, 1, 1], [], []>} : vector<8x128xbf16>, vector<128x512xbf16>, vector<8x512xf32> -> vector<8x512xf32>
    %56 = arith.addf %52, %55 : vector<8x512xf32>
    %57 = vector.extract_strided_slice %56 {offsets = [0, 0], sizes = [8, 128], strides = [1, 1]} : vector<8x512xf32> to vector<8x128xf32>
    %58 = arith.negf %57 : vector<8x128xf32>
    %59 = math.exp %58 : vector<8x128xf32>
    %cst_30 = arith.constant 1.000000e+00 : f32
    %60 = vector.broadcast %cst_30 : f32 to vector<8x128xf32>
    %61 = arith.addf %60, %59 : vector<8x128xf32>
    %62 = arith.divf %60, %61 : vector<8x128xf32>
    %63 = vector.extract_strided_slice %56 {offsets = [0, 128], sizes = [8, 128], strides = [1, 1]} : vector<8x512xf32> to vector<8x128xf32>
    %64 = arith.negf %63 : vector<8x128xf32>
    %65 = math.exp %64 : vector<8x128xf32>
    %cst_31 = arith.constant 1.000000e+00 : f32
    %66 = vector.broadcast %cst_31 : f32 to vector<8x128xf32>
    %67 = arith.addf %66, %65 : vector<8x128xf32>
    %68 = arith.divf %66, %67 : vector<8x128xf32>
    %69 = vector.extract_strided_slice %56 {offsets = [0, 256], sizes = [8, 128], strides = [1, 1]} : vector<8x512xf32> to vector<8x128xf32>
    %70 = math.tanh %69 : vector<8x128xf32>
    %71 = vector.extract_strided_slice %56 {offsets = [0, 384], sizes = [8, 128], strides = [1, 1]} : vector<8x512xf32> to vector<8x128xf32>
    %72 = arith.negf %71 : vector<8x128xf32>
    %73 = math.exp %72 : vector<8x128xf32>
    %cst_32 = arith.constant 1.000000e+00 : f32
    %74 = vector.broadcast %cst_32 : f32 to vector<8x128xf32>
    %75 = arith.addf %74, %73 : vector<8x128xf32>
    %76 = arith.divf %74, %75 : vector<8x128xf32>
    %77 = arith.mulf %68, %43 : vector<8x128xf32>
    %78 = arith.mulf %62, %70 : vector<8x128xf32>
    %79 = arith.addf %77, %78 : vector<8x128xf32>
    %80 = math.tanh %79 : vector<8x128xf32>
    %81 = arith.mulf %76, %80 : vector<8x128xf32>
    %82 = arith.index_cast %c1_i32 : i32 to index
    %c0_33 = arith.constant 0 : index
    %c0_34 = arith.constant 0 : index
    %83 = vector.load %arg12[%82, %c0_33, %c0_34] : memref<4x8x128xf32, #tpu.memory_space<vmem>>, vector<1x8x128xf32>
    %84 = vector.shape_cast %83 : vector<1x8x128xf32> to vector<8x128xf32>
    %85 = vector.shape_cast %81 : vector<8x128xf32> to vector<1x8x128xf32>
    tpu.vector_store %arg12[%82, %c0_33, %c0_34], %85 {strides = array<i32>} : memref<4x8x128xf32, #tpu.memory_space<vmem>>, vector<1x8x128xf32>,
    %c2_i32 = arith.constant 2 : i32
    %86 = arith.index_cast %c2_i32 : i32 to index
    %c0_35 = arith.constant 0 : index
    %c0_36 = arith.constant 0 : index
    %87 = vector.load %arg11[%86, %c0_35, %c0_36] : memref<4x8x512xf32, #tpu.memory_space<vmem>>, vector<1x8x512xf32>
    %88 = vector.shape_cast %87 : vector<1x8x512xf32> to vector<8x512xf32>
    %89 = arith.truncf %81 : vector<8x128xf32> to vector<8x128xbf16>
    %c0_37 = arith.constant 0 : index
    %c0_38 = arith.constant 0 : index
    %90 = vector.load %arg3[%c0_37, %c0_38] : memref<128x512xbf16, #tpu.memory_space<vmem>>, vector<128x512xbf16>
    %cst_39 = arith.constant dense<0.000000e+00> : vector<8x512xf32>
    %91 = tpu.matmul %89, %90, %cst_39 {dimension_numbers = #tpu.dot_dimension_numbers<[1], [0], [0], [1], [0, 0, 1, 1], [], []>} : vector<8x128xbf16>, vector<128x512xbf16>, vector<8x512xf32> -> vector<8x512xf32>
    %92 = arith.addf %88, %91 : vector<8x512xf32>
    %93 = vector.extract_strided_slice %92 {offsets = [0, 0], sizes = [8, 128], strides = [1, 1]} : vector<8x512xf32> to vector<8x128xf32>
    %94 = arith.negf %93 : vector<8x128xf32>
    %95 = math.exp %94 : vector<8x128xf32>
    %cst_40 = arith.constant 1.000000e+00 : f32
    %96 = vector.broadcast %cst_40 : f32 to vector<8x128xf32>
    %97 = arith.addf %96, %95 : vector<8x128xf32>
    %98 = arith.divf %96, %97 : vector<8x128xf32>
    %99 = vector.extract_strided_slice %92 {offsets = [0, 128], sizes = [8, 128], strides = [1, 1]} : vector<8x512xf32> to vector<8x128xf32>
    %100 = arith.negf %99 : vector<8x128xf32>
    %101 = math.exp %100 : vector<8x128xf32>
    %cst_41 = arith.constant 1.000000e+00 : f32
    %102 = vector.broadcast %cst_41 : f32 to vector<8x128xf32>
    %103 = arith.addf %102, %101 : vector<8x128xf32>
    %104 = arith.divf %102, %103 : vector<8x128xf32>
    %105 = vector.extract_strided_slice %92 {offsets = [0, 256], sizes = [8, 128], strides = [1, 1]} : vector<8x512xf32> to vector<8x128xf32>
    %106 = math.tanh %105 : vector<8x128xf32>
    %107 = vector.extract_strided_slice %92 {offsets = [0, 384], sizes = [8, 128], strides = [1, 1]} : vector<8x512xf32> to vector<8x128xf32>
    %108 = arith.negf %107 : vector<8x128xf32>
    %109 = math.exp %108 : vector<8x128xf32>
    %cst_42 = arith.constant 1.000000e+00 : f32
    %110 = vector.broadcast %cst_42 : f32 to vector<8x128xf32>
    %111 = arith.addf %110, %109 : vector<8x128xf32>
    %112 = arith.divf %110, %111 : vector<8x128xf32>
    %113 = arith.mulf %104, %79 : vector<8x128xf32>
    %114 = arith.mulf %98, %106 : vector<8x128xf32>
    %115 = arith.addf %113, %114 : vector<8x128xf32>
    %116 = math.tanh %115 : vector<8x128xf32>
    %117 = arith.mulf %112, %116 : vector<8x128xf32>
    %118 = arith.index_cast %c2_i32 : i32 to index
    %c0_43 = arith.constant 0 : index
    %c0_44 = arith.constant 0 : index
    %119 = vector.load %arg12[%118, %c0_43, %c0_44] : memref<4x8x128xf32, #tpu.memory_space<vmem>>, vector<1x8x128xf32>
    %120 = vector.shape_cast %119 : vector<1x8x128xf32> to vector<8x128xf32>
    %121 = vector.shape_cast %117 : vector<8x128xf32> to vector<1x8x128xf32>
    tpu.vector_store %arg12[%118, %c0_43, %c0_44], %121 {strides = array<i32>} : memref<4x8x128xf32, #tpu.memory_space<vmem>>, vector<1x8x128xf32>,
    %c3_i32 = arith.constant 3 : i32
    %122 = arith.index_cast %c3_i32 : i32 to index
    %c0_45 = arith.constant 0 : index
    %c0_46 = arith.constant 0 : index
    %123 = vector.load %arg11[%122, %c0_45, %c0_46] : memref<4x8x512xf32, #tpu.memory_space<vmem>>, vector<1x8x512xf32>
    %124 = vector.shape_cast %123 : vector<1x8x512xf32> to vector<8x512xf32>
    %125 = arith.truncf %117 : vector<8x128xf32> to vector<8x128xbf16>
    %c0_47 = arith.constant 0 : index
    %c0_48 = arith.constant 0 : index
    %126 = vector.load %arg3[%c0_47, %c0_48] : memref<128x512xbf16, #tpu.memory_space<vmem>>, vector<128x512xbf16>
    %cst_49 = arith.constant dense<0.000000e+00> : vector<8x512xf32>
    %127 = tpu.matmul %125, %126, %cst_49 {dimension_numbers = #tpu.dot_dimension_numbers<[1], [0], [0], [1], [0, 0, 1, 1], [], []>} : vector<8x128xbf16>, vector<128x512xbf16>, vector<8x512xf32> -> vector<8x512xf32>
    %128 = arith.addf %124, %127 : vector<8x512xf32>
    %129 = vector.extract_strided_slice %128 {offsets = [0, 0], sizes = [8, 128], strides = [1, 1]} : vector<8x512xf32> to vector<8x128xf32>
    %130 = arith.negf %129 : vector<8x128xf32>
    %131 = math.exp %130 : vector<8x128xf32>
    %cst_50 = arith.constant 1.000000e+00 : f32
    %132 = vector.broadcast %cst_50 : f32 to vector<8x128xf32>
    %133 = arith.addf %132, %131 : vector<8x128xf32>
    %134 = arith.divf %132, %133 : vector<8x128xf32>
    %135 = vector.extract_strided_slice %128 {offsets = [0, 128], sizes = [8, 128], strides = [1, 1]} : vector<8x512xf32> to vector<8x128xf32>
    %136 = arith.negf %135 : vector<8x128xf32>
    %137 = math.exp %136 : vector<8x128xf32>
    %cst_51 = arith.constant 1.000000e+00 : f32
    %138 = vector.broadcast %cst_51 : f32 to vector<8x128xf32>
    %139 = arith.addf %138, %137 : vector<8x128xf32>
    %140 = arith.divf %138, %139 : vector<8x128xf32>
    %141 = vector.extract_strided_slice %128 {offsets = [0, 256], sizes = [8, 128], strides = [1, 1]} : vector<8x512xf32> to vector<8x128xf32>
    %142 = math.tanh %141 : vector<8x128xf32>
    %143 = vector.extract_strided_slice %128 {offsets = [0, 384], sizes = [8, 128], strides = [1, 1]} : vector<8x512xf32> to vector<8x128xf32>
    %144 = arith.negf %143 : vector<8x128xf32>
    %145 = math.exp %144 : vector<8x128xf32>
    %cst_52 = arith.constant 1.000000e+00 : f32
    %146 = vector.broadcast %cst_52 : f32 to vector<8x128xf32>
    %147 = arith.addf %146, %145 : vector<8x128xf32>
    %148 = arith.divf %146, %147 : vector<8x128xf32>
    %149 = arith.mulf %140, %115 : vector<8x128xf32>
    %150 = arith.mulf %134, %142 : vector<8x128xf32>
    %151 = arith.addf %149, %150 : vector<8x128xf32>
    %152 = math.tanh %151 : vector<8x128xf32>
    %153 = arith.mulf %148, %152 : vector<8x128xf32>
    %154 = arith.index_cast %c3_i32 : i32 to index
    %c0_53 = arith.constant 0 : index
    %c0_54 = arith.constant 0 : index
    %155 = vector.load %arg12[%154, %c0_53, %c0_54] : memref<4x8x128xf32, #tpu.memory_space<vmem>>, vector<1x8x128xf32>
    %156 = vector.shape_cast %155 : vector<1x8x128xf32> to vector<8x128xf32>
    %157 = vector.shape_cast %153 : vector<8x128xf32> to vector<1x8x128xf32>
    tpu.vector_store %arg12[%154, %c0_53, %c0_54], %157 {strides = array<i32>} : memref<4x8x128xf32, #tpu.memory_space<vmem>>, vector<1x8x128xf32>,
    %c4_i32 = arith.constant 4 : i32
    %c0_55 = arith.constant 0 : index
    %c0_56 = arith.constant 0 : index
    %158 = vector.load %arg13[%c0_55, %c0_56] : memref<8x128xf32, #tpu.memory_space<vmem>>, vector<8x128xf32>
    tpu.vector_store %arg13[%c0_55, %c0_56], %153 {strides = array<i32>} : memref<8x128xf32, #tpu.memory_space<vmem>>, vector<8x128xf32>,
    %c0_57 = arith.constant 0 : index
    %c0_58 = arith.constant 0 : index
    %159 = vector.load %arg14[%c0_57, %c0_58] : memref<8x128xf32, #tpu.memory_space<vmem>>, vector<8x128xf32>
    tpu.vector_store %arg14[%c0_57, %c0_58], %151 {strides = array<i32>} : memref<8x128xf32, #tpu.memory_space<vmem>>, vector<8x128xf32>,
    %c0_59 = arith.constant 0 : index
    %c0_60 = arith.constant 0 : index
    %c0_61 = arith.constant 0 : index
    %160 = vector.load %arg12[%c0_59, %c0_60, %c0_61] : memref<4x8x128xf32, #tpu.memory_space<vmem>>, vector<4x8x128xf32>
    %161 = vector.shape_cast %160 : vector<4x8x128xf32> to vector<32x128xf32>
    %162 = arith.truncf %161 : vector<32x128xf32> to vector<32x128xbf16>
    %c0_62 = arith.constant 0 : index
    %c0_63 = arith.constant 0 : index
    %163 = vector.load %arg5[%c0_62, %c0_63] : memref<128x512xbf16, #tpu.memory_space<vmem>>, vector<128x512xbf16>
    %cst_64 = arith.constant dense<0.000000e+00> : vector<32x512xf32>
    %164 = tpu.matmul %162, %163, %cst_64 {dimension_numbers = #tpu.dot_dimension_numbers<[1], [0], [0], [1], [0, 0, 1, 1], [], []>} : vector<32x128xbf16>, vector<128x512xbf16>, vector<32x512xf32> -> vector<32x512xf32>
    %c0_65 = arith.constant 0 : index
    %c0_66 = arith.constant 0 : index
    %165 = vector.load %arg7[%c0_65, %c0_66] : memref<1x512xf32, #tpu.memory_space<vmem>>, vector<1x512xf32>
    %166 = vector.broadcast %165 : vector<1x512xf32> to vector<32x512xf32>
    %167 = arith.addf %164, %166 : vector<32x512xf32>
    %168 = vector.shape_cast %167 : vector<32x512xf32> to vector<4x8x512xf32>
    %c0_67 = arith.constant 0 : index
    %c0_68 = arith.constant 0 : index
    %c0_69 = arith.constant 0 : index
    %169 = vector.load %arg11[%c0_67, %c0_68, %c0_69] : memref<4x8x512xf32, #tpu.memory_space<vmem>>, vector<4x8x512xf32>
    tpu.vector_store %arg11[%c0_67, %c0_68, %c0_69], %168 {strides = array<i32>} : memref<4x8x512xf32, #tpu.memory_space<vmem>>, vector<4x8x512xf32>,
    %c0_70 = arith.constant 0 : index
    %c0_71 = arith.constant 0 : index
    %170 = vector.load %arg15[%c0_70, %c0_71] : memref<8x128xf32, #tpu.memory_space<vmem>>, vector<8x128xf32>
    %c0_72 = arith.constant 0 : index
    %c0_73 = arith.constant 0 : index
    %171 = vector.load %arg16[%c0_72, %c0_73] : memref<8x128xf32, #tpu.memory_space<vmem>>, vector<8x128xf32>
    %c0_i32_74 = arith.constant 0 : i32
    %172 = arith.index_cast %c0_i32_74 : i32 to index
    %c0_75 = arith.constant 0 : index
    %c0_76 = arith.constant 0 : index
    %173 = vector.load %arg11[%172, %c0_75, %c0_76] : memref<4x8x512xf32, #tpu.memory_space<vmem>>, vector<1x8x512xf32>
    %174 = vector.shape_cast %173 : vector<1x8x512xf32> to vector<8x512xf32>
    %175 = arith.truncf %170 : vector<8x128xf32> to vector<8x128xbf16>
    %c0_77 = arith.constant 0 : index
    %c0_78 = arith.constant 0 : index
    %176 = vector.load %arg6[%c0_77, %c0_78] : memref<128x512xbf16, #tpu.memory_space<vmem>>, vector<128x512xbf16>
    %cst_79 = arith.constant dense<0.000000e+00> : vector<8x512xf32>
    %177 = tpu.matmul %175, %176, %cst_79 {dimension_numbers = #tpu.dot_dimension_numbers<[1], [0], [0], [1], [0, 0, 1, 1], [], []>} : vector<8x128xbf16>, vector<128x512xbf16>, vector<8x512xf32> -> vector<8x512xf32>
    %178 = arith.addf %174, %177 : vector<8x512xf32>
    %179 = vector.extract_strided_slice %178 {offsets = [0, 0], sizes = [8, 128], strides = [1, 1]} : vector<8x512xf32> to vector<8x128xf32>
    %180 = arith.negf %179 : vector<8x128xf32>
    %181 = math.exp %180 : vector<8x128xf32>
    %cst_80 = arith.constant 1.000000e+00 : f32
    %182 = vector.broadcast %cst_80 : f32 to vector<8x128xf32>
    %183 = arith.addf %182, %181 : vector<8x128xf32>
    %184 = arith.divf %182, %183 : vector<8x128xf32>
    %185 = vector.extract_strided_slice %178 {offsets = [0, 128], sizes = [8, 128], strides = [1, 1]} : vector<8x512xf32> to vector<8x128xf32>
    %186 = arith.negf %185 : vector<8x128xf32>
    %187 = math.exp %186 : vector<8x128xf32>
    %cst_81 = arith.constant 1.000000e+00 : f32
    %188 = vector.broadcast %cst_81 : f32 to vector<8x128xf32>
    %189 = arith.addf %188, %187 : vector<8x128xf32>
    %190 = arith.divf %188, %189 : vector<8x128xf32>
    %191 = vector.extract_strided_slice %178 {offsets = [0, 256], sizes = [8, 128], strides = [1, 1]} : vector<8x512xf32> to vector<8x128xf32>
    %192 = math.tanh %191 : vector<8x128xf32>
    %193 = vector.extract_strided_slice %178 {offsets = [0, 384], sizes = [8, 128], strides = [1, 1]} : vector<8x512xf32> to vector<8x128xf32>
    %194 = arith.negf %193 : vector<8x128xf32>
    %195 = math.exp %194 : vector<8x128xf32>
    %cst_82 = arith.constant 1.000000e+00 : f32
    %196 = vector.broadcast %cst_82 : f32 to vector<8x128xf32>
    %197 = arith.addf %196, %195 : vector<8x128xf32>
    %198 = arith.divf %196, %197 : vector<8x128xf32>
    %199 = arith.mulf %190, %171 : vector<8x128xf32>
    %200 = arith.mulf %184, %192 : vector<8x128xf32>
    %201 = arith.addf %199, %200 : vector<8x128xf32>
    %202 = math.tanh %201 : vector<8x128xf32>
    %203 = arith.mulf %198, %202 : vector<8x128xf32>
    %204 = arith.index_cast %c0_i32_74 : i32 to index
    %c0_83 = arith.constant 0 : index
    %c0_84 = arith.constant 0 : index
    %205 = vector.load %arg12[%204, %c0_83, %c0_84] : memref<4x8x128xf32, #tpu.memory_space<vmem>>, vector<1x8x128xf32>
    %206 = vector.shape_cast %205 : vector<1x8x128xf32> to vector<8x128xf32>
    %207 = vector.shape_cast %203 : vector<8x128xf32> to vector<1x8x128xf32>
    tpu.vector_store %arg12[%204, %c0_83, %c0_84], %207 {strides = array<i32>} : memref<4x8x128xf32, #tpu.memory_space<vmem>>, vector<1x8x128xf32>,
    %c1_i32_85 = arith.constant 1 : i32
    %208 = arith.index_cast %c1_i32_85 : i32 to index
    %c0_86 = arith.constant 0 : index
    %c0_87 = arith.constant 0 : index
    %209 = vector.load %arg11[%208, %c0_86, %c0_87] : memref<4x8x512xf32, #tpu.memory_space<vmem>>, vector<1x8x512xf32>
    %210 = vector.shape_cast %209 : vector<1x8x512xf32> to vector<8x512xf32>
    %211 = arith.truncf %203 : vector<8x128xf32> to vector<8x128xbf16>
    %c0_88 = arith.constant 0 : index
    %c0_89 = arith.constant 0 : index
    %212 = vector.load %arg6[%c0_88, %c0_89] : memref<128x512xbf16, #tpu.memory_space<vmem>>, vector<128x512xbf16>
    %cst_90 = arith.constant dense<0.000000e+00> : vector<8x512xf32>
    %213 = tpu.matmul %211, %212, %cst_90 {dimension_numbers = #tpu.dot_dimension_numbers<[1], [0], [0], [1], [0, 0, 1, 1], [], []>} : vector<8x128xbf16>, vector<128x512xbf16>, vector<8x512xf32> -> vector<8x512xf32>
    %214 = arith.addf %210, %213 : vector<8x512xf32>
    %215 = vector.extract_strided_slice %214 {offsets = [0, 0], sizes = [8, 128], strides = [1, 1]} : vector<8x512xf32> to vector<8x128xf32>
    %216 = arith.negf %215 : vector<8x128xf32>
    %217 = math.exp %216 : vector<8x128xf32>
    %cst_91 = arith.constant 1.000000e+00 : f32
    %218 = vector.broadcast %cst_91 : f32 to vector<8x128xf32>
    %219 = arith.addf %218, %217 : vector<8x128xf32>
    %220 = arith.divf %218, %219 : vector<8x128xf32>
    %221 = vector.extract_strided_slice %214 {offsets = [0, 128], sizes = [8, 128], strides = [1, 1]} : vector<8x512xf32> to vector<8x128xf32>
    %222 = arith.negf %221 : vector<8x128xf32>
    %223 = math.exp %222 : vector<8x128xf32>
    %cst_92 = arith.constant 1.000000e+00 : f32
    %224 = vector.broadcast %cst_92 : f32 to vector<8x128xf32>
    %225 = arith.addf %224, %223 : vector<8x128xf32>
    %226 = arith.divf %224, %225 : vector<8x128xf32>
    %227 = vector.extract_strided_slice %214 {offsets = [0, 256], sizes = [8, 128], strides = [1, 1]} : vector<8x512xf32> to vector<8x128xf32>
    %228 = math.tanh %227 : vector<8x128xf32>
    %229 = vector.extract_strided_slice %214 {offsets = [0, 384], sizes = [8, 128], strides = [1, 1]} : vector<8x512xf32> to vector<8x128xf32>
    %230 = arith.negf %229 : vector<8x128xf32>
    %231 = math.exp %230 : vector<8x128xf32>
    %cst_93 = arith.constant 1.000000e+00 : f32
    %232 = vector.broadcast %cst_93 : f32 to vector<8x128xf32>
    %233 = arith.addf %232, %231 : vector<8x128xf32>
    %234 = arith.divf %232, %233 : vector<8x128xf32>
    %235 = arith.mulf %226, %201 : vector<8x128xf32>
    %236 = arith.mulf %220, %228 : vector<8x128xf32>
    %237 = arith.addf %235, %236 : vector<8x128xf32>
    %238 = math.tanh %237 : vector<8x128xf32>
    %239 = arith.mulf %234, %238 : vector<8x128xf32>
    %240 = arith.index_cast %c1_i32_85 : i32 to index
    %c0_94 = arith.constant 0 : index
    %c0_95 = arith.constant 0 : index
    %241 = vector.load %arg12[%240, %c0_94, %c0_95] : memref<4x8x128xf32, #tpu.memory_space<vmem>>, vector<1x8x128xf32>
    %242 = vector.shape_cast %241 : vector<1x8x128xf32> to vector<8x128xf32>
    %243 = vector.shape_cast %239 : vector<8x128xf32> to vector<1x8x128xf32>
    tpu.vector_store %arg12[%240, %c0_94, %c0_95], %243 {strides = array<i32>} : memref<4x8x128xf32, #tpu.memory_space<vmem>>, vector<1x8x128xf32>,
    %c2_i32_96 = arith.constant 2 : i32
    %244 = arith.index_cast %c2_i32_96 : i32 to index
    %c0_97 = arith.constant 0 : index
    %c0_98 = arith.constant 0 : index
    %245 = vector.load %arg11[%244, %c0_97, %c0_98] : memref<4x8x512xf32, #tpu.memory_space<vmem>>, vector<1x8x512xf32>
    %246 = vector.shape_cast %245 : vector<1x8x512xf32> to vector<8x512xf32>
    %247 = arith.truncf %239 : vector<8x128xf32> to vector<8x128xbf16>
    %c0_99 = arith.constant 0 : index
    %c0_100 = arith.constant 0 : index
    %248 = vector.load %arg6[%c0_99, %c0_100] : memref<128x512xbf16, #tpu.memory_space<vmem>>, vector<128x512xbf16>
    %cst_101 = arith.constant dense<0.000000e+00> : vector<8x512xf32>
    %249 = tpu.matmul %247, %248, %cst_101 {dimension_numbers = #tpu.dot_dimension_numbers<[1], [0], [0], [1], [0, 0, 1, 1], [], []>} : vector<8x128xbf16>, vector<128x512xbf16>, vector<8x512xf32> -> vector<8x512xf32>
    %250 = arith.addf %246, %249 : vector<8x512xf32>
    %251 = vector.extract_strided_slice %250 {offsets = [0, 0], sizes = [8, 128], strides = [1, 1]} : vector<8x512xf32> to vector<8x128xf32>
    %252 = arith.negf %251 : vector<8x128xf32>
    %253 = math.exp %252 : vector<8x128xf32>
    %cst_102 = arith.constant 1.000000e+00 : f32
    %254 = vector.broadcast %cst_102 : f32 to vector<8x128xf32>
    %255 = arith.addf %254, %253 : vector<8x128xf32>
    %256 = arith.divf %254, %255 : vector<8x128xf32>
    %257 = vector.extract_strided_slice %250 {offsets = [0, 128], sizes = [8, 128], strides = [1, 1]} : vector<8x512xf32> to vector<8x128xf32>
    %258 = arith.negf %257 : vector<8x128xf32>
    %259 = math.exp %258 : vector<8x128xf32>
    %cst_103 = arith.constant 1.000000e+00 : f32
    %260 = vector.broadcast %cst_103 : f32 to vector<8x128xf32>
    %261 = arith.addf %260, %259 : vector<8x128xf32>
    %262 = arith.divf %260, %261 : vector<8x128xf32>
    %263 = vector.extract_strided_slice %250 {offsets = [0, 256], sizes = [8, 128], strides = [1, 1]} : vector<8x512xf32> to vector<8x128xf32>
    %264 = math.tanh %263 : vector<8x128xf32>
    %265 = vector.extract_strided_slice %250 {offsets = [0, 384], sizes = [8, 128], strides = [1, 1]} : vector<8x512xf32> to vector<8x128xf32>
    %266 = arith.negf %265 : vector<8x128xf32>
    %267 = math.exp %266 : vector<8x128xf32>
    %cst_104 = arith.constant 1.000000e+00 : f32
    %268 = vector.broadcast %cst_104 : f32 to vector<8x128xf32>
    %269 = arith.addf %268, %267 : vector<8x128xf32>
    %270 = arith.divf %268, %269 : vector<8x128xf32>
    %271 = arith.mulf %262, %237 : vector<8x128xf32>
    %272 = arith.mulf %256, %264 : vector<8x128xf32>
    %273 = arith.addf %271, %272 : vector<8x128xf32>
    %274 = math.tanh %273 : vector<8x128xf32>
    %275 = arith.mulf %270, %274 : vector<8x128xf32>
    %276 = arith.index_cast %c2_i32_96 : i32 to index
    %c0_105 = arith.constant 0 : index
    %c0_106 = arith.constant 0 : index
    %277 = vector.load %arg12[%276, %c0_105, %c0_106] : memref<4x8x128xf32, #tpu.memory_space<vmem>>, vector<1x8x128xf32>
    %278 = vector.shape_cast %277 : vector<1x8x128xf32> to vector<8x128xf32>
    %279 = vector.shape_cast %275 : vector<8x128xf32> to vector<1x8x128xf32>
    tpu.vector_store %arg12[%276, %c0_105, %c0_106], %279 {strides = array<i32>} : memref<4x8x128xf32, #tpu.memory_space<vmem>>, vector<1x8x128xf32>,
    %c3_i32_107 = arith.constant 3 : i32
    %280 = arith.index_cast %c3_i32_107 : i32 to index
    %c0_108 = arith.constant 0 : index
    %c0_109 = arith.constant 0 : index
    %281 = vector.load %arg11[%280, %c0_108, %c0_109] : memref<4x8x512xf32, #tpu.memory_space<vmem>>, vector<1x8x512xf32>
    %282 = vector.shape_cast %281 : vector<1x8x512xf32> to vector<8x512xf32>
    %283 = arith.truncf %275 : vector<8x128xf32> to vector<8x128xbf16>
    %c0_110 = arith.constant 0 : index
    %c0_111 = arith.constant 0 : index
    %284 = vector.load %arg6[%c0_110, %c0_111] : memref<128x512xbf16, #tpu.memory_space<vmem>>, vector<128x512xbf16>
    %cst_112 = arith.constant dense<0.000000e+00> : vector<8x512xf32>
    %285 = tpu.matmul %283, %284, %cst_112 {dimension_numbers = #tpu.dot_dimension_numbers<[1], [0], [0], [1], [0, 0, 1, 1], [], []>} : vector<8x128xbf16>, vector<128x512xbf16>, vector<8x512xf32> -> vector<8x512xf32>
    %286 = arith.addf %282, %285 : vector<8x512xf32>
    %287 = vector.extract_strided_slice %286 {offsets = [0, 0], sizes = [8, 128], strides = [1, 1]} : vector<8x512xf32> to vector<8x128xf32>
    %288 = arith.negf %287 : vector<8x128xf32>
    %289 = math.exp %288 : vector<8x128xf32>
    %cst_113 = arith.constant 1.000000e+00 : f32
    %290 = vector.broadcast %cst_113 : f32 to vector<8x128xf32>
    %291 = arith.addf %290, %289 : vector<8x128xf32>
    %292 = arith.divf %290, %291 : vector<8x128xf32>
    %293 = vector.extract_strided_slice %286 {offsets = [0, 128], sizes = [8, 128], strides = [1, 1]} : vector<8x512xf32> to vector<8x128xf32>
    %294 = arith.negf %293 : vector<8x128xf32>
    %295 = math.exp %294 : vector<8x128xf32>
    %cst_114 = arith.constant 1.000000e+00 : f32
    %296 = vector.broadcast %cst_114 : f32 to vector<8x128xf32>
    %297 = arith.addf %296, %295 : vector<8x128xf32>
    %298 = arith.divf %296, %297 : vector<8x128xf32>
    %299 = vector.extract_strided_slice %286 {offsets = [0, 256], sizes = [8, 128], strides = [1, 1]} : vector<8x512xf32> to vector<8x128xf32>
    %300 = math.tanh %299 : vector<8x128xf32>
    %301 = vector.extract_strided_slice %286 {offsets = [0, 384], sizes = [8, 128], strides = [1, 1]} : vector<8x512xf32> to vector<8x128xf32>
    %302 = arith.negf %301 : vector<8x128xf32>
    %303 = math.exp %302 : vector<8x128xf32>
    %cst_115 = arith.constant 1.000000e+00 : f32
    %304 = vector.broadcast %cst_115 : f32 to vector<8x128xf32>
    %305 = arith.addf %304, %303 : vector<8x128xf32>
    %306 = arith.divf %304, %305 : vector<8x128xf32>
    %307 = arith.mulf %298, %273 : vector<8x128xf32>
    %308 = arith.mulf %292, %300 : vector<8x128xf32>
    %309 = arith.addf %307, %308 : vector<8x128xf32>
    %310 = math.tanh %309 : vector<8x128xf32>
    %311 = arith.mulf %306, %310 : vector<8x128xf32>
    %312 = arith.index_cast %c3_i32_107 : i32 to index
    %c0_116 = arith.constant 0 : index
    %c0_117 = arith.constant 0 : index
    %313 = vector.load %arg12[%312, %c0_116, %c0_117] : memref<4x8x128xf32, #tpu.memory_space<vmem>>, vector<1x8x128xf32>
    %314 = vector.shape_cast %313 : vector<1x8x128xf32> to vector<8x128xf32>
    %315 = vector.shape_cast %311 : vector<8x128xf32> to vector<1x8x128xf32>
    tpu.vector_store %arg12[%312, %c0_116, %c0_117], %315 {strides = array<i32>} : memref<4x8x128xf32, #tpu.memory_space<vmem>>, vector<1x8x128xf32>,
    %c4_i32_118 = arith.constant 4 : i32
    %c0_119 = arith.constant 0 : index
    %c0_120 = arith.constant 0 : index
    %316 = vector.load %arg15[%c0_119, %c0_120] : memref<8x128xf32, #tpu.memory_space<vmem>>, vector<8x128xf32>
    tpu.vector_store %arg15[%c0_119, %c0_120], %311 {strides = array<i32>} : memref<8x128xf32, #tpu.memory_space<vmem>>, vector<8x128xf32>,
    %c0_121 = arith.constant 0 : index
    %c0_122 = arith.constant 0 : index
    %317 = vector.load %arg16[%c0_121, %c0_122] : memref<8x128xf32, #tpu.memory_space<vmem>>, vector<8x128xf32>
    tpu.vector_store %arg16[%c0_121, %c0_122], %309 {strides = array<i32>} : memref<8x128xf32, #tpu.memory_space<vmem>>, vector<8x128xf32>,
    %c0_123 = arith.constant 0 : index
    %c0_124 = arith.constant 0 : index
    %c0_125 = arith.constant 0 : index
    %318 = vector.load %arg12[%c0_123, %c0_124, %c0_125] : memref<4x8x128xf32, #tpu.memory_space<vmem>>, vector<4x8x128xf32>
    %319 = vector.shape_cast %318 : vector<4x8x128xf32> to vector<32x128xf32>
    %320 = arith.truncf %319 : vector<32x128xf32> to vector<32x128xbf16>
    %c0_126 = arith.constant 0 : index
    %c0_127 = arith.constant 0 : index
    %321 = vector.load %arg8[%c0_126, %c0_127] : memref<128x128xbf16, #tpu.memory_space<vmem>>, vector<128x128xbf16>
    %cst_128 = arith.constant dense<0.000000e+00> : vector<32x128xf32>
    %322 = tpu.matmul %320, %321, %cst_128 {dimension_numbers = #tpu.dot_dimension_numbers<[1], [0], [0], [1], [0, 0, 1, 1], [], []>} : vector<32x128xbf16>, vector<128x128xbf16>, vector<32x128xf32> -> vector<32x128xf32>
    %c0_129 = arith.constant 0 : index
    %c0_130 = arith.constant 0 : index
    %323 = vector.load %arg9[%c0_129, %c0_130] : memref<1x128xf32, #tpu.memory_space<vmem>>, vector<1x128xf32>
    %324 = vector.broadcast %323 : vector<1x128xf32> to vector<32x128xf32>
    %325 = arith.addf %322, %324 : vector<32x128xf32>
    %326 = vector.shape_cast %325 : vector<32x128xf32> to vector<4x8x128xf32>
    %c0_131 = arith.constant 0 : index
    %c0_132 = arith.constant 0 : index
    %c0_133 = arith.constant 0 : index
    %327 = vector.load %arg10[%c0_131, %c0_132, %c0_133] : memref<4x8x128xf32, #tpu.memory_space<vmem>>, vector<4x8x128xf32>
    tpu.vector_store %arg10[%c0_131, %c0_132, %c0_133], %326 {strides = array<i32>} : memref<4x8x128xf32, #tpu.memory_space<vmem>>, vector<4x8x128xf32>,
    return
  }
  func.func @transform_0(%arg0: i32) -> (i32, i32, i32) {
    %c0_i32 = arith.constant 0 : i32
    %c0_i32_0 = arith.constant 0 : i32
    %c0_i32_1 = arith.constant 0 : i32
    return %arg0, %c0_i32, %c0_i32_0 : i32, i32, i32
  }
  func.func @transform_1(%arg0: i32) -> (i32, i32) {
    %c0_i32 = arith.constant 0 : i32
    %c0_i32_0 = arith.constant 0 : i32
    %c0_i32_1 = arith.constant 0 : i32
    return %c0_i32, %c0_i32_0 : i32, i32
  }
  func.func @transform_2(%arg0: i32) -> (i32, i32) {
    %c0_i32 = arith.constant 0 : i32
    %c0_i32_0 = arith.constant 0 : i32
    %c0_i32_1 = arith.constant 0 : i32
    return %c0_i32, %c0_i32_0 : i32, i32
  }
  func.func @transform_3(%arg0: i32) -> (i32, i32) {
    %c0_i32 = arith.constant 0 : i32
    %c0_i32_0 = arith.constant 0 : i32
    %c0_i32_1 = arith.constant 0 : i32
    return %c0_i32, %c0_i32_0 : i32, i32
  }
  func.func @transform_4(%arg0: i32) -> (i32, i32) {
    %c0_i32 = arith.constant 0 : i32
    %c0_i32_0 = arith.constant 0 : i32
    %c0_i32_1 = arith.constant 0 : i32
    return %c0_i32, %c0_i32_0 : i32, i32
  }
  func.func @transform_5(%arg0: i32) -> (i32, i32) {
    %c0_i32 = arith.constant 0 : i32
    %c0_i32_0 = arith.constant 0 : i32
    %c0_i32_1 = arith.constant 0 : i32
    return %c0_i32, %c0_i32_0 : i32, i32
  }
  func.func @transform_6(%arg0: i32) -> (i32, i32) {
    %c0_i32 = arith.constant 0 : i32
    %c0_i32_0 = arith.constant 0 : i32
    %c0_i32_1 = arith.constant 0 : i32
    return %c0_i32, %c0_i32_0 : i32, i32
  }
  func.func @transform_7(%arg0: i32) -> (i32, i32) {
    %c0_i32 = arith.constant 0 : i32
    %c0_i32_0 = arith.constant 0 : i32
    %c0_i32_1 = arith.constant 0 : i32
    return %c0_i32, %c0_i32_0 : i32, i32
  }
  func.func @transform_8(%arg0: i32) -> (i32, i32) {
    %c0_i32 = arith.constant 0 : i32
    %c0_i32_0 = arith.constant 0 : i32
    %c0_i32_1 = arith.constant 0 : i32
    return %c0_i32, %c0_i32_0 : i32, i32
  }
  func.func @transform_9(%arg0: i32) -> (i32, i32, i32) {
    %c0_i32 = arith.constant 0 : i32
    %c0_i32_0 = arith.constant 0 : i32
    %c0_i32_1 = arith.constant 0 : i32
    return %arg0, %c0_i32, %c0_i32_0 : i32, i32, i32
  }
}

</mosaic_0001>

<llo_original>
// kernel: tpu_custom_call.1
$region0: #{tpu_custom_call.1}
  #allocation0 [shape = 'u32[]', space=smem, size = 0x4, offset = 0x4, fixed_abs, tag = 'smem constant byte address 0x4 - core index']
  #allocation1 [shape = 'u32[144,128]{1,0:T(1,128)}', space=vmem, size = 0x12000, scoped, tag = 'internal scratch']
  #allocation2 [shape = 'f32[4,8,512]{2,1,0:T(8,128)}', space=vmem, size = 0x10000, scoped, tag = 'scratch operand']
  #allocation3 [shape = 'f32[4,8,128]{2,1,0:T(8,128)}', space=vmem, size = 0x4000, scoped, tag = 'scratch operand']
  #allocation4 [shape = 'f32[8,128]{1,0:T(8,128)}', space=vmem, size = 0x1000, scoped, tag = 'scratch operand']
  #allocation5 [shape = 'f32[8,128]{1,0:T(8,128)}', space=vmem, size = 0x1000, scoped, tag = 'scratch operand']
  #allocation6 [shape = 'f32[8,128]{1,0:T(8,128)}', space=vmem, size = 0x1000, scoped, tag = 'scratch operand']
  #allocation7 [shape = 'f32[8,128]{1,0:T(8,128)}', space=vmem, size = 0x1000, scoped, tag = 'scratch operand']
  %s0 = inlined_call_operand.hbm [shape: bf16[8,8,128], index: 0, kind: input, shape index: {}]
  %s1 = inlined_call_operand.hbm [shape: bf16[128,512], index: 1, kind: input, shape index: {}]
  %s2 = inlined_call_operand.hbm [shape: bf16[128,512], index: 2, kind: input, shape index: {}]
  %s3 = inlined_call_operand.vmem [shape: f32[1,512], index: 3, kind: input, shape index: {}]
  %s4 = inlined_call_operand.hbm [shape: bf16[128,512], index: 4, kind: input, shape index: {}]
  %s5 = inlined_call_operand.hbm [shape: bf16[128,512], index: 5, kind: input, shape index: {}]
  %s6 = inlined_call_operand.vmem [shape: f32[1,512], index: 6, kind: input, shape index: {}]
  %s7 = inlined_call_operand.hbm [shape: bf16[128,128], index: 7, kind: input, shape index: {}]
  %s8 = inlined_call_operand.vmem [shape: f32[1,128], index: 8, kind: input, shape index: {}]
  %s9 = inlined_call_operand.hbm [shape: f32[8,8,128], index: 9, kind: output, shape index: {}]
  %s10 = sld [smem:[#allocation0]]
  $region97: #{tpu_custom_call.1} parent=0
    _
  %s12 = ssub.s32 1, %s10
  %s13 = scalar_select 0, %s12, %s10
  $region1: #{tpu_custom_call.1} parent=0
    #allocation8 [shape = 'u8[16384]{0}', space=vmem, size = 0x4000, scoped, tag = 'input window, operand 0']
    #allocation9 [shape = 's32[2]{0}', space=sflag, size = 0x8, scoped, tag = 'scoped memory for tpu_custom_call.1']
    #allocation10 [shape = 's32[2]{0}', space=sflag, size = 0x8, scoped, tag = 'scoped memory for tpu_custom_call.1']
    #allocation11 [shape = 'u8[131072]{0}', space=vmem, size = 0x20000, scoped, tag = 'input window, operand 1, single buffered']
    #allocation12 [shape = 's32[1]{0}', space=sflag, size = 0x4, scoped, tag = 'scoped memory for tpu_custom_call.1']
    #allocation13 [shape = 'u8[131072]{0}', space=vmem, size = 0x20000, scoped, tag = 'input window, operand 2, single buffered']
    #allocation14 [shape = 'u8[131072]{0}', space=vmem, size = 0x20000, scoped, tag = 'input window, operand 4, single buffered']
    #allocation15 [shape = 's32[1]{0}', space=sflag, size = 0x4, scoped, tag = 'scoped memory for tpu_custom_call.1']
    #allocation16 [shape = 'u8[131072]{0}', space=vmem, size = 0x20000, scoped, tag = 'input window, operand 5, single buffered']
    #allocation17 [shape = 'u8[32768]{0}', space=vmem, size = 0x8000, scoped, tag = 'input window, operand 7, single buffered']
    #allocation18 [shape = 's32[1]{0}', space=sflag, size = 0x4, scoped, tag = 'scoped memory for tpu_custom_call.1']
    #allocation19 [shape = 'u8[32768]{0}', space=vmem, size = 0x8000, scoped, tag = 'output window, operand 0']
    %14 = vsyncpa [#allocation9], 0
    %s15 = scalar_lea.sflag [#allocation9], 1
    %16 = vsyncpa %s15, 0
    %17 = vsyncpa [#allocation12], 0
    %18 = vsyncpa [#allocation15], 0
    %19 = vsyncpa [#allocation18], 0
    %20 = vsyncpa [#allocation10], 0
    %s21 = scalar_lea.sflag [#allocation10], 1
    %22 = vsyncpa %s21, 0
    loop: start=0, step=1, limit=4
    $region2: #{tpu_custom_call.1} parent=1 // loop_pre_header
      _
    $region3: #{tpu_custom_call.1} parent=1 // loop_header
      %s24 = sphi 0, %s28
      %p25 = scmp.ge.s32.totalorder %s24, 4
      %s34 = sphi 0, %s36
      %s37 = sphi 0, %s34
      %s38 = sphi 0, %s37
      %s54 = sphi 0, %s38
      %s58 = sphi 0, %s58
      %s60 = sphi 0, %s58
      %s61 = sphi 0, %s60
      %s75 = sphi 0, %s61
      %s79 = sphi 0, %s79
      %s81 = sphi 0, %s79
      %s82 = sphi 0, %s81
      %s96 = sphi 0, %s82
      %s100 = sphi 0, %s100
      %s102 = sphi 0, %s100
      %s103 = sphi 0, %s102
      %s117 = sphi 0, %s103
      %s121 = sphi 0, %s121
      %s123 = sphi 0, %s121
      %s124 = sphi 0, %s123
      %s138 = sphi 0, %s124
      %s142 = sphi 0, %s142
      %s144 = sphi 0, %s142
      %s145 = sphi 0, %s144
      %s159 = sphi 0, %s145
      %s163 = sphi 0, %s163
      %s165 = sphi 0, %s163
      %s166 = sphi 0, %s165
      %s180 = sphi 0, %s166
      %s184 = sphi 0, %s184
      %s186 = sphi 0, %s184
      %s187 = sphi 0, %s186
      %s201 = sphi 0, %s187
      %s205 = sphi 0, %s205
      %s207 = sphi 0, %s205
      %s208 = sphi 0, %s207
      %s222 = sphi 0, %s208
      %s228 = sphi 0, %s230
      %s231 = sphi 0, %s228
      %s232 = sphi 0, %s231
      %s248 = sphi 0, %s232
    $region4: #{tpu_custom_call.1} parent=1 // loop_header_branch
      %27 = sbr.rel (%p25) target = $region8
    $region5: #{tpu_custom_call.1} parent=1 // loop_body
      %s29 = ssub.s32 %s24, 1
      %s30 = ssub.s32 %s24, 2
      %s31 = sadd.s32 %s24, 1
      %s32 = ssub.s32 %s24, %s31
      %p33 = scmp.eq.s32.totalorder %s32, 0
      %s35 = sadd.s32 %s34, 1
      %s36 = scalar_select %p33, %s34, %s35
      %p39 = pneg %p33
      %p40 = scmp.eq.s32.totalorder %s24, 1
      %p41 = por %p39, %p40
      %p42 = scmp.ne.s32.totalorder %s34, %s37
      %p43 = scmp.eq.s32.totalorder %s24, 0
      %p44 = por %p42, %p43
      %p45 = scmp.ne.s32.totalorder %s34, %s37
      %p46 = scmp.eq.s32.totalorder %s29, 1
      %p47 = por %p45, %p46
      %p48 = scmp.ne.s32.totalorder %s37, %s38
      %p49 = scmp.eq.s32.totalorder %s29, 0
      %p50 = por %p48, %p49
      %p51 = scmp.ne.s32.totalorder %s37, %s38
      %p52 = scmp.eq.s32.totalorder %s30, 1
      %p53 = por %p51, %p52
      %p55 = scmp.ne.s32.totalorder %s38, %s54
      %p56 = scmp.eq.s32.totalorder %s30, 0
      %p57 = por %p55, %p56
      %s59 = sadd.s32 %s58, 1
      %p62 = scmp.eq.s32.totalorder %s24, 1
      %p63 = scmp.ne.s32.totalorder %s58, %s60
      %p64 = scmp.eq.s32.totalorder %s24, 0
      %p65 = por %p63, %p64
      %p66 = scmp.ne.s32.totalorder %s58, %s60
      %p67 = scmp.eq.s32.totalorder %s29, 1
      %p68 = por %p66, %p67
      %p69 = scmp.ne.s32.totalorder %s60, %s61
      %p70 = scmp.eq.s32.totalorder %s29, 0
      %p71 = por %p69, %p70
      %p72 = scmp.ne.s32.totalorder %s60, %s61
      %p73 = scmp.eq.s32.totalorder %s30, 1
      %p74 = por %p72, %p73
      %p76 = scmp.ne.s32.totalorder %s61, %s75
      %p77 = scmp.eq.s32.totalorder %s30, 0
      %p78 = por %p76, %p77
      %s80 = sadd.s32 %s79, 1
      %p83 = scmp.eq.s32.totalorder %s24, 1
      %p84 = scmp.ne.s32.totalorder %s79, %s81
      %p85 = scmp.eq.s32.totalorder %s24, 0
      %p86 = por %p84, %p85
      %p87 = scmp.ne.s32.totalorder %s79, %s81
      %p88 = scmp.eq.s32.totalorder %s29, 1
      %p89 = por %p87, %p88
      %p90 = scmp.ne.s32.totalorder %s81, %s82
      %p91 = scmp.eq.s32.totalorder %s29, 0
      %p92 = por %p90, %p91
      %p93 = scmp.ne.s32.totalorder %s81, %s82
      %p94 = scmp.eq.s32.totalorder %s30, 1
      %p95 = por %p93, %p94
      %p97 = scmp.ne.s32.totalorder %s82, %s96
      %p98 = scmp.eq.s32.totalorder %s30, 0
      %p99 = por %p97, %p98
      %s101 = sadd.s32 %s100, 1
      %p104 = scmp.eq.s32.totalorder %s24, 1
      %p105 = scmp.ne.s32.totalorder %s100, %s102
      %p106 = scmp.eq.s32.totalorder %s24, 0
      %p107 = por %p105, %p106
      %p108 = scmp.ne.s32.totalorder %s100, %s102
      %p109 = scmp.eq.s32.totalorder %s29, 1
      %p110 = por %p108, %p109
      %p111 = scmp.ne.s32.totalorder %s102, %s103
      %p112 = scmp.eq.s32.totalorder %s29, 0
      %p113 = por %p111, %p112
      %p114 = scmp.ne.s32.totalorder %s102, %s103
      %p115 = scmp.eq.s32.totalorder %s30, 1
      %p116 = por %p114, %p115
      %p118 = scmp.ne.s32.totalorder %s103, %s117
      %p119 = scmp.eq.s32.totalorder %s30, 0
      %p120 = por %p118, %p119
      %s122 = sadd.s32 %s121, 1
      %p125 = scmp.eq.s32.totalorder %s24, 1
      %p126 = scmp.ne.s32.totalorder %s121, %s123
      %p127 = scmp.eq.s32.totalorder %s24, 0
      %p128 = por %p126, %p127
      %p129 = scmp.ne.s32.totalorder %s121, %s123
      %p130 = scmp.eq.s32.totalorder %s29, 1
      %p131 = por %p129, %p130
      %p132 = scmp.ne.s32.totalorder %s123, %s124
      %p133 = scmp.eq.s32.totalorder %s29, 0
      %p134 = por %p132, %p133
      %p135 = scmp.ne.s32.totalorder %s123, %s124
      %p136 = scmp.eq.s32.totalorder %s30, 1
      %p137 = por %p135, %p136
      %p139 = scmp.ne.s32.totalorder %s124, %s138
      %p140 = scmp.eq.s32.totalorder %s30, 0
      %p141 = por %p139, %p140
      %s143 = sadd.s32 %s142, 1
      %p146 = scmp.eq.s32.totalorder %s24, 1
      %p147 = scmp.ne.s32.totalorder %s142, %s144
      %p148 = scmp.eq.s32.totalorder %s24, 0
      %p149 = por %p147, %p148
      %p150 = scmp.ne.s32.totalorder %s142, %s144
      %p151 = scmp.eq.s32.totalorder %s29, 1
      %p152 = por %p150, %p151
      %p153 = scmp.ne.s32.totalorder %s144, %s145
      %p154 = scmp.eq.s32.totalorder %s29, 0
      %p155 = por %p153, %p154
      %p156 = scmp.ne.s32.totalorder %s144, %s145
      %p157 = scmp.eq.s32.totalorder %s30, 1
      %p158 = por %p156, %p157
      %p160 = scmp.ne.s32.totalorder %s145, %s159
      %p161 = scmp.eq.s32.totalorder %s30, 0
      %p162 = por %p160, %p161
      %s164 = sadd.s32 %s163, 1
      %p167 = scmp.eq.s32.totalorder %s24, 1
      %p168 = scmp.ne.s32.totalorder %s163, %s165
      %p169 = scmp.eq.s32.totalorder %s24, 0
      %p170 = por %p168, %p169
      %p171 = scmp.ne.s32.totalorder %s163, %s165
      %p172 = scmp.eq.s32.totalorder %s29, 1
      %p173 = por %p171, %p172
      %p174 = scmp.ne.s32.totalorder %s165, %s166
      %p175 = scmp.eq.s32.totalorder %s29, 0
      %p176 = por %p174, %p175
      %p177 = scmp.ne.s32.totalorder %s165, %s166
      %p178 = scmp.eq.s32.totalorder %s30, 1
      %p179 = por %p177, %p178
      %p181 = scmp.ne.s32.totalorder %s166, %s180
      %p182 = scmp.eq.s32.totalorder %s30, 0
      %p183 = por %p181, %p182
      %s185 = sadd.s32 %s184, 1
      %p188 = scmp.eq.s32.totalorder %s24, 1
      %p189 = scmp.ne.s32.totalorder %s184, %s186
      %p190 = scmp.eq.s32.totalorder %s24, 0
      %p191 = por %p189, %p190
      %p192 = scmp.ne.s32.totalorder %s184, %s186
      %p193 = scmp.eq.s32.totalorder %s29, 1
      %p194 = por %p192, %p193
      %p195 = scmp.ne.s32.totalorder %s186, %s187
      %p196 = scmp.eq.s32.totalorder %s29, 0
      %p197 = por %p195, %p196
      %p198 = scmp.ne.s32.totalorder %s186, %s187
      %p199 = scmp.eq.s32.totalorder %s30, 1
      %p200 = por %p198, %p199
      %p202 = scmp.ne.s32.totalorder %s187, %s201
      %p203 = scmp.eq.s32.totalorder %s30, 0
      %p204 = por %p202, %p203
      %s206 = sadd.s32 %s205, 1
      %p209 = scmp.eq.s32.totalorder %s24, 1
      %p210 = scmp.ne.s32.totalorder %s205, %s207
      %p211 = scmp.eq.s32.totalorder %s24, 0
      %p212 = por %p210, %p211
      %p213 = scmp.ne.s32.totalorder %s205, %s207
      %p214 = scmp.eq.s32.totalorder %s29, 1
      %p215 = por %p213, %p214
      %p216 = scmp.ne.s32.totalorder %s207, %s208
      %p217 = scmp.eq.s32.totalorder %s29, 0
      %p218 = por %p216, %p217
      %p219 = scmp.ne.s32.totalorder %s207, %s208
      %p220 = scmp.eq.s32.totalorder %s30, 1
      %p221 = por %p219, %p220
      %p223 = scmp.ne.s32.totalorder %s208, %s222
      %p224 = scmp.eq.s32.totalorder %s30, 0
      %p225 = por %p223, %p224
      %s226 = ssub.s32 %s24, %s31
      %p227 = scmp.eq.s32.totalorder %s226, 0
      %s229 = sadd.s32 %s228, 1
      %s230 = scalar_select %p227, %s228, %s229
      %p233 = pneg %p227
      %p234 = scmp.eq.s32.totalorder %s24, 1
      %p235 = por %p233, %p234
      %p236 = scmp.ne.s32.totalorder %s228, %s231
      %p237 = scmp.eq.s32.totalorder %s24, 0
      %p238 = por %p236, %p237
      %p239 = scmp.ne.s32.totalorder %s228, %s231
      %p240 = scmp.eq.s32.totalorder %s29, 1
      %p241 = por %p239, %p240
      %p242 = scmp.ne.s32.totalorder %s231, %s232
      %p243 = scmp.eq.s32.totalorder %s29, 0
      %p244 = por %p242, %p243
      %p245 = scmp.ne.s32.totalorder %s231, %s232
      %p246 = scmp.eq.s32.totalorder %s30, 1
      %p247 = por %p245, %p246
      %p249 = scmp.ne.s32.totalorder %s232, %s248
      %p250 = scmp.eq.s32.totalorder %s30, 0
      %p251 = por %p249, %p250
      %p252 = scmp.le.s32.totalorder 1, %s24
      %p253 = scmp.lt.s32.totalorder %s24, 3
      %p254 = pnand %p252, %p253
      %p255 = pneg %p254
      // Predicated region
      $region9: #{tpu_custom_call.1} parent=5 // pred_check
        _
      $region10: #{tpu_custom_call.1} parent=5 // pred_check_branch
        %257 = sbr.rel (%p254) target = $region12
      $region11: #{tpu_custom_call.1} parent=5 // pred_region
        %s258 = ssub.s32 %s24, 1
        // Predicated region
        $region13: #{tpu_custom_call.1} parent=11 // pred_check
          %p259 = pneg %p71
        $region14: #{tpu_custom_call.1} parent=11 // pred_check_branch
          %261 = sbr.rel (%p259) target = $region16
        $region15: #{tpu_custom_call.1} parent=11 // pred_region
          %s263 = ssub.s32 4096, 4096
          %264 = vsyncadd [#allocation12], %s263
          %s265 = sshll.u32 [#allocation11], 4
          %s266 = int_to_ptr.vmem [resolvable:$true] %s265
          %271 = dma.hbm_to_vmem [thread:$0]  %s1, 4096, %s266, [#allocation12], 256, 256, 16
        $region16: #{tpu_custom_call.1} parent=11 // pred_fallthru
          _
        // Predicated region
        $region17: #{tpu_custom_call.1} parent=11 // pred_check
          %p272 = pneg %p92
        $region18: #{tpu_custom_call.1} parent=11 // pred_check_branch
          %274 = sbr.rel (%p272) target = $region20
        $region19: #{tpu_custom_call.1} parent=11 // pred_region
          %s276 = ssub.s32 4096, 4096
          %277 = vsyncadd [#allocation12], %s276
          %s278 = sshll.u32 [#allocation13], 4
          %s279 = int_to_ptr.vmem [resolvable:$true] %s278
          %284 = dma.hbm_to_vmem [thread:$0]  %s2, 4096, %s279, [#allocation12], 256, 256, 16
        $region20: #{tpu_custom_call.1} parent=11 // pred_fallthru
          _
        // Predicated region
        $region21: #{tpu_custom_call.1} parent=11 // pred_check
          %p285 = pneg %p113
        $region22: #{tpu_custom_call.1} parent=11 // pred_check_branch
          %287 = sbr.rel (%p285) target = $region24
        $region23: #{tpu_custom_call.1} parent=11 // pred_region
          _
        $region24: #{tpu_custom_call.1} parent=11 // pred_fallthru
          _
        // Predicated region
        $region25: #{tpu_custom_call.1} parent=11 // pred_check
          %p288 = pneg %p134
        $region26: #{tpu_custom_call.1} parent=11 // pred_check_branch
          %290 = sbr.rel (%p288) target = $region28
        $region27: #{tpu_custom_call.1} parent=11 // pred_region
          %s292 = ssub.s32 4096, 4096
          %293 = vsyncadd [#allocation15], %s292
          %s294 = sshll.u32 [#allocation14], 4
          %s295 = int_to_ptr.vmem [resolvable:$true] %s294
          %300 = dma.hbm_to_vmem [thread:$0]  %s4, 4096, %s295, [#allocation15], 256, 256, 16
        $region28: #{tpu_custom_call.1} parent=11 // pred_fallthru
          _
        // Predicated region
        $region29: #{tpu_custom_call.1} parent=11 // pred_check
          %p301 = pneg %p155
        $region30: #{tpu_custom_call.1} parent=11 // pred_check_branch
          %303 = sbr.rel (%p301) target = $region32
        $region31: #{tpu_custom_call.1} parent=11 // pred_region
          %s305 = ssub.s32 4096, 4096
          %306 = vsyncadd [#allocation15], %s305
          %s307 = sshll.u32 [#allocation16], 4
          %s308 = int_to_ptr.vmem [resolvable:$true] %s307
          %313 = dma.hbm_to_vmem [thread:$0]  %s5, 4096, %s308, [#allocation15], 256, 256, 16
        $region32: #{tpu_custom_call.1} parent=11 // pred_fallthru
          _
        // Predicated region
        $region33: #{tpu_custom_call.1} parent=11 // pred_check
          %p314 = pneg %p176
        $region34: #{tpu_custom_call.1} parent=11 // pred_check_branch
          %316 = sbr.rel (%p314) target = $region36
        $region35: #{tpu_custom_call.1} parent=11 // pred_region
          _
        $region36: #{tpu_custom_call.1} parent=11 // pred_fallthru
          _
        // Predicated region
        $region37: #{tpu_custom_call.1} parent=11 // pred_check
          %p317 = pneg %p197
        $region38: #{tpu_custom_call.1} parent=11 // pred_check_branch
          %319 = sbr.rel (%p317) target = $region40
        $region39: #{tpu_custom_call.1} parent=11 // pred_region
          %s321 = ssub.s32 1024, 1024
          %322 = vsyncadd [#allocation18], %s321
          %s323 = sshll.u32 [#allocation17], 4
          %s324 = int_to_ptr.vmem [resolvable:$true] %s323
          %329 = dma.hbm_to_vmem [thread:$0]  %s7, 1024, %s324, [#allocation18], 64, 64, 4
        $region40: #{tpu_custom_call.1} parent=11 // pred_fallthru
          _
        // Predicated region
        $region41: #{tpu_custom_call.1} parent=11 // pred_check
          %p330 = pneg %p218
        $region42: #{tpu_custom_call.1} parent=11 // pred_check_branch
          %332 = sbr.rel (%p330) target = $region44
        $region43: #{tpu_custom_call.1} parent=11 // pred_region
          _
        $region44: #{tpu_custom_call.1} parent=11 // pred_fallthru
          _
      $region12: #{tpu_custom_call.1} parent=5 // pred_fallthru
        _
      %p333 = scmp.lt.s32.totalorder %s24, 2
      // Predicated region
      $region45: #{tpu_custom_call.1} parent=5 // pred_check
        %p334 = pneg %p333
      $region46: #{tpu_custom_call.1} parent=5 // pred_check_branch
        %336 = sbr.rel (%p334) target = $region48
      $region47: #{tpu_custom_call.1} parent=5 // pred_region
        // Predicated region
        $region49: #{tpu_custom_call.1} parent=47 // pred_check
          %p337 = pneg %p44
        $region50: #{tpu_custom_call.1} parent=47 // pred_check_branch
          %339 = sbr.rel (%p337) target = $region52
        $region51: #{tpu_custom_call.1} parent=47 // pred_region
          %s340 = sand.u32 %s34, 1
          %s341 = scalar_lea.sflag [#allocation9], %s340
          %s342 = sand.u32 %s34, 1
          %s343 = smul.addr %s342, 16
          %s344 = scalar_lea.vmem [#allocation8], %s343
          %s345 = smul.u32 4, %s24
          %s347 = ssub.s32 256, 256
          %348 = vsyncadd %s341, %s347
          %s349 = smul.addr %s345, 64
          %s350 = scalar_lea.hbm %s0, %s349
          %s351 = sshll.u32 %s344, 4
          %s352 = int_to_ptr.vmem [resolvable:$true] %s351
          %357 = dma.hbm_to_vmem [thread:$0]  %s350, 256, %s352, %s341, 64, 64, 4
        $region52: #{tpu_custom_call.1} parent=47 // pred_fallthru
          _
      $region48: #{tpu_custom_call.1} parent=5 // pred_fallthru
        _
      %p358 = scmp.le.s32.totalorder 1, %s24
      %p359 = scmp.lt.s32.totalorder %s24, 3
      %p360 = pnand %p358, %p359
      %p361 = pneg %p360
      // Predicated region
      $region53: #{tpu_custom_call.1} parent=5 // pred_check
        _
      $region54: #{tpu_custom_call.1} parent=5 // pred_check_branch
        %363 = sbr.rel (%p360) target = $region56
      $region55: #{tpu_custom_call.1} parent=5 // pred_region
        %s364 = ssub.s32 %s24, 1
        %s365 = sand.u32 %s37, 1
        %s366 = scalar_lea.sflag [#allocation9], %s365
        %s367 = sand.u32 %s37, 1
        %s368 = smul.addr %s367, 16
        %s369 = scalar_lea.vmem [#allocation8], %s368
        // Predicated region
        $region57: #{tpu_custom_call.1} parent=55 // pred_check
          %p370 = pneg %p50
        $region58: #{tpu_custom_call.1} parent=55 // pred_check_branch
          %372 = sbr.rel (%p370) target = $region60
        $region59: #{tpu_custom_call.1} parent=55 // pred_region
          %373 = dma.done %s366, 256
        $region60: #{tpu_custom_call.1} parent=55 // pred_fallthru
          _
        // Predicated region
        $region61: #{tpu_custom_call.1} parent=55 // pred_check
          %p374 = pneg %p71
        $region62: #{tpu_custom_call.1} parent=55 // pred_check_branch
          %376 = sbr.rel (%p374) target = $region64
        $region63: #{tpu_custom_call.1} parent=55 // pred_region
          %377 = dma.done [#allocation12], 4096
        $region64: #{tpu_custom_call.1} parent=55 // pred_fallthru
          _
        // Predicated region
        $region65: #{tpu_custom_call.1} parent=55 // pred_check
          %p378 = pneg %p92
        $region66: #{tpu_custom_call.1} parent=55 // pred_check_branch
          %380 = sbr.rel (%p378) target = $region68
        $region67: #{tpu_custom_call.1} parent=55 // pred_region
          %381 = dma.done [#allocation12], 4096
        $region68: #{tpu_custom_call.1} parent=55 // pred_fallthru
          _
        // Predicated region
        $region69: #{tpu_custom_call.1} parent=55 // pred_check
          %p382 = pneg %p134
        $region70: #{tpu_custom_call.1} parent=55 // pred_check_branch
          %384 = sbr.rel (%p382) target = $region72
        $region71: #{tpu_custom_call.1} parent=55 // pred_region
          %385 = dma.done [#allocation15], 4096
        $region72: #{tpu_custom_call.1} parent=55 // pred_fallthru
          _
        // Predicated region
        $region73: #{tpu_custom_call.1} parent=55 // pred_check
          %p386 = pneg %p155
        $region74: #{tpu_custom_call.1} parent=55 // pred_check_branch
          %388 = sbr.rel (%p386) target = $region76
        $region75: #{tpu_custom_call.1} parent=55 // pred_region
          %389 = dma.done [#allocation15], 4096
        $region76: #{tpu_custom_call.1} parent=55 // pred_fallthru
          _
        // Predicated region
        $region77: #{tpu_custom_call.1} parent=55 // pred_check
          %p390 = pneg %p197
        $region78: #{tpu_custom_call.1} parent=55 // pred_check_branch
          %392 = sbr.rel (%p390) target = $region80
        $region79: #{tpu_custom_call.1} parent=55 // pred_region
          %393 = dma.done [#allocation18], 1024
        $region80: #{tpu_custom_call.1} parent=55 // pred_fallthru
          _
        %s394 = sand.u32 %s37, 1
        %s395 = scalar_lea.sflag [#allocation9], %s394
        %s396 = sand.u32 %s37, 1
        %s397 = smul.addr %s396, 16
        %s398 = scalar_lea.vmem [#allocation8], %s397
        %p399 = pneg %p50
        %p400 = pneg %p47
        %p401 = pneg %p71
        %p402 = pneg %p68
        %p403 = pneg %p92
        %p404 = pneg %p89
        %p405 = pneg %p113
        %p406 = pneg %p110
        %p407 = pneg %p134
        %p408 = pneg %p131
        %p409 = pneg %p155
        %p410 = pneg %p152
        %p411 = pneg %p176
        %p412 = pneg %p173
        %p413 = pneg %p197
        %p414 = pneg %p194
        %p415 = pneg %p218
        %p416 = pneg %p215
        %p417 = pneg %p244
        %p418 = pneg %p241
        %s419 = sand.u32 %s231, 1
        %s420 = scalar_lea.sflag [#allocation10], %s419
        %s421 = sand.u32 %s231, 1
        %s422 = smul.addr %s421, 32
        %s423 = scalar_lea.vmem [#allocation19], %s422
        %s424 = smul.u32 4, %s29
        %s425 = smul.u32 4, %s29
        %p427 = scmp.eq.s32.totalorder %s29, 0
        // Predicated region
        $region81: #{tpu_custom_call.1} parent=55 // pred_check
          %p428 = pneg %p427
        $region82: #{tpu_custom_call.1} parent=55 // pred_check_branch
          %430 = sbr.rel (%p428) target = $region84
        $region83: #{tpu_custom_call.1} parent=55 // pred_region
          %431 = vst [vmem:[#allocation4] sm:$0xff] 0.0
          %432 = vst [vmem:[#allocation5] sm:$0xff] 0.0
          %433 = vst [vmem:[#allocation6] sm:$0xff] 0.0
          %434 = vst [vmem:[#allocation7] sm:$0xff] 0.0
        $region84: #{tpu_custom_call.1} parent=55 // pred_fallthru
          _
        %v435 = vld [vmem:[%s369] sm:$0xf]
        %v436 = vld [vmem:[%s369 + $0x4] sm:$0xf]
        %v437 = vld [vmem:[%s369 + $0x8] sm:$0xf]
        %v438 = vld [vmem:[%s369 + $0xc] sm:$0xf]
        %v439 = vld [vmem:[#allocation11] sm:$0xff]
        %v440 = vld [vmem:[#allocation11 + $0x8] sm:$0xff]
        %v441 = vld [vmem:[#allocation11 + $0x10] sm:$0xff]
        %v442 = vld [vmem:[#allocation11 + $0x18] sm:$0xff]
        %v443 = vld [vmem:[#allocation11 + $0x20] sm:$0xff]
        %v444 = vld [vmem:[#allocation11 + $0x28] sm:$0xff]
        %v445 = vld [vmem:[#allocation11 + $0x30] sm:$0xff]
        %v446 = vld [vmem:[#allocation11 + $0x38] sm:$0xff]
        %v447 = vld [vmem:[#allocation11 + $0x40] sm:$0xff]
        %v448 = vld [vmem:[#allocation11 + $0x48] sm:$0xff]
        %v449 = vld [vmem:[#allocation11 + $0x50] sm:$0xff]
        %v450 = vld [vmem:[#allocation11 + $0x58] sm:$0xff]
        %v451 = vld [vmem:[#allocation11 + $0x60] sm:$0xff]
        %v452 = vld [vmem:[#allocation11 + $0x68] sm:$0xff]
        %v453 = vld [vmem:[#allocation11 + $0x70] sm:$0xff]
        %v454 = vld [vmem:[#allocation11 + $0x78] sm:$0xff]
        %v455 = vld [vmem:[#allocation11 + $0x80] sm:$0xff]
        %v456 = vld [vmem:[#allocation11 + $0x88] sm:$0xff]
        %v457 = vld [vmem:[#allocation11 + $0x90] sm:$0xff]
        %v458 = vld [vmem:[#allocation11 + $0x98] sm:$0xff]
        %v459 = vld [vmem:[#allocation11 + $0xa0] sm:$0xff]
        %v460 = vld [vmem:[#allocation11 + $0xa8] sm:$0xff]
        %v461 = vld [vmem:[#allocation11 + $0xb0] sm:$0xff]
        %v462 = vld [vmem:[#allocation11 + $0xb8] sm:$0xff]
        %v463 = vld [vmem:[#allocation11 + $0xc0] sm:$0xff]
        %v464 = vld [vmem:[#allocation11 + $0xc8] sm:$0xff]
        %v465 = vld [vmem:[#allocation11 + $0xd0] sm:$0xff]
        %v466 = vld [vmem:[#allocation11 + $0xd8] sm:$0xff]
        %v467 = vld [vmem:[#allocation11 + $0xe0] sm:$0xff]
        %v468 = vld [vmem:[#allocation11 + $0xe8] sm:$0xff]
        %v469 = vld [vmem:[#allocation11 + $0xf0] sm:$0xff]
        %v470 = vld [vmem:[#allocation11 + $0xf8] sm:$0xff]
        %v471 = vld [vmem:[%s3] sm:$0xf]
        %v473 = vlaneseq
        %v474 = vshrl.u32 %v473, 7
        %v475 = vsub.s32 0, %v474
        %v476 = vrot.slane %v471, %v475
        %v477 = vlaneseq
        %v478 = vshrl.u32 %v477, 7
        %v479 = vsub.s32 1, %v478
        %v480 = vrot.slane %v471, %v479
        %v481 = vlaneseq
        %v482 = vshrl.u32 %v481, 7
        %v483 = vsub.s32 2, %v482
        %v484 = vrot.slane %v471, %v483
        %v485 = vlaneseq
        %v486 = vshrl.u32 %v485, 7
        %v487 = vsub.s32 3, %v486
        %v488 = vrot.slane %v471, %v487
        %v497 = vunpack.c.l.b16 %v435
        %v498 = vunpack.c.l.b16 %v436
        %v499 = vunpack.c.l.b16 %v437
        %v500 = vunpack.c.l.b16 %v438
        %v501 = vpack.c.b16 %v498, %v497
        %v502 = vpack.c.b16 %v500, %v499
        %v537 = vunpack.c.l.b16 %v439
        %v538 = vunpack.c.h.b16 %v439
        %v539 = vunpack.c.l.b16 %v440
        %v540 = vunpack.c.h.b16 %v440
        %v541 = vunpack.c.l.b16 %v441
        %v542 = vunpack.c.h.b16 %v441
        %v543 = vunpack.c.l.b16 %v442
        %v544 = vunpack.c.h.b16 %v442
        %v545 = vunpack.c.l.b16 %v443
        %v546 = vunpack.c.h.b16 %v443
        %v547 = vunpack.c.l.b16 %v444
        %v548 = vunpack.c.h.b16 %v444
        %v549 = vunpack.c.l.b16 %v445
        %v550 = vunpack.c.h.b16 %v445
        %v551 = vunpack.c.l.b16 %v446
        %v552 = vunpack.c.h.b16 %v446
        %v553 = vunpack.c.l.b16 %v447
        %v554 = vunpack.c.h.b16 %v447
        %v555 = vunpack.c.l.b16 %v448
        %v556 = vunpack.c.h.b16 %v448
        %v557 = vunpack.c.l.b16 %v449
        %v558 = vunpack.c.h.b16 %v449
        %v559 = vunpack.c.l.b16 %v450
        %v560 = vunpack.c.h.b16 %v450
        %v561 = vunpack.c.l.b16 %v451
        %v562 = vunpack.c.h.b16 %v451
        %v563 = vunpack.c.l.b16 %v452
        %v564 = vunpack.c.h.b16 %v452
        %v565 = vunpack.c.l.b16 %v453
        %v566 = vunpack.c.h.b16 %v453
        %v567 = vunpack.c.l.b16 %v454
        %v568 = vunpack.c.h.b16 %v454
        %v569 = vunpack.c.l.b16 %v455
        %v570 = vunpack.c.h.b16 %v455
        %v571 = vunpack.c.l.b16 %v456
        %v572 = vunpack.c.h.b16 %v456
        %v573 = vunpack.c.l.b16 %v457
        %v574 = vunpack.c.h.b16 %v457
        %v575 = vunpack.c.l.b16 %v458
        %v576 = vunpack.c.h.b16 %v458
        %v577 = vunpack.c.l.b16 %v459
        %v578 = vunpack.c.h.b16 %v459
        %v579 = vunpack.c.l.b16 %v460
        %v580 = vunpack.c.h.b16 %v460
        %v581 = vunpack.c.l.b16 %v461
        %v582 = vunpack.c.h.b16 %v461
        %v583 = vunpack.c.l.b16 %v462
        %v584 = vunpack.c.h.b16 %v462
        %v585 = vunpack.c.l.b16 %v463
        %v586 = vunpack.c.h.b16 %v463
        %v587 = vunpack.c.l.b16 %v464
        %v588 = vunpack.c.h.b16 %v464
        %v589 = vunpack.c.l.b16 %v465
        %v590 = vunpack.c.h.b16 %v465
        %v591 = vunpack.c.l.b16 %v466
        %v592 = vunpack.c.h.b16 %v466
        %v593 = vunpack.c.l.b16 %v467
        %v594 = vunpack.c.h.b16 %v467
        %v595 = vunpack.c.l.b16 %v468
        %v596 = vunpack.c.h.b16 %v468
        %v597 = vunpack.c.l.b16 %v469
        %v598 = vunpack.c.h.b16 %v469
        %v599 = vunpack.c.l.b16 %v470
        %v600 = vunpack.c.h.b16 %v470
        %v601 = vpack.c.b16 %v541, %v537
        %v602 = vpack.c.b16 %v542, %v538
        %v603 = vpack.c.b16 %v543, %v539
        %v604 = vpack.c.b16 %v544, %v540
        %v605 = vpack.c.b16 %v549, %v545
        %v606 = vpack.c.b16 %v550, %v546
        %v607 = vpack.c.b16 %v551, %v547
        %v608 = vpack.c.b16 %v552, %v548
        %v609 = vpack.c.b16 %v557, %v553
        %v610 = vpack.c.b16 %v558, %v554
        %v611 = vpack.c.b16 %v559, %v555
        %v612 = vpack.c.b16 %v560, %v556
        %v613 = vpack.c.b16 %v565, %v561
        %v614 = vpack.c.b16 %v566, %v562
        %v615 = vpack.c.b16 %v567, %v563
        %v616 = vpack.c.b16 %v568, %v564
        %v617 = vpack.c.b16 %v573, %v569
        %v618 = vpack.c.b16 %v574, %v570
        %v619 = vpack.c.b16 %v575, %v571
        %v620 = vpack.c.b16 %v576, %v572
        %v621 = vpack.c.b16 %v581, %v577
        %v622 = vpack.c.b16 %v582, %v578
        %v623 = vpack.c.b16 %v583, %v579
        %v624 = vpack.c.b16 %v584, %v580
        %v625 = vpack.c.b16 %v589, %v585
        %v626 = vpack.c.b16 %v590, %v586
        %v627 = vpack.c.b16 %v591, %v587
        %v628 = vpack.c.b16 %v592, %v588
        %v629 = vpack.c.b16 %v597, %v593
        %v630 = vpack.c.b16 %v598, %v594
        %v631 = vpack.c.b16 %v599, %v595
        %v632 = vpack.c.b16 %v600, %v596
        %665 = vmatprep.subr.bf16.mxu0 %v602
        %666 = vmatpush1.bf16.msra.mxu0 %v601
        %667 = vmatprep.subr.bf16.mxu0 %v606
        %668 = vmatpush1.bf16.msra.mxu0 %v605
        %669 = vmatprep.subr.bf16.mxu0 %v610
        %670 = vmatpush1.bf16.msra.mxu0 %v609
        %671 = vmatprep.subr.bf16.mxu0 %v614
        %672 = vmatpush1.bf16.msra.mxu0 %v613
        %673 = vmatprep.subr.bf16.mxu0 %v618
        %674 = vmatpush1.bf16.msra.mxu0 %v617
        %675 = vmatprep.subr.bf16.mxu0 %v622
        %676 = vmatpush1.bf16.msra.mxu0 %v621
        %677 = vmatprep.subr.bf16.mxu0 %v626
        %678 = vmatpush1.bf16.msra.mxu0 %v625
        %679 = vmatprep.subr.bf16.mxu0 %v630
        %680 = vmatpush1.bf16.msra.mxu0 %v629
        %681 = vmatprep.subr.bf16.mxu0 0
        %682 = vmatpush1.bf16.msra.mxu0 0
        %683 = vmatprep.subr.bf16.mxu0 0
        %684 = vmatpush1.bf16.msra.mxu0 0
        %685 = vmatprep.subr.bf16.mxu0 0
        %686 = vmatpush1.bf16.msra.mxu0 0
        %687 = vmatprep.subr.bf16.mxu0 0
        %688 = vmatpush1.bf16.msra.mxu0 0
        %689 = vmatprep.subr.bf16.mxu0 0
        %690 = vmatpush1.bf16.msra.mxu0 0
        %691 = vmatprep.subr.bf16.mxu0 0
        %692 = vmatpush1.bf16.msra.mxu0 0
        %693 = vmatprep.subr.bf16.mxu0 0
        %694 = vmatpush1.bf16.msra.mxu0 0
        %695 = vmatprep.subr.bf16.mxu0 0
        %696 = vmatpush1.bf16.msra.mxu0 0
        %697 = vmatprep.mubr.bf16.mxu0 0
        %698 = vmatmul.mubr.bf16.gmra.mrb[0].mxu0 %v501
        %v699 = vpop.f32.mrb[0].mxu0
        %v700 = vadd.f32 %v476, %v699
        %v701 = vpop.f32.mrb[0].mxu0
        %v702 = vadd.f32 %v480, %v701
        %v703 = vpop.f32.mrb[0].mxu0
        %v704 = vadd.f32 %v476, %v703
        %v705 = vpop.f32.mrb[0].mxu0
        %v706 = vadd.f32 %v480, %v705
        %707 = vmatprep.mubr.bf16.mxu0 0
        %708 = vmatmul.mubr.bf16.gmra.mrb[0].mxu0 %v502
        %v709 = vpop.f32.mrb[0].mxu0
        %v710 = vadd.f32 %v476, %v709
        %v711 = vpop.f32.mrb[0].mxu0
        %v712 = vadd.f32 %v480, %v711
        %v713 = vpop.f32.mrb[0].mxu0
        %v714 = vadd.f32 %v476, %v713
        %v715 = vpop.f32.mrb[0].mxu0
        %v716 = vadd.f32 %v480, %v715
        %717 = vdwg.mxu0
        %718 = vmatprep.subr.bf16.mxu0 %v604
        %719 = vmatpush1.bf16.msra.mxu0 %v603
        %720 = vmatprep.subr.bf16.mxu0 %v608
        %721 = vmatpush1.bf16.msra.mxu0 %v607
        %722 = vmatprep.subr.bf16.mxu0 %v612
        %723 = vmatpush1.bf16.msra.mxu0 %v611
        %724 = vmatprep.subr.bf16.mxu0 %v616
        %725 = vmatpush1.bf16.msra.mxu0 %v615
        %726 = vmatprep.subr.bf16.mxu0 %v620
        %727 = vmatpush1.bf16.msra.mxu0 %v619
        %728 = vmatprep.subr.bf16.mxu0 %v624
        %729 = vmatpush1.bf16.msra.mxu0 %v623
        %730 = vmatprep.subr.bf16.mxu0 %v628
        %731 = vmatpush1.bf16.msra.mxu0 %v627
        %732 = vmatprep.subr.bf16.mxu0 %v632
        %733 = vmatpush1.bf16.msra.mxu0 %v631
        %734 = vmatprep.subr.bf16.mxu0 0
        %735 = vmatpush1.bf16.msra.mxu0 0
        %736 = vmatprep.subr.bf16.mxu0 0
        %737 = vmatpush1.bf16.msra.mxu0 0
        %738 = vmatprep.subr.bf16.mxu0 0
        %739 = vmatpush1.bf16.msra.mxu0 0
        %740 = vmatprep.subr.bf16.mxu0 0
        %741 = vmatpush1.bf16.msra.mxu0 0
        %742 = vmatprep.subr.bf16.mxu0 0
        %743 = vmatpush1.bf16.msra.mxu0 0
        %744 = vmatprep.subr.bf16.mxu0 0
        %745 = vmatpush1.bf16.msra.mxu0 0
        %746 = vmatprep.subr.bf16.mxu0 0
        %747 = vmatpush1.bf16.msra.mxu0 0
        %748 = vmatprep.subr.bf16.mxu0 0
        %749 = vmatpush1.bf16.msra.mxu0 0
        %750 = vmatprep.mubr.bf16.mxu0 0
        %751 = vmatmul.mubr.bf16.gmra.mrb[0].mxu0 %v501
        %v752 = vpop.f32.mrb[0].mxu0
        %v753 = vadd.f32 %v484, %v752
        %v754 = vpop.f32.mrb[0].mxu0
        %v755 = vadd.f32 %v488, %v754
        %v756 = vpop.f32.mrb[0].mxu0
        %v757 = vadd.f32 %v484, %v756
        %v758 = vpop.f32.mrb[0].mxu0
        %v759 = vadd.f32 %v488, %v758
        %760 = vmatprep.mubr.bf16.mxu0 0
        %761 = vmatmul.mubr.bf16.gmra.mrb[0].mxu0 %v502
        %v762 = vpop.f32.mrb[0].mxu0
        %v763 = vadd.f32 %v484, %v762
        %v764 = vpop.f32.mrb[0].mxu0
        %v765 = vadd.f32 %v488, %v764
        %v766 = vpop.f32.mrb[0].mxu0
        %v767 = vadd.f32 %v484, %v766
        %v768 = vpop.f32.mrb[0].mxu0
        %v769 = vadd.f32 %v488, %v768
        %770 = vdwg.mxu0
        %771 = vst [vmem:[#allocation2] sm:$0xff] %v700
        %772 = vst [vmem:[#allocation2 + $0x8] sm:$0xff] %v702
        %773 = vst [vmem:[#allocation2 + $0x10] sm:$0xff] %v753
        %774 = vst [vmem:[#allocation2 + $0x18] sm:$0xff] %v755
        %775 = vst [vmem:[#allocation2 + $0x20] sm:$0xff] %v704
        %776 = vst [vmem:[#allocation2 + $0x28] sm:$0xff] %v706
        %777 = vst [vmem:[#allocation2 + $0x30] sm:$0xff] %v757
        %778 = vst [vmem:[#allocation2 + $0x38] sm:$0xff] %v759
        %779 = vst [vmem:[#allocation2 + $0x40] sm:$0xff] %v710
        %780 = vst [vmem:[#allocation2 + $0x48] sm:$0xff] %v712
        %781 = vst [vmem:[#allocation2 + $0x50] sm:$0xff] %v763
        %782 = vst [vmem:[#allocation2 + $0x58] sm:$0xff] %v765
        %783 = vst [vmem:[#allocation2 + $0x60] sm:$0xff] %v714
        %784 = vst [vmem:[#allocation2 + $0x68] sm:$0xff] %v716
        %785 = vst [vmem:[#allocation2 + $0x70] sm:$0xff] %v767
        %786 = vst [vmem:[#allocation2 + $0x78] sm:$0xff] %v769
        %v787 = vld [vmem:[#allocation4] sm:$0xff]
        %v788 = vld [vmem:[#allocation5] sm:$0xff]
        %v789 = vld [vmem:[#allocation2] sm:$0xff]
        %v790 = vld [vmem:[#allocation2 + $0x8] sm:$0xff]
        %v791 = vld [vmem:[#allocation2 + $0x10] sm:$0xff]
        %v792 = vld [vmem:[#allocation2 + $0x18] sm:$0xff]
        %v793 = vpack.c.bf16 %v787, %v787
        %v794 = vld [vmem:[#allocation13] sm:$0xff]
        %v795 = vld [vmem:[#allocation13 + $0x8] sm:$0xff]
        %v796 = vld [vmem:[#allocation13 + $0x10] sm:$0xff]
        %v797 = vld [vmem:[#allocation13 + $0x18] sm:$0xff]
        %v798 = vld [vmem:[#allocation13 + $0x20] sm:$0xff]
        %v799 = vld [vmem:[#allocation13 + $0x28] sm:$0xff]
        %v800 = vld [vmem:[#allocation13 + $0x30] sm:$0xff]
        %v801 = vld [vmem:[#allocation13 + $0x38] sm:$0xff]
        %v802 = vld [vmem:[#allocation13 + $0x40] sm:$0xff]
        %v803 = vld [vmem:[#allocation13 + $0x48] sm:$0xff]
        %v804 = vld [vmem:[#allocation13 + $0x50] sm:$0xff]
        %v805 = vld [vmem:[#allocation13 + $0x58] sm:$0xff]
        %v806 = vld [vmem:[#allocation13 + $0x60] sm:$0xff]
        %v807 = vld [vmem:[#allocation13 + $0x68] sm:$0xff]
        %v808 = vld [vmem:[#allocation13 + $0x70] sm:$0xff]
        %v809 = vld [vmem:[#allocation13 + $0x78] sm:$0xff]
        %v810 = vld [vmem:[#allocation13 + $0x80] sm:$0xff]
        %v811 = vld [vmem:[#allocation13 + $0x88] sm:$0xff]
        %v812 = vld [vmem:[#allocation13 + $0x90] sm:$0xff]
        %v813 = vld [vmem:[#allocation13 + $0x98] sm:$0xff]
        %v814 = vld [vmem:[#allocation13 + $0xa0] sm:$0xff]
        %v815 = vld [vmem:[#allocation13 + $0xa8] sm:$0xff]
        %v816 = vld [vmem:[#allocation13 + $0xb0] sm:$0xff]
        %v817 = vld [vmem:[#allocation13 + $0xb8] sm:$0xff]
        %v818 = vld [vmem:[#allocation13 + $0xc0] sm:$0xff]
        %v819 = vld [vmem:[#allocation13 + $0xc8] sm:$0xff]
        %v820 = vld [vmem:[#allocation13 + $0xd0] sm:$0xff]
        %v821 = vld [vmem:[#allocation13 + $0xd8] sm:$0xff]
        %v822 = vld [vmem:[#allocation13 + $0xe0] sm:$0xff]
        %v823 = vld [vmem:[#allocation13 + $0xe8] sm:$0xff]
        %v824 = vld [vmem:[#allocation13 + $0xf0] sm:$0xff]
        %v825 = vld [vmem:[#allocation13 + $0xf8] sm:$0xff]
        %v858 = vunpack.c.l.b16 %v794
        %v859 = vunpack.c.h.b16 %v794
        %v860 = vunpack.c.l.b16 %v795
        %v861 = vunpack.c.h.b16 %v795
        %v862 = vunpack.c.l.b16 %v796
        %v863 = vunpack.c.h.b16 %v796
        %v864 = vunpack.c.l.b16 %v797
        %v865 = vunpack.c.h.b16 %v797
        %v866 = vunpack.c.l.b16 %v798
        %v867 = vunpack.c.h.b16 %v798
        %v868 = vunpack.c.l.b16 %v799
        %v869 = vunpack.c.h.b16 %v799
        %v870 = vunpack.c.l.b16 %v800
        %v871 = vunpack.c.h.b16 %v800
        %v872 = vunpack.c.l.b16 %v801
        %v873 = vunpack.c.h.b16 %v801
        %v874 = vunpack.c.l.b16 %v802
        %v875 = vunpack.c.h.b16 %v802
        %v876 = vunpack.c.l.b16 %v803
        %v877 = vunpack.c.h.b16 %v803
        %v878 = vunpack.c.l.b16 %v804
        %v879 = vunpack.c.h.b16 %v804
        %v880 = vunpack.c.l.b16 %v805
        %v881 = vunpack.c.h.b16 %v805
        %v882 = vunpack.c.l.b16 %v806
        %v883 = vunpack.c.h.b16 %v806
        %v884 = vunpack.c.l.b16 %v807
        %v885 = vunpack.c.h.b16 %v807
        %v886 = vunpack.c.l.b16 %v808
        %v887 = vunpack.c.h.b16 %v808
        %v888 = vunpack.c.l.b16 %v809
        %v889 = vunpack.c.h.b16 %v809
        %v890 = vunpack.c.l.b16 %v810
        %v891 = vunpack.c.h.b16 %v810
        %v892 = vunpack.c.l.b16 %v811
        %v893 = vunpack.c.h.b16 %v811
        %v894 = vunpack.c.l.b16 %v812
        %v895 = vunpack.c.h.b16 %v812
        %v896 = vunpack.c.l.b16 %v813
        %v897 = vunpack.c.h.b16 %v813
        %v898 = vunpack.c.l.b16 %v814
        %v899 = vunpack.c.h.b16 %v814
        %v900 = vunpack.c.l.b16 %v815
        %v901 = vunpack.c.h.b16 %v815
        %v902 = vunpack.c.l.b16 %v816
        %v903 = vunpack.c.h.b16 %v816
        %v904 = vunpack.c.l.b16 %v817
        %v905 = vunpack.c.h.b16 %v817
        %v906 = vunpack.c.l.b16 %v818
        %v907 = vunpack.c.h.b16 %v818
        %v908 = vunpack.c.l.b16 %v819
        %v909 = vunpack.c.h.b16 %v819
        %v910 = vunpack.c.l.b16 %v820
        %v911 = vunpack.c.h.b16 %v820
        %v912 = vunpack.c.l.b16 %v821
        %v913 = vunpack.c.h.b16 %v821
        %v914 = vunpack.c.l.b16 %v822
        %v915 = vunpack.c.h.b16 %v822
        %v916 = vunpack.c.l.b16 %v823
        %v917 = vunpack.c.h.b16 %v823
        %v918 = vunpack.c.l.b16 %v824
        %v919 = vunpack.c.h.b16 %v824
        %v920 = vunpack.c.l.b16 %v825
        %v921 = vunpack.c.h.b16 %v825
        %v922 = vpack.c.b16 %v862, %v858
        %v923 = vpack.c.b16 %v863, %v859
        %v924 = vpack.c.b16 %v864, %v860
        %v925 = vpack.c.b16 %v865, %v861
        %v926 = vpack.c.b16 %v870, %v866
        %v927 = vpack.c.b16 %v871, %v867
        %v928 = vpack.c.b16 %v872, %v868
        %v929 = vpack.c.b16 %v873, %v869
        %v930 = vpack.c.b16 %v878, %v874
        %v931 = vpack.c.b16 %v879, %v875
        %v932 = vpack.c.b16 %v880, %v876
        %v933 = vpack.c.b16 %v881, %v877
        %v934 = vpack.c.b16 %v886, %v882
        %v935 = vpack.c.b16 %v887, %v883
        %v936 = vpack.c.b16 %v888, %v884
        %v937 = vpack.c.b16 %v889, %v885
        %v938 = vpack.c.b16 %v894, %v890
        %v939 = vpack.c.b16 %v895, %v891
        %v940 = vpack.c.b16 %v896, %v892
        %v941 = vpack.c.b16 %v897, %v893
        %v942 = vpack.c.b16 %v902, %v898
        %v943 = vpack.c.b16 %v903, %v899
        %v944 = vpack.c.b16 %v904, %v900
        %v945 = vpack.c.b16 %v905, %v901
        %v946 = vpack.c.b16 %v910, %v906
        %v947 = vpack.c.b16 %v911, %v907
        %v948 = vpack.c.b16 %v912, %v908
        %v949 = vpack.c.b16 %v913, %v909
        %v950 = vpack.c.b16 %v918, %v914
        %v951 = vpack.c.b16 %v919, %v915
        %v952 = vpack.c.b16 %v920, %v916
        %v953 = vpack.c.b16 %v921, %v917
        %986 = vmatprep.subr.bf16.mxu0 %v923
        %987 = vmatpush1.bf16.msra.mxu0 %v922
        %988 = vmatprep.subr.bf16.mxu0 %v927
        %989 = vmatpush1.bf16.msra.mxu0 %v926
        %990 = vmatprep.subr.bf16.mxu0 %v931
        %991 = vmatpush1.bf16.msra.mxu0 %v930
        %992 = vmatprep.subr.bf16.mxu0 %v935
        %993 = vmatpush1.bf16.msra.mxu0 %v934
        %994 = vmatprep.subr.bf16.mxu0 %v939
        %995 = vmatpush1.bf16.msra.mxu0 %v938
        %996 = vmatprep.subr.bf16.mxu0 %v943
        %997 = vmatpush1.bf16.msra.mxu0 %v942
        %998 = vmatprep.subr.bf16.mxu0 %v947
        %999 = vmatpush1.bf16.msra.mxu0 %v946
        %1000 = vmatprep.subr.bf16.mxu0 %v951
        %1001 = vmatpush1.bf16.msra.mxu0 %v950
        %1002 = vmatprep.subr.bf16.mxu0 0
        %1003 = vmatpush1.bf16.msra.mxu0 0
        %1004 = vmatprep.subr.bf16.mxu0 0
        %1005 = vmatpush1.bf16.msra.mxu0 0
        %1006 = vmatprep.subr.bf16.mxu0 0
        %1007 = vmatpush1.bf16.msra.mxu0 0
        %1008 = vmatprep.subr.bf16.mxu0 0
        %1009 = vmatpush1.bf16.msra.mxu0 0
        %1010 = vmatprep.subr.bf16.mxu0 0
        %1011 = vmatpush1.bf16.msra.mxu0 0
        %1012 = vmatprep.subr.bf16.mxu0 0
        %1013 = vmatpush1.bf16.msra.mxu0 0
        %1014 = vmatprep.subr.bf16.mxu0 0
        %1015 = vmatpush1.bf16.msra.mxu0 0
        %1016 = vmatprep.subr.bf16.mxu0 0
        %1017 = vmatpush1.bf16.msra.mxu0 0
        %1018 = vmatprep.mubr.bf16.mxu0 0
        %1019 = vmatmul.mubr.bf16.gmra.mrb[0].mxu0 %v793
        %v1020 = vpop.f32.mrb[0].mxu0
        %v1021 = vadd.f32 0.0, %v1020
        %v1022 = vpop.f32.mrb[0].mxu0
        %v1023 = vadd.f32 0.0, %v1022
        %v1024 = vpop.f32.mrb[0].mxu0
        %v1025 = vpop.f32.mrb[0].mxu0
        %1026 = vdwg.mxu0
        %1027 = vmatprep.subr.bf16.mxu0 %v925
        %1028 = vmatpush1.bf16.msra.mxu0 %v924
        %1029 = vmatprep.subr.bf16.mxu0 %v929
        %1030 = vmatpush1.bf16.msra.mxu0 %v928
        %1031 = vmatprep.subr.bf16.mxu0 %v933
        %1032 = vmatpush1.bf16.msra.mxu0 %v932
        %1033 = vmatprep.subr.bf16.mxu0 %v937
        %1034 = vmatpush1.bf16.msra.mxu0 %v936
        %1035 = vmatprep.subr.bf16.mxu0 %v941
        %1036 = vmatpush1.bf16.msra.mxu0 %v940
        %1037 = vmatprep.subr.bf16.mxu0 %v945
        %1038 = vmatpush1.bf16.msra.mxu0 %v944
        %1039 = vmatprep.subr.bf16.mxu0 %v949
        %1040 = vmatpush1.bf16.msra.mxu0 %v948
        %1041 = vmatprep.subr.bf16.mxu0 %v953
        %1042 = vmatpush1.bf16.msra.mxu0 %v952
        %1043 = vmatprep.subr.bf16.mxu0 0
        %1044 = vmatpush1.bf16.msra.mxu0 0
        %1045 = vmatprep.subr.bf16.mxu0 0
        %1046 = vmatpush1.bf16.msra.mxu0 0
        %1047 = vmatprep.subr.bf16.mxu0 0
        %1048 = vmatpush1.bf16.msra.mxu0 0
        %1049 = vmatprep.subr.bf16.mxu0 0
        %1050 = vmatpush1.bf16.msra.mxu0 0
        %1051 = vmatprep.subr.bf16.mxu0 0
        %1052 = vmatpush1.bf16.msra.mxu0 0
        %1053 = vmatprep.subr.bf16.mxu0 0
        %1054 = vmatpush1.bf16.msra.mxu0 0
        %1055 = vmatprep.subr.bf16.mxu0 0
        %1056 = vmatpush1.bf16.msra.mxu0 0
        %1057 = vmatprep.subr.bf16.mxu0 0
        %1058 = vmatpush1.bf16.msra.mxu0 0
        %1059 = vmatprep.mubr.bf16.mxu0 0
        %1060 = vmatmul.mubr.bf16.gmra.mrb[0].mxu0 %v793
        %v1061 = vpop.f32.mrb[0].mxu0
        %v1062 = vadd.f32 0.0, %v1061
        %v1063 = vpop.f32.mrb[0].mxu0
        %v1064 = vadd.f32 0.0, %v1063
        %v1065 = vpop.f32.mrb[0].mxu0
        %v1066 = vpop.f32.mrb[0].mxu0
        %1067 = vdwg.mxu0
        %v1068 = vadd.f32 %v789, %v1021
        %v1069 = vadd.f32 %v790, %v1023
        %v1070 = vadd.f32 %v791, %v1062
        %v1071 = vadd.f32 %v792, %v1064
        %v1072 = vxor.u32 %v1068, 2147483648
        %v1073 = vmul.f32 %v1072, 1.442695
        %v1074 = vpow.pop %v1073
        %v1075 = vadd.f32 %v1074, 1.0
        %v1076 = vrcp.pop %v1075
        %v1077 = vmul.f32 1.0, %v1076
        %v1078 = vxor.u32 %v1069, 2147483648
        %v1079 = vmul.f32 %v1078, 1.442695
        %v1080 = vpow.pop %v1079
        %v1081 = vadd.f32 %v1080, 1.0
        %v1082 = vrcp.pop %v1081
        %v1083 = vmul.f32 1.0, %v1082
        %v1084 = vtanh.pop %v1070
        %v1085 = vxor.u32 %v1071, 2147483648
        %v1086 = vmul.f32 %v1085, 1.442695
        %v1087 = vpow.pop %v1086
        %v1088 = vadd.f32 %v1087, 1.0
        %v1089 = vrcp.pop %v1088
        %v1090 = vmul.f32 1.0, %v1089
        %v1091 = vmul.f32 %v1083, %v788
        %v1092 = vmul.f32 %v1077, %v1084
        %v1093 = vadd.f32 %v1091, %v1092
        %v1094 = vtanh.pop %v1093
        %v1095 = vmul.f32 %v1090, %v1094
        %1096 = vst [vmem:[#allocation3] sm:$0xff] %v1095
        %s1097 = scalar_lea.vmem [#allocation2], 32
        %v1098 = vld [vmem:[%s1097] sm:$0xff]
        %v1099 = vld [vmem:[%s1097 + $0x8] sm:$0xff]
        %v1100 = vld [vmem:[%s1097 + $0x10] sm:$0xff]
        %v1101 = vld [vmem:[%s1097 + $0x18] sm:$0xff]
        %v1102 = vpack.c.bf16 %v1095, %v1095
        %v1103 = vld [vmem:[#allocation13] sm:$0xff]
        %v1104 = vld [vmem:[#allocation13 + $0x8] sm:$0xff]
        %v1105 = vld [vmem:[#allocation13 + $0x10] sm:$0xff]
        %v1106 = vld [vmem:[#allocation13 + $0x18] sm:$0xff]
        %v1107 = vld [vmem:[#allocation13 + $0x20] sm:$0xff]
        %v1108 = vld [vmem:[#allocation13 + $0x28] sm:$0xff]
        %v1109 = vld [vmem:[#allocation13 + $0x30] sm:$0xff]
        %v1110 = vld [vmem:[#allocation13 + $0x38] sm:$0xff]
        %v1111 = vld [vmem:[#allocation13 + $0x40] sm:$0xff]
        %v1112 = vld [vmem:[#allocation13 + $0x48] sm:$0xff]
        %v1113 = vld [vmem:[#allocation13 + $0x50] sm:$0xff]
        %v1114 = vld [vmem:[#allocation13 + $0x58] sm:$0xff]
        %v1115 = vld [vmem:[#allocation13 + $0x60] sm:$0xff]
        %v1116 = vld [vmem:[#allocation13 + $0x68] sm:$0xff]
        %v1117 = vld [vmem:[#allocation13 + $0x70] sm:$0xff]
        %v1118 = vld [vmem:[#allocation13 + $0x78] sm:$0xff]
        %v1119 = vld [vmem:[#allocation13 + $0x80] sm:$0xff]
        %v1120 = vld [vmem:[#allocation13 + $0x88] sm:$0xff]
        %v1121 = vld [vmem:[#allocation13 + $0x90] sm:$0xff]
        %v1122 = vld [vmem:[#allocation13 + $0x98] sm:$0xff]
        %v1123 = vld [vmem:[#allocation13 + $0xa0] sm:$0xff]
        %v1124 = vld [vmem:[#allocation13 + $0xa8] sm:$0xff]
        %v1125 = vld [vmem:[#allocation13 + $0xb0] sm:$0xff]
        %v1126 = vld [vmem:[#allocation13 + $0xb8] sm:$0xff]
        %v1127 = vld [vmem:[#allocation13 + $0xc0] sm:$0xff]
        %v1128 = vld [vmem:[#allocation13 + $0xc8] sm:$0xff]
        %v1129 = vld [vmem:[#allocation13 + $0xd0] sm:$0xff]
        %v1130 = vld [vmem:[#allocation13 + $0xd8] sm:$0xff]
        %v1131 = vld [vmem:[#allocation13 + $0xe0] sm:$0xff]
        %v1132 = vld [vmem:[#allocation13 + $0xe8] sm:$0xff]
        %v1133 = vld [vmem:[#allocation13 + $0xf0] sm:$0xff]
        %v1134 = vld [vmem:[#allocation13 + $0xf8] sm:$0xff]
        %v1167 = vunpack.c.l.b16 %v1103
        %v1168 = vunpack.c.h.b16 %v1103
        %v1169 = vunpack.c.l.b16 %v1104
        %v1170 = vunpack.c.h.b16 %v1104
        %v1171 = vunpack.c.l.b16 %v1105
        %v1172 = vunpack.c.h.b16 %v1105
        %v1173 = vunpack.c.l.b16 %v1106
        %v1174 = vunpack.c.h.b16 %v1106
        %v1175 = vunpack.c.l.b16 %v1107
        %v1176 = vunpack.c.h.b16 %v1107
        %v1177 = vunpack.c.l.b16 %v1108
        %v1178 = vunpack.c.h.b16 %v1108
        %v1179 = vunpack.c.l.b16 %v1109
        %v1180 = vunpack.c.h.b16 %v1109
        %v1181 = vunpack.c.l.b16 %v1110
        %v1182 = vunpack.c.h.b16 %v1110
        %v1183 = vunpack.c.l.b16 %v1111
        %v1184 = vunpack.c.h.b16 %v1111
        %v1185 = vunpack.c.l.b16 %v1112
        %v1186 = vunpack.c.h.b16 %v1112
        %v1187 = vunpack.c.l.b16 %v1113
        %v1188 = vunpack.c.h.b16 %v1113
        %v1189 = vunpack.c.l.b16 %v1114
        %v1190 = vunpack.c.h.b16 %v1114
        %v1191 = vunpack.c.l.b16 %v1115
        %v1192 = vunpack.c.h.b16 %v1115
        %v1193 = vunpack.c.l.b16 %v1116
        %v1194 = vunpack.c.h.b16 %v1116
        %v1195 = vunpack.c.l.b16 %v1117
        %v1196 = vunpack.c.h.b16 %v1117
        %v1197 = vunpack.c.l.b16 %v1118
        %v1198 = vunpack.c.h.b16 %v1118
        %v1199 = vunpack.c.l.b16 %v1119
        %v1200 = vunpack.c.h.b16 %v1119
        %v1201 = vunpack.c.l.b16 %v1120
        %v1202 = vunpack.c.h.b16 %v1120
        %v1203 = vunpack.c.l.b16 %v1121
        %v1204 = vunpack.c.h.b16 %v1121
        %v1205 = vunpack.c.l.b16 %v1122
        %v1206 = vunpack.c.h.b16 %v1122
        %v1207 = vunpack.c.l.b16 %v1123
        %v1208 = vunpack.c.h.b16 %v1123
        %v1209 = vunpack.c.l.b16 %v1124
        %v1210 = vunpack.c.h.b16 %v1124
        %v1211 = vunpack.c.l.b16 %v1125
        %v1212 = vunpack.c.h.b16 %v1125
        %v1213 = vunpack.c.l.b16 %v1126
        %v1214 = vunpack.c.h.b16 %v1126
        %v1215 = vunpack.c.l.b16 %v1127
        %v1216 = vunpack.c.h.b16 %v1127
        %v1217 = vunpack.c.l.b16 %v1128
        %v1218 = vunpack.c.h.b16 %v1128
        %v1219 = vunpack.c.l.b16 %v1129
        %v1220 = vunpack.c.h.b16 %v1129
        %v1221 = vunpack.c.l.b16 %v1130
        %v1222 = vunpack.c.h.b16 %v1130
        %v1223 = vunpack.c.l.b16 %v1131
        %v1224 = vunpack.c.h.b16 %v1131
        %v1225 = vunpack.c.l.b16 %v1132
        %v1226 = vunpack.c.h.b16 %v1132
        %v1227 = vunpack.c.l.b16 %v1133
        %v1228 = vunpack.c.h.b16 %v1133
        %v1229 = vunpack.c.l.b16 %v1134
        %v1230 = vunpack.c.h.b16 %v1134
        %v1231 = vpack.c.b16 %v1171, %v1167
        %v1232 = vpack.c.b16 %v1172, %v1168
        %v1233 = vpack.c.b16 %v1173, %v1169
        %v1234 = vpack.c.b16 %v1174, %v1170
        %v1235 = vpack.c.b16 %v1179, %v1175
        %v1236 = vpack.c.b16 %v1180, %v1176
        %v1237 = vpack.c.b16 %v1181, %v1177
        %v1238 = vpack.c.b16 %v1182, %v1178
        %v1239 = vpack.c.b16 %v1187, %v1183
        %v1240 = vpack.c.b16 %v1188, %v1184
        %v1241 = vpack.c.b16 %v1189, %v1185
        %v1242 = vpack.c.b16 %v1190, %v1186
        %v1243 = vpack.c.b16 %v1195, %v1191
        %v1244 = vpack.c.b16 %v1196, %v1192
        %v1245 = vpack.c.b16 %v1197, %v1193
        %v1246 = vpack.c.b16 %v1198, %v1194
        %v1247 = vpack.c.b16 %v1203, %v1199
        %v1248 = vpack.c.b16 %v1204, %v1200
        %v1249 = vpack.c.b16 %v1205, %v1201
        %v1250 = vpack.c.b16 %v1206, %v1202
        %v1251 = vpack.c.b16 %v1211, %v1207
        %v1252 = vpack.c.b16 %v1212, %v1208
        %v1253 = vpack.c.b16 %v1213, %v1209
        %v1254 = vpack.c.b16 %v1214, %v1210
        %v1255 = vpack.c.b16 %v1219, %v1215
        %v1256 = vpack.c.b16 %v1220, %v1216
        %v1257 = vpack.c.b16 %v1221, %v1217
        %v1258 = vpack.c.b16 %v1222, %v1218
        %v1259 = vpack.c.b16 %v1227, %v1223
        %v1260 = vpack.c.b16 %v1228, %v1224
        %v1261 = vpack.c.b16 %v1229, %v1225
        %v1262 = vpack.c.b16 %v1230, %v1226
        %1295 = vmatprep.subr.bf16.mxu0 %v1232
        %1296 = vmatpush1.bf16.msra.mxu0 %v1231
        %1297 = vmatprep.subr.bf16.mxu0 %v1236
        %1298 = vmatpush1.bf16.msra.mxu0 %v1235
        %1299 = vmatprep.subr.bf16.mxu0 %v1240
        %1300 = vmatpush1.bf16.msra.mxu0 %v1239
        %1301 = vmatprep.subr.bf16.mxu0 %v1244
        %1302 = vmatpush1.bf16.msra.mxu0 %v1243
        %1303 = vmatprep.subr.bf16.mxu0 %v1248
        %1304 = vmatpush1.bf16.msra.mxu0 %v1247
        %1305 = vmatprep.subr.bf16.mxu0 %v1252
        %1306 = vmatpush1.bf16.msra.mxu0 %v1251
        %1307 = vmatprep.subr.bf16.mxu0 %v1256
        %1308 = vmatpush1.bf16.msra.mxu0 %v1255
        %1309 = vmatprep.subr.bf16.mxu0 %v1260
        %1310 = vmatpush1.bf16.msra.mxu0 %v1259
        %1311 = vmatprep.subr.bf16.mxu0 0
        %1312 = vmatpush1.bf16.msra.mxu0 0
        %1313 = vmatprep.subr.bf16.mxu0 0
        %1314 = vmatpush1.bf16.msra.mxu0 0
        %1315 = vmatprep.subr.bf16.mxu0 0
        %1316 = vmatpush1.bf16.msra.mxu0 0
        %1317 = vmatprep.subr.bf16.mxu0 0
        %1318 = vmatpush1.bf16.msra.mxu0 0
        %1319 = vmatprep.subr.bf16.mxu0 0
        %1320 = vmatpush1.bf16.msra.mxu0 0
        %1321 = vmatprep.subr.bf16.mxu0 0
        %1322 = vmatpush1.bf16.msra.mxu0 0
        %1323 = vmatprep.subr.bf16.mxu0 0
        %1324 = vmatpush1.bf16.msra.mxu0 0
        %1325 = vmatprep.subr.bf16.mxu0 0
        %1326 = vmatpush1.bf16.msra.mxu0 0
        %1327 = vmatprep.mubr.bf16.mxu0 0
        %1328 = vmatmul.mubr.bf16.gmra.mrb[0].mxu0 %v1102
        %v1329 = vpop.f32.mrb[0].mxu0
        %v1330 = vadd.f32 0.0, %v1329
        %v1331 = vpop.f32.mrb[0].mxu0
        %v1332 = vadd.f32 0.0, %v1331
        %v1333 = vpop.f32.mrb[0].mxu0
        %v1334 = vpop.f32.mrb[0].mxu0
        %1335 = vdwg.mxu0
        %1336 = vmatprep.subr.bf16.mxu0 %v1234
        %1337 = vmatpush1.bf16.msra.mxu0 %v1233
        %1338 = vmatprep.subr.bf16.mxu0 %v1238
        %1339 = vmatpush1.bf16.msra.mxu0 %v1237
        %1340 = vmatprep.subr.bf16.mxu0 %v1242
        %1341 = vmatpush1.bf16.msra.mxu0 %v1241
        %1342 = vmatprep.subr.bf16.mxu0 %v1246
        %1343 = vmatpush1.bf16.msra.mxu0 %v1245
        %1344 = vmatprep.subr.bf16.mxu0 %v1250
        %1345 = vmatpush1.bf16.msra.mxu0 %v1249
        %1346 = vmatprep.subr.bf16.mxu0 %v1254
        %1347 = vmatpush1.bf16.msra.mxu0 %v1253
        %1348 = vmatprep.subr.bf16.mxu0 %v1258
        %1349 = vmatpush1.bf16.msra.mxu0 %v1257
        %1350 = vmatprep.subr.bf16.mxu0 %v1262
        %1351 = vmatpush1.bf16.msra.mxu0 %v1261
        %1352 = vmatprep.subr.bf16.mxu0 0
        %1353 = vmatpush1.bf16.msra.mxu0 0
        %1354 = vmatprep.subr.bf16.mxu0 0
        %1355 = vmatpush1.bf16.msra.mxu0 0
        %1356 = vmatprep.subr.bf16.mxu0 0
        %1357 = vmatpush1.bf16.msra.mxu0 0
        %1358 = vmatprep.subr.bf16.mxu0 0
        %1359 = vmatpush1.bf16.msra.mxu0 0
        %1360 = vmatprep.subr.bf16.mxu0 0
        %1361 = vmatpush1.bf16.msra.mxu0 0
        %1362 = vmatprep.subr.bf16.mxu0 0
        %1363 = vmatpush1.bf16.msra.mxu0 0
        %1364 = vmatprep.subr.bf16.mxu0 0
        %1365 = vmatpush1.bf16.msra.mxu0 0
        %1366 = vmatprep.subr.bf16.mxu0 0
        %1367 = vmatpush1.bf16.msra.mxu0 0
        %1368 = vmatprep.mubr.bf16.mxu0 0
        %1369 = vmatmul.mubr.bf16.gmra.mrb[0].mxu0 %v1102
        %v1370 = vpop.f32.mrb[0].mxu0
        %v1371 = vadd.f32 0.0, %v1370
        %v1372 = vpop.f32.mrb[0].mxu0
        %v1373 = vadd.f32 0.0, %v1372
        %v1374 = vpop.f32.mrb[0].mxu0
        %v1375 = vpop.f32.mrb[0].mxu0
        %1376 = vdwg.mxu0
        %v1377 = vadd.f32 %v1098, %v1330
        %v1378 = vadd.f32 %v1099, %v1332
        %v1379 = vadd.f32 %v1100, %v1371
        %v1380 = vadd.f32 %v1101, %v1373
        %v1381 = vxor.u32 %v1377, 2147483648
        %v1382 = vmul.f32 %v1381, 1.442695
        %v1383 = vpow.pop %v1382
        %v1384 = vadd.f32 %v1383, 1.0
        %v1385 = vrcp.pop %v1384
        %v1386 = vmul.f32 1.0, %v1385
        %v1387 = vxor.u32 %v1378, 2147483648
        %v1388 = vmul.f32 %v1387, 1.442695
        %v1389 = vpow.pop %v1388
        %v1390 = vadd.f32 %v1389, 1.0
        %v1391 = vrcp.pop %v1390
        %v1392 = vmul.f32 1.0, %v1391
        %v1393 = vtanh.pop %v1379
        %v1394 = vxor.u32 %v1380, 2147483648
        %v1395 = vmul.f32 %v1394, 1.442695
        %v1396 = vpow.pop %v1395
        %v1397 = vadd.f32 %v1396, 1.0
        %v1398 = vrcp.pop %v1397
        %v1399 = vmul.f32 1.0, %v1398
        %v1400 = vmul.f32 %v1392, %v1093
        %v1401 = vmul.f32 %v1386, %v1393
        %v1402 = vadd.f32 %v1400, %v1401
        %v1403 = vtanh.pop %v1402
        %v1404 = vmul.f32 %v1399, %v1403
        %s1405 = scalar_lea.vmem [#allocation3], 8
        %1406 = vst [vmem:[%s1405] sm:$0xff] %v1404
        %s1407 = scalar_lea.vmem [#allocation2], 64
        %v1408 = vld [vmem:[%s1407] sm:$0xff]
        %v1409 = vld [vmem:[%s1407 + $0x8] sm:$0xff]
        %v1410 = vld [vmem:[%s1407 + $0x10] sm:$0xff]
        %v1411 = vld [vmem:[%s1407 + $0x18] sm:$0xff]
        %v1412 = vpack.c.bf16 %v1404, %v1404
        %v1413 = vld [vmem:[#allocation13] sm:$0xff]
        %v1414 = vld [vmem:[#allocation13 + $0x8] sm:$0xff]
        %v1415 = vld [vmem:[#allocation13 + $0x10] sm:$0xff]
        %v1416 = vld [vmem:[#allocation13 + $0x18] sm:$0xff]
        %v1417 = vld [vmem:[#allocation13 + $0x20] sm:$0xff]
        %v1418 = vld [vmem:[#allocation13 + $0x28] sm:$0xff]
        %v1419 = vld [vmem:[#allocation13 + $0x30] sm:$0xff]
        %v1420 = vld [vmem:[#allocation13 + $0x38] sm:$0xff]
        %v1421 = vld [vmem:[#allocation13 + $0x40] sm:$0xff]
        %v1422 = vld [vmem:[#allocation13 + $0x48] sm:$0xff]
        %v1423 = vld [vmem:[#allocation13 + $0x50] sm:$0xff]
        %v1424 = vld [vmem:[#allocation13 + $0x58] sm:$0xff]
        %v1425 = vld [vmem:[#allocation13 + $0x60] sm:$0xff]
        %v1426 = vld [vmem:[#allocation13 + $0x68] sm:$0xff]
        %v1427 = vld [vmem:[#allocation13 + $0x70] sm:$0xff]
        %v1428 = vld [vmem:[#allocation13 + $0x78] sm:$0xff]
        %v1429 = vld [vmem:[#allocation13 + $0x80] sm:$0xff]
        %v1430 = vld [vmem:[#allocation13 + $0x88] sm:$0xff]
        %v1431 = vld [vmem:[#allocation13 + $0x90] sm:$0xff]
        %v1432 = vld [vmem:[#allocation13 + $0x98] sm:$0xff]
        %v1433 = vld [vmem:[#allocation13 + $0xa0] sm:$0xff]
        %v1434 = vld [vmem:[#allocation13 + $0xa8] sm:$0xff]
        %v1435 = vld [vmem:[#allocation13 + $0xb0] sm:$0xff]
        %v1436 = vld [vmem:[#allocation13 + $0xb8] sm:$0xff]
        %v1437 = vld [vmem:[#allocation13 + $0xc0] sm:$0xff]
        %v1438 = vld [vmem:[#allocation13 + $0xc8] sm:$0xff]
        %v1439 = vld [vmem:[#allocation13 + $0xd0] sm:$0xff]
        %v1440 = vld [vmem:[#allocation13 + $0xd8] sm:$0xff]
        %v1441 = vld [vmem:[#allocation13 + $0xe0] sm:$0xff]
        %v1442 = vld [vmem:[#allocation13 + $0xe8] sm:$0xff]
        %v1443 = vld [vmem:[#allocation13 + $0xf0] sm:$0xff]
        %v1444 = vld [vmem:[#allocation13 + $0xf8] sm:$0xff]
        %v1477 = vunpack.c.l.b16 %v1413
        %v1478 = vunpack.c.h.b16 %v1413
        %v1479 = vunpack.c.l.b16 %v1414
        %v1480 = vunpack.c.h.b16 %v1414
        %v1481 = vunpack.c.l.b16 %v1415
        %v1482 = vunpack.c.h.b16 %v1415
        %v1483 = vunpack.c.l.b16 %v1416
        %v1484 = vunpack.c.h.b16 %v1416
        %v1485 = vunpack.c.l.b16 %v1417
        %v1486 = vunpack.c.h.b16 %v1417
        %v1487 = vunpack.c.l.b16 %v1418
        %v1488 = vunpack.c.h.b16 %v1418
        %v1489 = vunpack.c.l.b16 %v1419
        %v1490 = vunpack.c.h.b16 %v1419
        %v1491 = vunpack.c.l.b16 %v1420
        %v1492 = vunpack.c.h.b16 %v1420
        %v1493 = vunpack.c.l.b16 %v1421
        %v1494 = vunpack.c.h.b16 %v1421
        %v1495 = vunpack.c.l.b16 %v1422
        %v1496 = vunpack.c.h.b16 %v1422
        %v1497 = vunpack.c.l.b16 %v1423
        %v1498 = vunpack.c.h.b16 %v1423
        %v1499 = vunpack.c.l.b16 %v1424
        %v1500 = vunpack.c.h.b16 %v1424
        %v1501 = vunpack.c.l.b16 %v1425
        %v1502 = vunpack.c.h.b16 %v1425
        %v1503 = vunpack.c.l.b16 %v1426
        %v1504 = vunpack.c.h.b16 %v1426
        %v1505 = vunpack.c.l.b16 %v1427
        %v1506 = vunpack.c.h.b16 %v1427
        %v1507 = vunpack.c.l.b16 %v1428
        %v1508 = vunpack.c.h.b16 %v1428
        %v1509 = vunpack.c.l.b16 %v1429
        %v1510 = vunpack.c.h.b16 %v1429
        %v1511 = vunpack.c.l.b16 %v1430
        %v1512 = vunpack.c.h.b16 %v1430
        %v1513 = vunpack.c.l.b16 %v1431
        %v1514 = vunpack.c.h.b16 %v1431
        %v1515 = vunpack.c.l.b16 %v1432
        %v1516 = vunpack.c.h.b16 %v1432
        %v1517 = vunpack.c.l.b16 %v1433
        %v1518 = vunpack.c.h.b16 %v1433
        %v1519 = vunpack.c.l.b16 %v1434
        %v1520 = vunpack.c.h.b16 %v1434
        %v1521 = vunpack.c.l.b16 %v1435
        %v1522 = vunpack.c.h.b16 %v1435
        %v1523 = vunpack.c.l.b16 %v1436
        %v1524 = vunpack.c.h.b16 %v1436
        %v1525 = vunpack.c.l.b16 %v1437
        %v1526 = vunpack.c.h.b16 %v1437
        %v1527 = vunpack.c.l.b16 %v1438
        %v1528 = vunpack.c.h.b16 %v1438
        %v1529 = vunpack.c.l.b16 %v1439
        %v1530 = vunpack.c.h.b16 %v1439
        %v1531 = vunpack.c.l.b16 %v1440
        %v1532 = vunpack.c.h.b16 %v1440
        %v1533 = vunpack.c.l.b16 %v1441
        %v1534 = vunpack.c.h.b16 %v1441
        %v1535 = vunpack.c.l.b16 %v1442
        %v1536 = vunpack.c.h.b16 %v1442
        %v1537 = vunpack.c.l.b16 %v1443
        %v1538 = vunpack.c.h.b16 %v1443
        %v1539 = vunpack.c.l.b16 %v1444
        %v1540 = vunpack.c.h.b16 %v1444
        %v1541 = vpack.c.b16 %v1481, %v1477
        %v1542 = vpack.c.b16 %v1482, %v1478
        %v1543 = vpack.c.b16 %v1483, %v1479
        %v1544 = vpack.c.b16 %v1484, %v1480
        %v1545 = vpack.c.b16 %v1489, %v1485
        %v1546 = vpack.c.b16 %v1490, %v1486
        %v1547 = vpack.c.b16 %v1491, %v1487
        %v1548 = vpack.c.b16 %v1492, %v1488
        %v1549 = vpack.c.b16 %v1497, %v1493
        %v1550 = vpack.c.b16 %v1498, %v1494
        %v1551 = vpack.c.b16 %v1499, %v1495
        %v1552 = vpack.c.b16 %v1500, %v1496
        %v1553 = vpack.c.b16 %v1505, %v1501
        %v1554 = vpack.c.b16 %v1506, %v1502
        %v1555 = vpack.c.b16 %v1507, %v1503
        %v1556 = vpack.c.b16 %v1508, %v1504
        %v1557 = vpack.c.b16 %v1513, %v1509
        %v1558 = vpack.c.b16 %v1514, %v1510
        %v1559 = vpack.c.b16 %v1515, %v1511
        %v1560 = vpack.c.b16 %v1516, %v1512
        %v1561 = vpack.c.b16 %v1521, %v1517
        %v1562 = vpack.c.b16 %v1522, %v1518
        %v1563 = vpack.c.b16 %v1523, %v1519
        %v1564 = vpack.c.b16 %v1524, %v1520
        %v1565 = vpack.c.b16 %v1529, %v1525
        %v1566 = vpack.c.b16 %v1530, %v1526
        %v1567 = vpack.c.b16 %v1531, %v1527
        %v1568 = vpack.c.b16 %v1532, %v1528
        %v1569 = vpack.c.b16 %v1537, %v1533
        %v1570 = vpack.c.b16 %v1538, %v1534
        %v1571 = vpack.c.b16 %v1539, %v1535
        %v1572 = vpack.c.b16 %v1540, %v1536
        %1605 = vmatprep.subr.bf16.mxu0 %v1542
        %1606 = vmatpush1.bf16.msra.mxu0 %v1541
        %1607 = vmatprep.subr.bf16.mxu0 %v1546
        %1608 = vmatpush1.bf16.msra.mxu0 %v1545
        %1609 = vmatprep.subr.bf16.mxu0 %v1550
        %1610 = vmatpush1.bf16.msra.mxu0 %v1549
        %1611 = vmatprep.subr.bf16.mxu0 %v1554
        %1612 = vmatpush1.bf16.msra.mxu0 %v1553
        %1613 = vmatprep.subr.bf16.mxu0 %v1558
        %1614 = vmatpush1.bf16.msra.mxu0 %v1557
        %1615 = vmatprep.subr.bf16.mxu0 %v1562
        %1616 = vmatpush1.bf16.msra.mxu0 %v1561
        %1617 = vmatprep.subr.bf16.mxu0 %v1566
        %1618 = vmatpush1.bf16.msra.mxu0 %v1565
        %1619 = vmatprep.subr.bf16.mxu0 %v1570
        %1620 = vmatpush1.bf16.msra.mxu0 %v1569
        %1621 = vmatprep.subr.bf16.mxu0 0
        %1622 = vmatpush1.bf16.msra.mxu0 0
        %1623 = vmatprep.subr.bf16.mxu0 0
        %1624 = vmatpush1.bf16.msra.mxu0 0
        %1625 = vmatprep.subr.bf16.mxu0 0
        %1626 = vmatpush1.bf16.msra.mxu0 0
        %1627 = vmatprep.subr.bf16.mxu0 0
        %1628 = vmatpush1.bf16.msra.mxu0 0
        %1629 = vmatprep.subr.bf16.mxu0 0
        %1630 = vmatpush1.bf16.msra.mxu0 0
        %1631 = vmatprep.subr.bf16.mxu0 0
        %1632 = vmatpush1.bf16.msra.mxu0 0
        %1633 = vmatprep.subr.bf16.mxu0 0
        %1634 = vmatpush1.bf16.msra.mxu0 0
        %1635 = vmatprep.subr.bf16.mxu0 0
        %1636 = vmatpush1.bf16.msra.mxu0 0
        %1637 = vmatprep.mubr.bf16.mxu0 0
        %1638 = vmatmul.mubr.bf16.gmra.mrb[0].mxu0 %v1412
        %v1639 = vpop.f32.mrb[0].mxu0
        %v1640 = vadd.f32 0.0, %v1639
        %v1641 = vpop.f32.mrb[0].mxu0
        %v1642 = vadd.f32 0.0, %v1641
        %v1643 = vpop.f32.mrb[0].mxu0
        %v1644 = vpop.f32.mrb[0].mxu0
        %1645 = vdwg.mxu0
        %1646 = vmatprep.subr.bf16.mxu0 %v1544
        %1647 = vmatpush1.bf16.msra.mxu0 %v1543
        %1648 = vmatprep.subr.bf16.mxu0 %v1548
        %1649 = vmatpush1.bf16.msra.mxu0 %v1547
        %1650 = vmatprep.subr.bf16.mxu0 %v1552
        %1651 = vmatpush1.bf16.msra.mxu0 %v1551
        %1652 = vmatprep.subr.bf16.mxu0 %v1556
        %1653 = vmatpush1.bf16.msra.mxu0 %v1555
        %1654 = vmatprep.subr.bf16.mxu0 %v1560
        %1655 = vmatpush1.bf16.msra.mxu0 %v1559
        %1656 = vmatprep.subr.bf16.mxu0 %v1564
        %1657 = vmatpush1.bf16.msra.mxu0 %v1563
        %1658 = vmatprep.subr.bf16.mxu0 %v1568
        %1659 = vmatpush1.bf16.msra.mxu0 %v1567
        %1660 = vmatprep.subr.bf16.mxu0 %v1572
        %1661 = vmatpush1.bf16.msra.mxu0 %v1571
        %1662 = vmatprep.subr.bf16.mxu0 0
        %1663 = vmatpush1.bf16.msra.mxu0 0
        %1664 = vmatprep.subr.bf16.mxu0 0
        %1665 = vmatpush1.bf16.msra.mxu0 0
        %1666 = vmatprep.subr.bf16.mxu0 0
        %1667 = vmatpush1.bf16.msra.mxu0 0
        %1668 = vmatprep.subr.bf16.mxu0 0
        %1669 = vmatpush1.bf16.msra.mxu0 0
        %1670 = vmatprep.subr.bf16.mxu0 0
        %1671 = vmatpush1.bf16.msra.mxu0 0
        %1672 = vmatprep.subr.bf16.mxu0 0
        %1673 = vmatpush1.bf16.msra.mxu0 0
        %1674 = vmatprep.subr.bf16.mxu0 0
        %1675 = vmatpush1.bf16.msra.mxu0 0
        %1676 = vmatprep.subr.bf16.mxu0 0
        %1677 = vmatpush1.bf16.msra.mxu0 0
        %1678 = vmatprep.mubr.bf16.mxu0 0
        %1679 = vmatmul.mubr.bf16.gmra.mrb[0].mxu0 %v1412
        %v1680 = vpop.f32.mrb[0].mxu0
        %v1681 = vadd.f32 0.0, %v1680
        %v1682 = vpop.f32.mrb[0].mxu0
        %v1683 = vadd.f32 0.0, %v1682
        %v1684 = vpop.f32.mrb[0].mxu0
        %v1685 = vpop.f32.mrb[0].mxu0
        %1686 = vdwg.mxu0
        %v1687 = vadd.f32 %v1408, %v1640
        %v1688 = vadd.f32 %v1409, %v1642
        %v1689 = vadd.f32 %v1410, %v1681
        %v1690 = vadd.f32 %v1411, %v1683
        %v1691 = vxor.u32 %v1687, 2147483648
        %v1692 = vmul.f32 %v1691, 1.442695
        %v1693 = vpow.pop %v1692
        %v1694 = vadd.f32 %v1693, 1.0
        %v1695 = vrcp.pop %v1694
        %v1696 = vmul.f32 1.0, %v1695
        %v1697 = vxor.u32 %v1688, 2147483648
        %v1698 = vmul.f32 %v1697, 1.442695
        %v1699 = vpow.pop %v1698
        %v1700 = vadd.f32 %v1699, 1.0
        %v1701 = vrcp.pop %v1700
        %v1702 = vmul.f32 1.0, %v1701
        %v1703 = vtanh.pop %v1689
        %v1704 = vxor.u32 %v1690, 2147483648
        %v1705 = vmul.f32 %v1704, 1.442695
        %v1706 = vpow.pop %v1705
        %v1707 = vadd.f32 %v1706, 1.0
        %v1708 = vrcp.pop %v1707
        %v1709 = vmul.f32 1.0, %v1708
        %v1710 = vmul.f32 %v1702, %v1402
        %v1711 = vmul.f32 %v1696, %v1703
        %v1712 = vadd.f32 %v1710, %v1711
        %v1713 = vtanh.pop %v1712
        %v1714 = vmul.f32 %v1709, %v1713
        %s1715 = scalar_lea.vmem [#allocation3], 16
        %1716 = vst [vmem:[%s1715] sm:$0xff] %v1714
        %s1717 = scalar_lea.vmem [#allocation2], 96
        %v1718 = vld [vmem:[%s1717] sm:$0xff]
        %v1719 = vld [vmem:[%s1717 + $0x8] sm:$0xff]
        %v1720 = vld [vmem:[%s1717 + $0x10] sm:$0xff]
        %v1721 = vld [vmem:[%s1717 + $0x18] sm:$0xff]
        %v1722 = vpack.c.bf16 %v1714, %v1714
        %v1723 = vld [vmem:[#allocation13] sm:$0xff]
        %v1724 = vld [vmem:[#allocation13 + $0x8] sm:$0xff]
        %v1725 = vld [vmem:[#allocation13 + $0x10] sm:$0xff]
        %v1726 = vld [vmem:[#allocation13 + $0x18] sm:$0xff]
        %v1727 = vld [vmem:[#allocation13 + $0x20] sm:$0xff]
        %v1728 = vld [vmem:[#allocation13 + $0x28] sm:$0xff]
        %v1729 = vld [vmem:[#allocation13 + $0x30] sm:$0xff]
        %v1730 = vld [vmem:[#allocation13 + $0x38] sm:$0xff]
        %v1731 = vld [vmem:[#allocation13 + $0x40] sm:$0xff]
        %v1732 = vld [vmem:[#allocation13 + $0x48] sm:$0xff]
        %v1733 = vld [vmem:[#allocation13 + $0x50] sm:$0xff]
        %v1734 = vld [vmem:[#allocation13 + $0x58] sm:$0xff]
        %v1735 = vld [vmem:[#allocation13 + $0x60] sm:$0xff]
        %v1736 = vld [vmem:[#allocation13 + $0x68] sm:$0xff]
        %v1737 = vld [vmem:[#allocation13 + $0x70] sm:$0xff]
        %v1738 = vld [vmem:[#allocation13 + $0x78] sm:$0xff]
        %v1739 = vld [vmem:[#allocation13 + $0x80] sm:$0xff]
        %v1740 = vld [vmem:[#allocation13 + $0x88] sm:$0xff]
        %v1741 = vld [vmem:[#allocation13 + $0x90] sm:$0xff]
        %v1742 = vld [vmem:[#allocation13 + $0x98] sm:$0xff]
        %v1743 = vld [vmem:[#allocation13 + $0xa0] sm:$0xff]
        %v1744 = vld [vmem:[#allocation13 + $0xa8] sm:$0xff]
        %v1745 = vld [vmem:[#allocation13 + $0xb0] sm:$0xff]
        %v1746 = vld [vmem:[#allocation13 + $0xb8] sm:$0xff]
        %v1747 = vld [vmem:[#allocation13 + $0xc0] sm:$0xff]
        %v1748 = vld [vmem:[#allocation13 + $0xc8] sm:$0xff]
        %v1749 = vld [vmem:[#allocation13 + $0xd0] sm:$0xff]
        %v1750 = vld [vmem:[#allocation13 + $0xd8] sm:$0xff]
        %v1751 = vld [vmem:[#allocation13 + $0xe0] sm:$0xff]
        %v1752 = vld [vmem:[#allocation13 + $0xe8] sm:$0xff]
        %v1753 = vld [vmem:[#allocation13 + $0xf0] sm:$0xff]
        %v1754 = vld [vmem:[#allocation13 + $0xf8] sm:$0xff]
        %v1787 = vunpack.c.l.b16 %v1723
        %v1788 = vunpack.c.h.b16 %v1723
        %v1789 = vunpack.c.l.b16 %v1724
        %v1790 = vunpack.c.h.b16 %v1724
        %v1791 = vunpack.c.l.b16 %v1725
        %v1792 = vunpack.c.h.b16 %v1725
        %v1793 = vunpack.c.l.b16 %v1726
        %v1794 = vunpack.c.h.b16 %v1726
        %v1795 = vunpack.c.l.b16 %v1727
        %v1796 = vunpack.c.h.b16 %v1727
        %v1797 = vunpack.c.l.b16 %v1728
        %v1798 = vunpack.c.h.b16 %v1728
        %v1799 = vunpack.c.l.b16 %v1729
        %v1800 = vunpack.c.h.b16 %v1729
        %v1801 = vunpack.c.l.b16 %v1730
        %v1802 = vunpack.c.h.b16 %v1730
        %v1803 = vunpack.c.l.b16 %v1731
        %v1804 = vunpack.c.h.b16 %v1731
        %v1805 = vunpack.c.l.b16 %v1732
        %v1806 = vunpack.c.h.b16 %v1732
        %v1807 = vunpack.c.l.b16 %v1733
        %v1808 = vunpack.c.h.b16 %v1733
        %v1809 = vunpack.c.l.b16 %v1734
        %v1810 = vunpack.c.h.b16 %v1734
        %v1811 = vunpack.c.l.b16 %v1735
        %v1812 = vunpack.c.h.b16 %v1735
        %v1813 = vunpack.c.l.b16 %v1736
        %v1814 = vunpack.c.h.b16 %v1736
        %v1815 = vunpack.c.l.b16 %v1737
        %v1816 = vunpack.c.h.b16 %v1737
        %v1817 = vunpack.c.l.b16 %v1738
        %v1818 = vunpack.c.h.b16 %v1738
        %v1819 = vunpack.c.l.b16 %v1739
        %v1820 = vunpack.c.h.b16 %v1739
        %v1821 = vunpack.c.l.b16 %v1740
        %v1822 = vunpack.c.h.b16 %v1740
        %v1823 = vunpack.c.l.b16 %v1741
        %v1824 = vunpack.c.h.b16 %v1741
        %v1825 = vunpack.c.l.b16 %v1742
        %v1826 = vunpack.c.h.b16 %v1742
        %v1827 = vunpack.c.l.b16 %v1743
        %v1828 = vunpack.c.h.b16 %v1743
        %v1829 = vunpack.c.l.b16 %v1744
        %v1830 = vunpack.c.h.b16 %v1744
        %v1831 = vunpack.c.l.b16 %v1745
        %v1832 = vunpack.c.h.b16 %v1745
        %v1833 = vunpack.c.l.b16 %v1746
        %v1834 = vunpack.c.h.b16 %v1746
        %v1835 = vunpack.c.l.b16 %v1747
        %v1836 = vunpack.c.h.b16 %v1747
        %v1837 = vunpack.c.l.b16 %v1748
        %v1838 = vunpack.c.h.b16 %v1748
        %v1839 = vunpack.c.l.b16 %v1749
        %v1840 = vunpack.c.h.b16 %v1749
        %v1841 = vunpack.c.l.b16 %v1750
        %v1842 = vunpack.c.h.b16 %v1750
        %v1843 = vunpack.c.l.b16 %v1751
        %v1844 = vunpack.c.h.b16 %v1751
        %v1845 = vunpack.c.l.b16 %v1752
        %v1846 = vunpack.c.h.b16 %v1752
        %v1847 = vunpack.c.l.b16 %v1753
        %v1848 = vunpack.c.h.b16 %v1753
        %v1849 = vunpack.c.l.b16 %v1754
        %v1850 = vunpack.c.h.b16 %v1754
        %v1851 = vpack.c.b16 %v1791, %v1787
        %v1852 = vpack.c.b16 %v1792, %v1788
        %v1853 = vpack.c.b16 %v1793, %v1789
        %v1854 = vpack.c.b16 %v1794, %v1790
        %v1855 = vpack.c.b16 %v1799, %v1795
        %v1856 = vpack.c.b16 %v1800, %v1796
        %v1857 = vpack.c.b16 %v1801, %v1797
        %v1858 = vpack.c.b16 %v1802, %v1798
        %v1859 = vpack.c.b16 %v1807, %v1803
        %v1860 = vpack.c.b16 %v1808, %v1804
        %v1861 = vpack.c.b16 %v1809, %v1805
        %v1862 = vpack.c.b16 %v1810, %v1806
        %v1863 = vpack.c.b16 %v1815, %v1811
        %v1864 = vpack.c.b16 %v1816, %v1812
        %v1865 = vpack.c.b16 %v1817, %v1813
        %v1866 = vpack.c.b16 %v1818, %v1814
        %v1867 = vpack.c.b16 %v1823, %v1819
        %v1868 = vpack.c.b16 %v1824, %v1820
        %v1869 = vpack.c.b16 %v1825, %v1821
        %v1870 = vpack.c.b16 %v1826, %v1822
        %v1871 = vpack.c.b16 %v1831, %v1827
        %v1872 = vpack.c.b16 %v1832, %v1828
        %v1873 = vpack.c.b16 %v1833, %v1829
        %v1874 = vpack.c.b16 %v1834, %v1830
        %v1875 = vpack.c.b16 %v1839, %v1835
        %v1876 = vpack.c.b16 %v1840, %v1836
        %v1877 = vpack.c.b16 %v1841, %v1837
        %v1878 = vpack.c.b16 %v1842, %v1838
        %v1879 = vpack.c.b16 %v1847, %v1843
        %v1880 = vpack.c.b16 %v1848, %v1844
        %v1881 = vpack.c.b16 %v1849, %v1845
        %v1882 = vpack.c.b16 %v1850, %v1846
        %1915 = vmatprep.subr.bf16.mxu0 %v1852
        %1916 = vmatpush1.bf16.msra.mxu0 %v1851
        %1917 = vmatprep.subr.bf16.mxu0 %v1856
        %1918 = vmatpush1.bf16.msra.mxu0 %v1855
        %1919 = vmatprep.subr.bf16.mxu0 %v1860
        %1920 = vmatpush1.bf16.msra.mxu0 %v1859
        %1921 = vmatprep.subr.bf16.mxu0 %v1864
        %1922 = vmatpush1.bf16.msra.mxu0 %v1863
        %1923 = vmatprep.subr.bf16.mxu0 %v1868
        %1924 = vmatpush1.bf16.msra.mxu0 %v1867
        %1925 = vmatprep.subr.bf16.mxu0 %v1872
        %1926 = vmatpush1.bf16.msra.mxu0 %v1871
        %1927 = vmatprep.subr.bf16.mxu0 %v1876
        %1928 = vmatpush1.bf16.msra.mxu0 %v1875
        %1929 = vmatprep.subr.bf16.mxu0 %v1880
        %1930 = vmatpush1.bf16.msra.mxu0 %v1879
        %1931 = vmatprep.subr.bf16.mxu0 0
        %1932 = vmatpush1.bf16.msra.mxu0 0
        %1933 = vmatprep.subr.bf16.mxu0 0
        %1934 = vmatpush1.bf16.msra.mxu0 0
        %1935 = vmatprep.subr.bf16.mxu0 0
        %1936 = vmatpush1.bf16.msra.mxu0 0
        %1937 = vmatprep.subr.bf16.mxu0 0
        %1938 = vmatpush1.bf16.msra.mxu0 0
        %1939 = vmatprep.subr.bf16.mxu0 0
        %1940 = vmatpush1.bf16.msra.mxu0 0
        %1941 = vmatprep.subr.bf16.mxu0 0
        %1942 = vmatpush1.bf16.msra.mxu0 0
        %1943 = vmatprep.subr.bf16.mxu0 0
        %1944 = vmatpush1.bf16.msra.mxu0 0
        %1945 = vmatprep.subr.bf16.mxu0 0
        %1946 = vmatpush1.bf16.msra.mxu0 0
        %1947 = vmatprep.mubr.bf16.mxu0 0
        %1948 = vmatmul.mubr.bf16.gmra.mrb[0].mxu0 %v1722
        %v1949 = vpop.f32.mrb[0].mxu0
        %v1950 = vadd.f32 0.0, %v1949
        %v1951 = vpop.f32.mrb[0].mxu0
        %v1952 = vadd.f32 0.0, %v1951
        %v1953 = vpop.f32.mrb[0].mxu0
        %v1954 = vpop.f32.mrb[0].mxu0
        %1955 = vdwg.mxu0
        %1956 = vmatprep.subr.bf16.mxu0 %v1854
        %1957 = vmatpush1.bf16.msra.mxu0 %v1853
        %1958 = vmatprep.subr.bf16.mxu0 %v1858
        %1959 = vmatpush1.bf16.msra.mxu0 %v1857
        %1960 = vmatprep.subr.bf16.mxu0 %v1862
        %1961 = vmatpush1.bf16.msra.mxu0 %v1861
        %1962 = vmatprep.subr.bf16.mxu0 %v1866
        %1963 = vmatpush1.bf16.msra.mxu0 %v1865
        %1964 = vmatprep.subr.bf16.mxu0 %v1870
        %1965 = vmatpush1.bf16.msra.mxu0 %v1869
        %1966 = vmatprep.subr.bf16.mxu0 %v1874
        %1967 = vmatpush1.bf16.msra.mxu0 %v1873
        %1968 = vmatprep.subr.bf16.mxu0 %v1878
        %1969 = vmatpush1.bf16.msra.mxu0 %v1877
        %1970 = vmatprep.subr.bf16.mxu0 %v1882
        %1971 = vmatpush1.bf16.msra.mxu0 %v1881
        %1972 = vmatprep.subr.bf16.mxu0 0
        %1973 = vmatpush1.bf16.msra.mxu0 0
        %1974 = vmatprep.subr.bf16.mxu0 0
        %1975 = vmatpush1.bf16.msra.mxu0 0
        %1976 = vmatprep.subr.bf16.mxu0 0
        %1977 = vmatpush1.bf16.msra.mxu0 0
        %1978 = vmatprep.subr.bf16.mxu0 0
        %1979 = vmatpush1.bf16.msra.mxu0 0
        %1980 = vmatprep.subr.bf16.mxu0 0
        %1981 = vmatpush1.bf16.msra.mxu0 0
        %1982 = vmatprep.subr.bf16.mxu0 0
        %1983 = vmatpush1.bf16.msra.mxu0 0
        %1984 = vmatprep.subr.bf16.mxu0 0
        %1985 = vmatpush1.bf16.msra.mxu0 0
        %1986 = vmatprep.subr.bf16.mxu0 0
        %1987 = vmatpush1.bf16.msra.mxu0 0
        %1988 = vmatprep.mubr.bf16.mxu0 0
        %1989 = vmatmul.mubr.bf16.gmra.mrb[0].mxu0 %v1722
        %v1990 = vpop.f32.mrb[0].mxu0
        %v1991 = vadd.f32 0.0, %v1990
        %v1992 = vpop.f32.mrb[0].mxu0
        %v1993 = vadd.f32 0.0, %v1992
        %v1994 = vpop.f32.mrb[0].mxu0
        %v1995 = vpop.f32.mrb[0].mxu0
        %1996 = vdwg.mxu0
        %v1997 = vadd.f32 %v1718, %v1950
        %v1998 = vadd.f32 %v1719, %v1952
        %v1999 = vadd.f32 %v1720, %v1991
        %v2000 = vadd.f32 %v1721, %v1993
        %v2001 = vxor.u32 %v1997, 2147483648
        %v2002 = vmul.f32 %v2001, 1.442695
        %v2003 = vpow.pop %v2002
        %v2004 = vadd.f32 %v2003, 1.0
        %v2005 = vrcp.pop %v2004
        %v2006 = vmul.f32 1.0, %v2005
        %v2007 = vxor.u32 %v1998, 2147483648
        %v2008 = vmul.f32 %v2007, 1.442695
        %v2009 = vpow.pop %v2008
        %v2010 = vadd.f32 %v2009, 1.0
        %v2011 = vrcp.pop %v2010
        %v2012 = vmul.f32 1.0, %v2011
        %v2013 = vtanh.pop %v1999
        %v2014 = vxor.u32 %v2000, 2147483648
        %v2015 = vmul.f32 %v2014, 1.442695
        %v2016 = vpow.pop %v2015
        %v2017 = vadd.f32 %v2016, 1.0
        %v2018 = vrcp.pop %v2017
        %v2019 = vmul.f32 1.0, %v2018
        %v2020 = vmul.f32 %v2012, %v1712
        %v2021 = vmul.f32 %v2006, %v2013
        %v2022 = vadd.f32 %v2020, %v2021
        %v2023 = vtanh.pop %v2022
        %v2024 = vmul.f32 %v2019, %v2023
        %s2025 = scalar_lea.vmem [#allocation3], 24
        %2026 = vst [vmem:[%s2025] sm:$0xff] %v2024
        %2027 = vst [vmem:[#allocation4] sm:$0xff] %v2024
        %2028 = vst [vmem:[#allocation5] sm:$0xff] %v2022
        %v2029 = vld [vmem:[#allocation3] sm:$0xff]
        %v2030 = vld [vmem:[#allocation3 + $0x8] sm:$0xff]
        %v2031 = vld [vmem:[#allocation3 + $0x10] sm:$0xff]
        %v2032 = vld [vmem:[#allocation3 + $0x18] sm:$0xff]
        %v2033 = vpack.c.bf16 %v2030, %v2029
        %v2034 = vpack.c.bf16 %v2032, %v2031
        %v2035 = vld [vmem:[#allocation14] sm:$0xff]
        %v2036 = vld [vmem:[#allocation14 + $0x8] sm:$0xff]
        %v2037 = vld [vmem:[#allocation14 + $0x10] sm:$0xff]
        %v2038 = vld [vmem:[#allocation14 + $0x18] sm:$0xff]
        %v2039 = vld [vmem:[#allocation14 + $0x20] sm:$0xff]
        %v2040 = vld [vmem:[#allocation14 + $0x28] sm:$0xff]
        %v2041 = vld [vmem:[#allocation14 + $0x30] sm:$0xff]
        %v2042 = vld [vmem:[#allocation14 + $0x38] sm:$0xff]
        %v2043 = vld [vmem:[#allocation14 + $0x40] sm:$0xff]
        %v2044 = vld [vmem:[#allocation14 + $0x48] sm:$0xff]
        %v2045 = vld [vmem:[#allocation14 + $0x50] sm:$0xff]
        %v2046 = vld [vmem:[#allocation14 + $0x58] sm:$0xff]
        %v2047 = vld [vmem:[#allocation14 + $0x60] sm:$0xff]
        %v2048 = vld [vmem:[#allocation14 + $0x68] sm:$0xff]
        %v2049 = vld [vmem:[#allocation14 + $0x70] sm:$0xff]
        %v2050 = vld [vmem:[#allocation14 + $0x78] sm:$0xff]
        %v2051 = vld [vmem:[#allocation14 + $0x80] sm:$0xff]
        %v2052 = vld [vmem:[#allocation14 + $0x88] sm:$0xff]
        %v2053 = vld [vmem:[#allocation14 + $0x90] sm:$0xff]
        %v2054 = vld [vmem:[#allocation14 + $0x98] sm:$0xff]
        %v2055 = vld [vmem:[#allocation14 + $0xa0] sm:$0xff]
        %v2056 = vld [vmem:[#allocation14 + $0xa8] sm:$0xff]
        %v2057 = vld [vmem:[#allocation14 + $0xb0] sm:$0xff]
        %v2058 = vld [vmem:[#allocation14 + $0xb8] sm:$0xff]
        %v2059 = vld [vmem:[#allocation14 + $0xc0] sm:$0xff]
        %v2060 = vld [vmem:[#allocation14 + $0xc8] sm:$0xff]
        %v2061 = vld [vmem:[#allocation14 + $0xd0] sm:$0xff]
        %v2062 = vld [vmem:[#allocation14 + $0xd8] sm:$0xff]
        %v2063 = vld [vmem:[#allocation14 + $0xe0] sm:$0xff]
        %v2064 = vld [vmem:[#allocation14 + $0xe8] sm:$0xff]
        %v2065 = vld [vmem:[#allocation14 + $0xf0] sm:$0xff]
        %v2066 = vld [vmem:[#allocation14 + $0xf8] sm:$0xff]
        %v2067 = vld [vmem:[%s6] sm:$0xf]
        %v2069 = vlaneseq
        %v2070 = vshrl.u32 %v2069, 7
        %v2071 = vsub.s32 0, %v2070
        %v2072 = vrot.slane %v2067, %v2071
        %v2073 = vlaneseq
        %v2074 = vshrl.u32 %v2073, 7
        %v2075 = vsub.s32 1, %v2074
        %v2076 = vrot.slane %v2067, %v2075
        %v2077 = vlaneseq
        %v2078 = vshrl.u32 %v2077, 7
        %v2079 = vsub.s32 2, %v2078
        %v2080 = vrot.slane %v2067, %v2079
        %v2081 = vlaneseq
        %v2082 = vshrl.u32 %v2081, 7
        %v2083 = vsub.s32 3, %v2082
        %v2084 = vrot.slane %v2067, %v2083
        %v2121 = vunpack.c.l.b16 %v2035
        %v2122 = vunpack.c.h.b16 %v2035
        %v2123 = vunpack.c.l.b16 %v2036
        %v2124 = vunpack.c.h.b16 %v2036
        %v2125 = vunpack.c.l.b16 %v2037
        %v2126 = vunpack.c.h.b16 %v2037
        %v2127 = vunpack.c.l.b16 %v2038
        %v2128 = vunpack.c.h.b16 %v2038
        %v2129 = vunpack.c.l.b16 %v2039
        %v2130 = vunpack.c.h.b16 %v2039
        %v2131 = vunpack.c.l.b16 %v2040
        %v2132 = vunpack.c.h.b16 %v2040
        %v2133 = vunpack.c.l.b16 %v2041
        %v2134 = vunpack.c.h.b16 %v2041
        %v2135 = vunpack.c.l.b16 %v2042
        %v2136 = vunpack.c.h.b16 %v2042
        %v2137 = vunpack.c.l.b16 %v2043
        %v2138 = vunpack.c.h.b16 %v2043
        %v2139 = vunpack.c.l.b16 %v2044
        %v2140 = vunpack.c.h.b16 %v2044
        %v2141 = vunpack.c.l.b16 %v2045
        %v2142 = vunpack.c.h.b16 %v2045
        %v2143 = vunpack.c.l.b16 %v2046
        %v2144 = vunpack.c.h.b16 %v2046
        %v2145 = vunpack.c.l.b16 %v2047
        %v2146 = vunpack.c.h.b16 %v2047
        %v2147 = vunpack.c.l.b16 %v2048
        %v2148 = vunpack.c.h.b16 %v2048
        %v2149 = vunpack.c.l.b16 %v2049
        %v2150 = vunpack.c.h.b16 %v2049
        %v2151 = vunpack.c.l.b16 %v2050
        %v2152 = vunpack.c.h.b16 %v2050
        %v2153 = vunpack.c.l.b16 %v2051
        %v2154 = vunpack.c.h.b16 %v2051
        %v2155 = vunpack.c.l.b16 %v2052
        %v2156 = vunpack.c.h.b16 %v2052
        %v2157 = vunpack.c.l.b16 %v2053
        %v2158 = vunpack.c.h.b16 %v2053
        %v2159 = vunpack.c.l.b16 %v2054
        %v2160 = vunpack.c.h.b16 %v2054
        %v2161 = vunpack.c.l.b16 %v2055
        %v2162 = vunpack.c.h.b16 %v2055
        %v2163 = vunpack.c.l.b16 %v2056
        %v2164 = vunpack.c.h.b16 %v2056
        %v2165 = vunpack.c.l.b16 %v2057
        %v2166 = vunpack.c.h.b16 %v2057
        %v2167 = vunpack.c.l.b16 %v2058
        %v2168 = vunpack.c.h.b16 %v2058
        %v2169 = vunpack.c.l.b16 %v2059
        %v2170 = vunpack.c.h.b16 %v2059
        %v2171 = vunpack.c.l.b16 %v2060
        %v2172 = vunpack.c.h.b16 %v2060
        %v2173 = vunpack.c.l.b16 %v2061
        %v2174 = vunpack.c.h.b16 %v2061
        %v2175 = vunpack.c.l.b16 %v2062
        %v2176 = vunpack.c.h.b16 %v2062
        %v2177 = vunpack.c.l.b16 %v2063
        %v2178 = vunpack.c.h.b16 %v2063
        %v2179 = vunpack.c.l.b16 %v2064
        %v2180 = vunpack.c.h.b16 %v2064
        %v2181 = vunpack.c.l.b16 %v2065
        %v2182 = vunpack.c.h.b16 %v2065
        %v2183 = vunpack.c.l.b16 %v2066
        %v2184 = vunpack.c.h.b16 %v2066
        %v2185 = vpack.c.b16 %v2125, %v2121
        %v2186 = vpack.c.b16 %v2126, %v2122
        %v2187 = vpack.c.b16 %v2127, %v2123
        %v2188 = vpack.c.b16 %v2128, %v2124
        %v2189 = vpack.c.b16 %v2133, %v2129
        %v2190 = vpack.c.b16 %v2134, %v2130
        %v2191 = vpack.c.b16 %v2135, %v2131
        %v2192 = vpack.c.b16 %v2136, %v2132
        %v2193 = vpack.c.b16 %v2141, %v2137
        %v2194 = vpack.c.b16 %v2142, %v2138
        %v2195 = vpack.c.b16 %v2143, %v2139
        %v2196 = vpack.c.b16 %v2144, %v2140
        %v2197 = vpack.c.b16 %v2149, %v2145
        %v2198 = vpack.c.b16 %v2150, %v2146
        %v2199 = vpack.c.b16 %v2151, %v2147
        %v2200 = vpack.c.b16 %v2152, %v2148
        %v2201 = vpack.c.b16 %v2157, %v2153
        %v2202 = vpack.c.b16 %v2158, %v2154
        %v2203 = vpack.c.b16 %v2159, %v2155
        %v2204 = vpack.c.b16 %v2160, %v2156
        %v2205 = vpack.c.b16 %v2165, %v2161
        %v2206 = vpack.c.b16 %v2166, %v2162
        %v2207 = vpack.c.b16 %v2167, %v2163
        %v2208 = vpack.c.b16 %v2168, %v2164
        %v2209 = vpack.c.b16 %v2173, %v2169
        %v2210 = vpack.c.b16 %v2174, %v2170
        %v2211 = vpack.c.b16 %v2175, %v2171
        %v2212 = vpack.c.b16 %v2176, %v2172
        %v2213 = vpack.c.b16 %v2181, %v2177
        %v2214 = vpack.c.b16 %v2182, %v2178
        %v2215 = vpack.c.b16 %v2183, %v2179
        %v2216 = vpack.c.b16 %v2184, %v2180
        %2249 = vmatprep.subr.bf16.mxu0 %v2186
        %2250 = vmatpush1.bf16.msra.mxu0 %v2185
        %2251 = vmatprep.subr.bf16.mxu0 %v2190
        %2252 = vmatpush1.bf16.msra.mxu0 %v2189
        %2253 = vmatprep.subr.bf16.mxu0 %v2194
        %2254 = vmatpush1.bf16.msra.mxu0 %v2193
        %2255 = vmatprep.subr.bf16.mxu0 %v2198
        %2256 = vmatpush1.bf16.msra.mxu0 %v2197
        %2257 = vmatprep.subr.bf16.mxu0 %v2202
        %2258 = vmatpush1.bf16.msra.mxu0 %v2201
        %2259 = vmatprep.subr.bf16.mxu0 %v2206
        %2260 = vmatpush1.bf16.msra.mxu0 %v2205
        %2261 = vmatprep.subr.bf16.mxu0 %v2210
        %2262 = vmatpush1.bf16.msra.mxu0 %v2209
        %2263 = vmatprep.subr.bf16.mxu0 %v2214
        %2264 = vmatpush1.bf16.msra.mxu0 %v2213
        %2265 = vmatprep.subr.bf16.mxu0 0
        %2266 = vmatpush1.bf16.msra.mxu0 0
        %2267 = vmatprep.subr.bf16.mxu0 0
        %2268 = vmatpush1.bf16.msra.mxu0 0
        %2269 = vmatprep.subr.bf16.mxu0 0
        %2270 = vmatpush1.bf16.msra.mxu0 0
        %2271 = vmatprep.subr.bf16.mxu0 0
        %2272 = vmatpush1.bf16.msra.mxu0 0
        %2273 = vmatprep.subr.bf16.mxu0 0
        %2274 = vmatpush1.bf16.msra.mxu0 0
        %2275 = vmatprep.subr.bf16.mxu0 0
        %2276 = vmatpush1.bf16.msra.mxu0 0
        %2277 = vmatprep.subr.bf16.mxu0 0
        %2278 = vmatpush1.bf16.msra.mxu0 0
        %2279 = vmatprep.subr.bf16.mxu0 0
        %2280 = vmatpush1.bf16.msra.mxu0 0
        %2281 = vmatprep.mubr.bf16.mxu0 0
        %2282 = vmatmul.mubr.bf16.gmra.mrb[0].mxu0 %v2033
        %v2283 = vpop.f32.mrb[0].mxu0
        %v2284 = vadd.f32 %v2072, %v2283
        %v2285 = vpop.f32.mrb[0].mxu0
        %v2286 = vadd.f32 %v2076, %v2285
        %v2287 = vpop.f32.mrb[0].mxu0
        %v2288 = vadd.f32 %v2072, %v2287
        %v2289 = vpop.f32.mrb[0].mxu0
        %v2290 = vadd.f32 %v2076, %v2289
        %2291 = vmatprep.mubr.bf16.mxu0 0
        %2292 = vmatmul.mubr.bf16.gmra.mrb[0].mxu0 %v2034
        %v2293 = vpop.f32.mrb[0].mxu0
        %v2294 = vadd.f32 %v2072, %v2293
        %v2295 = vpop.f32.mrb[0].mxu0
        %v2296 = vadd.f32 %v2076, %v2295
        %v2297 = vpop.f32.mrb[0].mxu0
        %v2298 = vadd.f32 %v2072, %v2297
        %v2299 = vpop.f32.mrb[0].mxu0
        %v2300 = vadd.f32 %v2076, %v2299
        %2301 = vdwg.mxu0
        %2302 = vmatprep.subr.bf16.mxu0 %v2188
        %2303 = vmatpush1.bf16.msra.mxu0 %v2187
        %2304 = vmatprep.subr.bf16.mxu0 %v2192
        %2305 = vmatpush1.bf16.msra.mxu0 %v2191
        %2306 = vmatprep.subr.bf16.mxu0 %v2196
        %2307 = vmatpush1.bf16.msra.mxu0 %v2195
        %2308 = vmatprep.subr.bf16.mxu0 %v2200
        %2309 = vmatpush1.bf16.msra.mxu0 %v2199
        %2310 = vmatprep.subr.bf16.mxu0 %v2204
        %2311 = vmatpush1.bf16.msra.mxu0 %v2203
        %2312 = vmatprep.subr.bf16.mxu0 %v2208
        %2313 = vmatpush1.bf16.msra.mxu0 %v2207
        %2314 = vmatprep.subr.bf16.mxu0 %v2212
        %2315 = vmatpush1.bf16.msra.mxu0 %v2211
        %2316 = vmatprep.subr.bf16.mxu0 %v2216
        %2317 = vmatpush1.bf16.msra.mxu0 %v2215
        %2318 = vmatprep.subr.bf16.mxu0 0
        %2319 = vmatpush1.bf16.msra.mxu0 0
        %2320 = vmatprep.subr.bf16.mxu0 0
        %2321 = vmatpush1.bf16.msra.mxu0 0
        %2322 = vmatprep.subr.bf16.mxu0 0
        %2323 = vmatpush1.bf16.msra.mxu0 0
        %2324 = vmatprep.subr.bf16.mxu0 0
        %2325 = vmatpush1.bf16.msra.mxu0 0
        %2326 = vmatprep.subr.bf16.mxu0 0
        %2327 = vmatpush1.bf16.msra.mxu0 0
        %2328 = vmatprep.subr.bf16.mxu0 0
        %2329 = vmatpush1.bf16.msra.mxu0 0
        %2330 = vmatprep.subr.bf16.mxu0 0
        %2331 = vmatpush1.bf16.msra.mxu0 0
        %2332 = vmatprep.subr.bf16.mxu0 0
        %2333 = vmatpush1.bf16.msra.mxu0 0
        %2334 = vmatprep.mubr.bf16.mxu0 0
        %2335 = vmatmul.mubr.bf16.gmra.mrb[0].mxu0 %v2033
        %v2336 = vpop.f32.mrb[0].mxu0
        %v2337 = vadd.f32 %v2080, %v2336
        %v2338 = vpop.f32.mrb[0].mxu0
        %v2339 = vadd.f32 %v2084, %v2338
        %v2340 = vpop.f32.mrb[0].mxu0
        %v2341 = vadd.f32 %v2080, %v2340
        %v2342 = vpop.f32.mrb[0].mxu0
        %v2343 = vadd.f32 %v2084, %v2342
        %2344 = vmatprep.mubr.bf16.mxu0 0
        %2345 = vmatmul.mubr.bf16.gmra.mrb[0].mxu0 %v2034
        %v2346 = vpop.f32.mrb[0].mxu0
        %v2347 = vadd.f32 %v2080, %v2346
        %v2348 = vpop.f32.mrb[0].mxu0
        %v2349 = vadd.f32 %v2084, %v2348
        %v2350 = vpop.f32.mrb[0].mxu0
        %v2351 = vadd.f32 %v2080, %v2350
        %v2352 = vpop.f32.mrb[0].mxu0
        %v2353 = vadd.f32 %v2084, %v2352
        %2354 = vdwg.mxu0
        %2355 = vst [vmem:[#allocation2] sm:$0xff] %v2284
        %2356 = vst [vmem:[#allocation2 + $0x8] sm:$0xff] %v2286
        %2357 = vst [vmem:[#allocation2 + $0x10] sm:$0xff] %v2337
        %2358 = vst [vmem:[#allocation2 + $0x18] sm:$0xff] %v2339
        %2359 = vst [vmem:[#allocation2 + $0x20] sm:$0xff] %v2288
        %2360 = vst [vmem:[#allocation2 + $0x28] sm:$0xff] %v2290
        %2361 = vst [vmem:[#allocation2 + $0x30] sm:$0xff] %v2341
        %2362 = vst [vmem:[#allocation2 + $0x38] sm:$0xff] %v2343
        %2363 = vst [vmem:[#allocation2 + $0x40] sm:$0xff] %v2294
        %2364 = vst [vmem:[#allocation2 + $0x48] sm:$0xff] %v2296
        %2365 = vst [vmem:[#allocation2 + $0x50] sm:$0xff] %v2347
        %2366 = vst [vmem:[#allocation2 + $0x58] sm:$0xff] %v2349
        %2367 = vst [vmem:[#allocation2 + $0x60] sm:$0xff] %v2298
        %2368 = vst [vmem:[#allocation2 + $0x68] sm:$0xff] %v2300
        %2369 = vst [vmem:[#allocation2 + $0x70] sm:$0xff] %v2351
        %2370 = vst [vmem:[#allocation2 + $0x78] sm:$0xff] %v2353
        %v2371 = vld [vmem:[#allocation6] sm:$0xff]
        %v2372 = vld [vmem:[#allocation7] sm:$0xff]
        %v2373 = vld [vmem:[#allocation2] sm:$0xff]
        %v2374 = vld [vmem:[#allocation2 + $0x8] sm:$0xff]
        %v2375 = vld [vmem:[#allocation2 + $0x10] sm:$0xff]
        %v2376 = vld [vmem:[#allocation2 + $0x18] sm:$0xff]
        %v2377 = vpack.c.bf16 %v2371, %v2371
        %v2378 = vld [vmem:[#allocation16] sm:$0xff]
        %v2379 = vld [vmem:[#allocation16 + $0x8] sm:$0xff]
        %v2380 = vld [vmem:[#allocation16 + $0x10] sm:$0xff]
        %v2381 = vld [vmem:[#allocation16 + $0x18] sm:$0xff]
        %v2382 = vld [vmem:[#allocation16 + $0x20] sm:$0xff]
        %v2383 = vld [vmem:[#allocation16 + $0x28] sm:$0xff]
        %v2384 = vld [vmem:[#allocation16 + $0x30] sm:$0xff]
        %v2385 = vld [vmem:[#allocation16 + $0x38] sm:$0xff]
        %v2386 = vld [vmem:[#allocation16 + $0x40] sm:$0xff]
        %v2387 = vld [vmem:[#allocation16 + $0x48] sm:$0xff]
        %v2388 = vld [vmem:[#allocation16 + $0x50] sm:$0xff]
        %v2389 = vld [vmem:[#allocation16 + $0x58] sm:$0xff]
        %v2390 = vld [vmem:[#allocation16 + $0x60] sm:$0xff]
        %v2391 = vld [vmem:[#allocation16 + $0x68] sm:$0xff]
        %v2392 = vld [vmem:[#allocation16 + $0x70] sm:$0xff]
        %v2393 = vld [vmem:[#allocation16 + $0x78] sm:$0xff]
        %v2394 = vld [vmem:[#allocation16 + $0x80] sm:$0xff]
        %v2395 = vld [vmem:[#allocation16 + $0x88] sm:$0xff]
        %v2396 = vld [vmem:[#allocation16 + $0x90] sm:$0xff]
        %v2397 = vld [vmem:[#allocation16 + $0x98] sm:$0xff]
        %v2398 = vld [vmem:[#allocation16 + $0xa0] sm:$0xff]
        %v2399 = vld [vmem:[#allocation16 + $0xa8] sm:$0xff]
        %v2400 = vld [vmem:[#allocation16 + $0xb0] sm:$0xff]
        %v2401 = vld [vmem:[#allocation16 + $0xb8] sm:$0xff]
        %v2402 = vld [vmem:[#allocation16 + $0xc0] sm:$0xff]
        %v2403 = vld [vmem:[#allocation16 + $0xc8] sm:$0xff]
        %v2404 = vld [vmem:[#allocation16 + $0xd0] sm:$0xff]
        %v2405 = vld [vmem:[#allocation16 + $0xd8] sm:$0xff]
        %v2406 = vld [vmem:[#allocation16 + $0xe0] sm:$0xff]
        %v2407 = vld [vmem:[#allocation16 + $0xe8] sm:$0xff]
        %v2408 = vld [vmem:[#allocation16 + $0xf0] sm:$0xff]
        %v2409 = vld [vmem:[#allocation16 + $0xf8] sm:$0xff]
        %v2442 = vunpack.c.l.b16 %v2378
        %v2443 = vunpack.c.h.b16 %v2378
        %v2444 = vunpack.c.l.b16 %v2379
        %v2445 = vunpack.c.h.b16 %v2379
        %v2446 = vunpack.c.l.b16 %v2380
        %v2447 = vunpack.c.h.b16 %v2380
        %v2448 = vunpack.c.l.b16 %v2381
        %v2449 = vunpack.c.h.b16 %v2381
        %v2450 = vunpack.c.l.b16 %v2382
        %v2451 = vunpack.c.h.b16 %v2382
        %v2452 = vunpack.c.l.b16 %v2383
        %v2453 = vunpack.c.h.b16 %v2383
        %v2454 = vunpack.c.l.b16 %v2384
        %v2455 = vunpack.c.h.b16 %v2384
        %v2456 = vunpack.c.l.b16 %v2385
        %v2457 = vunpack.c.h.b16 %v2385
        %v2458 = vunpack.c.l.b16 %v2386
        %v2459 = vunpack.c.h.b16 %v2386
        %v2460 = vunpack.c.l.b16 %v2387
        %v2461 = vunpack.c.h.b16 %v2387
        %v2462 = vunpack.c.l.b16 %v2388
        %v2463 = vunpack.c.h.b16 %v2388
        %v2464 = vunpack.c.l.b16 %v2389
        %v2465 = vunpack.c.h.b16 %v2389
        %v2466 = vunpack.c.l.b16 %v2390
        %v2467 = vunpack.c.h.b16 %v2390
        %v2468 = vunpack.c.l.b16 %v2391
        %v2469 = vunpack.c.h.b16 %v2391
        %v2470 = vunpack.c.l.b16 %v2392
        %v2471 = vunpack.c.h.b16 %v2392
        %v2472 = vunpack.c.l.b16 %v2393
        %v2473 = vunpack.c.h.b16 %v2393
        %v2474 = vunpack.c.l.b16 %v2394
        %v2475 = vunpack.c.h.b16 %v2394
        %v2476 = vunpack.c.l.b16 %v2395
        %v2477 = vunpack.c.h.b16 %v2395
        %v2478 = vunpack.c.l.b16 %v2396
        %v2479 = vunpack.c.h.b16 %v2396
        %v2480 = vunpack.c.l.b16 %v2397
        %v2481 = vunpack.c.h.b16 %v2397
        %v2482 = vunpack.c.l.b16 %v2398
        %v2483 = vunpack.c.h.b16 %v2398
        %v2484 = vunpack.c.l.b16 %v2399
        %v2485 = vunpack.c.h.b16 %v2399
        %v2486 = vunpack.c.l.b16 %v2400
        %v2487 = vunpack.c.h.b16 %v2400
        %v2488 = vunpack.c.l.b16 %v2401
        %v2489 = vunpack.c.h.b16 %v2401
        %v2490 = vunpack.c.l.b16 %v2402
        %v2491 = vunpack.c.h.b16 %v2402
        %v2492 = vunpack.c.l.b16 %v2403
        %v2493 = vunpack.c.h.b16 %v2403
        %v2494 = vunpack.c.l.b16 %v2404
        %v2495 = vunpack.c.h.b16 %v2404
        %v2496 = vunpack.c.l.b16 %v2405
        %v2497 = vunpack.c.h.b16 %v2405
        %v2498 = vunpack.c.l.b16 %v2406
        %v2499 = vunpack.c.h.b16 %v2406
        %v2500 = vunpack.c.l.b16 %v2407
        %v2501 = vunpack.c.h.b16 %v2407
        %v2502 = vunpack.c.l.b16 %v2408
        %v2503 = vunpack.c.h.b16 %v2408
        %v2504 = vunpack.c.l.b16 %v2409
        %v2505 = vunpack.c.h.b16 %v2409
        %v2506 = vpack.c.b16 %v2446, %v2442
        %v2507 = vpack.c.b16 %v2447, %v2443
        %v2508 = vpack.c.b16 %v2448, %v2444
        %v2509 = vpack.c.b16 %v2449, %v2445
        %v2510 = vpack.c.b16 %v2454, %v2450
        %v2511 = vpack.c.b16 %v2455, %v2451
        %v2512 = vpack.c.b16 %v2456, %v2452
        %v2513 = vpack.c.b16 %v2457, %v2453
        %v2514 = vpack.c.b16 %v2462, %v2458
        %v2515 = vpack.c.b16 %v2463, %v2459
        %v2516 = vpack.c.b16 %v2464, %v2460
        %v2517 = vpack.c.b16 %v2465, %v2461
        %v2518 = vpack.c.b16 %v2470, %v2466
        %v2519 = vpack.c.b16 %v2471, %v2467
        %v2520 = vpack.c.b16 %v2472, %v2468
        %v2521 = vpack.c.b16 %v2473, %v2469
        %v2522 = vpack.c.b16 %v2478, %v2474
        %v2523 = vpack.c.b16 %v2479, %v2475
        %v2524 = vpack.c.b16 %v2480, %v2476
        %v2525 = vpack.c.b16 %v2481, %v2477
        %v2526 = vpack.c.b16 %v2486, %v2482
        %v2527 = vpack.c.b16 %v2487, %v2483
        %v2528 = vpack.c.b16 %v2488, %v2484
        %v2529 = vpack.c.b16 %v2489, %v2485
        %v2530 = vpack.c.b16 %v2494, %v2490
        %v2531 = vpack.c.b16 %v2495, %v2491
        %v2532 = vpack.c.b16 %v2496, %v2492
        %v2533 = vpack.c.b16 %v2497, %v2493
        %v2534 = vpack.c.b16 %v2502, %v2498
        %v2535 = vpack.c.b16 %v2503, %v2499
        %v2536 = vpack.c.b16 %v2504, %v2500
        %v2537 = vpack.c.b16 %v2505, %v2501
        %2570 = vmatprep.subr.bf16.mxu0 %v2507
        %2571 = vmatpush1.bf16.msra.mxu0 %v2506
        %2572 = vmatprep.subr.bf16.mxu0 %v2511
        %2573 = vmatpush1.bf16.msra.mxu0 %v2510
        %2574 = vmatprep.subr.bf16.mxu0 %v2515
        %2575 = vmatpush1.bf16.msra.mxu0 %v2514
        %2576 = vmatprep.subr.bf16.mxu0 %v2519
        %2577 = vmatpush1.bf16.msra.mxu0 %v2518
        %2578 = vmatprep.subr.bf16.mxu0 %v2523
        %2579 = vmatpush1.bf16.msra.mxu0 %v2522
        %2580 = vmatprep.subr.bf16.mxu0 %v2527
        %2581 = vmatpush1.bf16.msra.mxu0 %v2526
        %2582 = vmatprep.subr.bf16.mxu0 %v2531
        %2583 = vmatpush1.bf16.msra.mxu0 %v2530
        %2584 = vmatprep.subr.bf16.mxu0 %v2535
        %2585 = vmatpush1.bf16.msra.mxu0 %v2534
        %2586 = vmatprep.subr.bf16.mxu0 0
        %2587 = vmatpush1.bf16.msra.mxu0 0
        %2588 = vmatprep.subr.bf16.mxu0 0
        %2589 = vmatpush1.bf16.msra.mxu0 0
        %2590 = vmatprep.subr.bf16.mxu0 0
        %2591 = vmatpush1.bf16.msra.mxu0 0
        %2592 = vmatprep.subr.bf16.mxu0 0
        %2593 = vmatpush1.bf16.msra.mxu0 0
        %2594 = vmatprep.subr.bf16.mxu0 0
        %2595 = vmatpush1.bf16.msra.mxu0 0
        %2596 = vmatprep.subr.bf16.mxu0 0
        %2597 = vmatpush1.bf16.msra.mxu0 0
        %2598 = vmatprep.subr.bf16.mxu0 0
        %2599 = vmatpush1.bf16.msra.mxu0 0
        %2600 = vmatprep.subr.bf16.mxu0 0
        %2601 = vmatpush1.bf16.msra.mxu0 0
        %2602 = vmatprep.mubr.bf16.mxu0 0
        %2603 = vmatmul.mubr.bf16.gmra.mrb[0].mxu0 %v2377
        %v2604 = vpop.f32.mrb[0].mxu0
        %v2605 = vadd.f32 0.0, %v2604
        %v2606 = vpop.f32.mrb[0].mxu0
        %v2607 = vadd.f32 0.0, %v2606
        %v2608 = vpop.f32.mrb[0].mxu0
        %v2609 = vpop.f32.mrb[0].mxu0
        %2610 = vdwg.mxu0
        %2611 = vmatprep.subr.bf16.mxu0 %v2509
        %2612 = vmatpush1.bf16.msra.mxu0 %v2508
        %2613 = vmatprep.subr.bf16.mxu0 %v2513
        %2614 = vmatpush1.bf16.msra.mxu0 %v2512
        %2615 = vmatprep.subr.bf16.mxu0 %v2517
        %2616 = vmatpush1.bf16.msra.mxu0 %v2516
        %2617 = vmatprep.subr.bf16.mxu0 %v2521
        %2618 = vmatpush1.bf16.msra.mxu0 %v2520
        %2619 = vmatprep.subr.bf16.mxu0 %v2525
        %2620 = vmatpush1.bf16.msra.mxu0 %v2524
        %2621 = vmatprep.subr.bf16.mxu0 %v2529
        %2622 = vmatpush1.bf16.msra.mxu0 %v2528
        %2623 = vmatprep.subr.bf16.mxu0 %v2533
        %2624 = vmatpush1.bf16.msra.mxu0 %v2532
        %2625 = vmatprep.subr.bf16.mxu0 %v2537
        %2626 = vmatpush1.bf16.msra.mxu0 %v2536
        %2627 = vmatprep.subr.bf16.mxu0 0
        %2628 = vmatpush1.bf16.msra.mxu0 0
        %2629 = vmatprep.subr.bf16.mxu0 0
        %2630 = vmatpush1.bf16.msra.mxu0 0
        %2631 = vmatprep.subr.bf16.mxu0 0
        %2632 = vmatpush1.bf16.msra.mxu0 0
        %2633 = vmatprep.subr.bf16.mxu0 0
        %2634 = vmatpush1.bf16.msra.mxu0 0
        %2635 = vmatprep.subr.bf16.mxu0 0
        %2636 = vmatpush1.bf16.msra.mxu0 0
        %2637 = vmatprep.subr.bf16.mxu0 0
        %2638 = vmatpush1.bf16.msra.mxu0 0
        %2639 = vmatprep.subr.bf16.mxu0 0
        %2640 = vmatpush1.bf16.msra.mxu0 0
        %2641 = vmatprep.subr.bf16.mxu0 0
        %2642 = vmatpush1.bf16.msra.mxu0 0
        %2643 = vmatprep.mubr.bf16.mxu0 0
        %2644 = vmatmul.mubr.bf16.gmra.mrb[0].mxu0 %v2377
        %v2645 = vpop.f32.mrb[0].mxu0
        %v2646 = vadd.f32 0.0, %v2645
        %v2647 = vpop.f32.mrb[0].mxu0
        %v2648 = vadd.f32 0.0, %v2647
        %v2649 = vpop.f32.mrb[0].mxu0
        %v2650 = vpop.f32.mrb[0].mxu0
        %2651 = vdwg.mxu0
        %v2652 = vadd.f32 %v2373, %v2605
        %v2653 = vadd.f32 %v2374, %v2607
        %v2654 = vadd.f32 %v2375, %v2646
        %v2655 = vadd.f32 %v2376, %v2648
        %v2656 = vxor.u32 %v2652, 2147483648
        %v2657 = vmul.f32 %v2656, 1.442695
        %v2658 = vpow.pop %v2657
        %v2659 = vadd.f32 %v2658, 1.0
        %v2660 = vrcp.pop %v2659
        %v2661 = vmul.f32 1.0, %v2660
        %v2662 = vxor.u32 %v2653, 2147483648
        %v2663 = vmul.f32 %v2662, 1.442695
        %v2664 = vpow.pop %v2663
        %v2665 = vadd.f32 %v2664, 1.0
        %v2666 = vrcp.pop %v2665
        %v2667 = vmul.f32 1.0, %v2666
        %v2668 = vtanh.pop %v2654
        %v2669 = vxor.u32 %v2655, 2147483648
        %v2670 = vmul.f32 %v2669, 1.442695
        %v2671 = vpow.pop %v2670
        %v2672 = vadd.f32 %v2671, 1.0
        %v2673 = vrcp.pop %v2672
        %v2674 = vmul.f32 1.0, %v2673
        %v2675 = vmul.f32 %v2667, %v2372
        %v2676 = vmul.f32 %v2661, %v2668
        %v2677 = vadd.f32 %v2675, %v2676
        %v2678 = vtanh.pop %v2677
        %v2679 = vmul.f32 %v2674, %v2678
        %2680 = vst [vmem:[#allocation3] sm:$0xff] %v2679
        %v2681 = vld [vmem:[%s1097] sm:$0xff]
        %v2682 = vld [vmem:[%s1097 + $0x8] sm:$0xff]
        %v2683 = vld [vmem:[%s1097 + $0x10] sm:$0xff]
        %v2684 = vld [vmem:[%s1097 + $0x18] sm:$0xff]
        %v2685 = vpack.c.bf16 %v2679, %v2679
        %v2686 = vld [vmem:[#allocation16] sm:$0xff]
        %v2687 = vld [vmem:[#allocation16 + $0x8] sm:$0xff]
        %v2688 = vld [vmem:[#allocation16 + $0x10] sm:$0xff]
        %v2689 = vld [vmem:[#allocation16 + $0x18] sm:$0xff]
        %v2690 = vld [vmem:[#allocation16 + $0x20] sm:$0xff]
        %v2691 = vld [vmem:[#allocation16 + $0x28] sm:$0xff]
        %v2692 = vld [vmem:[#allocation16 + $0x30] sm:$0xff]
        %v2693 = vld [vmem:[#allocation16 + $0x38] sm:$0xff]
        %v2694 = vld [vmem:[#allocation16 + $0x40] sm:$0xff]
        %v2695 = vld [vmem:[#allocation16 + $0x48] sm:$0xff]
        %v2696 = vld [vmem:[#allocation16 + $0x50] sm:$0xff]
        %v2697 = vld [vmem:[#allocation16 + $0x58] sm:$0xff]
        %v2698 = vld [vmem:[#allocation16 + $0x60] sm:$0xff]
        %v2699 = vld [vmem:[#allocation16 + $0x68] sm:$0xff]
        %v2700 = vld [vmem:[#allocation16 + $0x70] sm:$0xff]
        %v2701 = vld [vmem:[#allocation16 + $0x78] sm:$0xff]
        %v2702 = vld [vmem:[#allocation16 + $0x80] sm:$0xff]
        %v2703 = vld [vmem:[#allocation16 + $0x88] sm:$0xff]
        %v2704 = vld [vmem:[#allocation16 + $0x90] sm:$0xff]
        %v2705 = vld [vmem:[#allocation16 + $0x98] sm:$0xff]
        %v2706 = vld [vmem:[#allocation16 + $0xa0] sm:$0xff]
        %v2707 = vld [vmem:[#allocation16 + $0xa8] sm:$0xff]
        %v2708 = vld [vmem:[#allocation16 + $0xb0] sm:$0xff]
        %v2709 = vld [vmem:[#allocation16 + $0xb8] sm:$0xff]
        %v2710 = vld [vmem:[#allocation16 + $0xc0] sm:$0xff]
        %v2711 = vld [vmem:[#allocation16 + $0xc8] sm:$0xff]
        %v2712 = vld [vmem:[#allocation16 + $0xd0] sm:$0xff]
        %v2713 = vld [vmem:[#allocation16 + $0xd8] sm:$0xff]
        %v2714 = vld [vmem:[#allocation16 + $0xe0] sm:$0xff]
        %v2715 = vld [vmem:[#allocation16 + $0xe8] sm:$0xff]
        %v2716 = vld [vmem:[#allocation16 + $0xf0] sm:$0xff]
        %v2717 = vld [vmem:[#allocation16 + $0xf8] sm:$0xff]
        %v2750 = vunpack.c.l.b16 %v2686
        %v2751 = vunpack.c.h.b16 %v2686
        %v2752 = vunpack.c.l.b16 %v2687
        %v2753 = vunpack.c.h.b16 %v2687
        %v2754 = vunpack.c.l.b16 %v2688
        %v2755 = vunpack.c.h.b16 %v2688
        %v2756 = vunpack.c.l.b16 %v2689
        %v2757 = vunpack.c.h.b16 %v2689
        %v2758 = vunpack.c.l.b16 %v2690
        %v2759 = vunpack.c.h.b16 %v2690
        %v2760 = vunpack.c.l.b16 %v2691
        %v2761 = vunpack.c.h.b16 %v2691
        %v2762 = vunpack.c.l.b16 %v2692
        %v2763 = vunpack.c.h.b16 %v2692
        %v2764 = vunpack.c.l.b16 %v2693
        %v2765 = vunpack.c.h.b16 %v2693
        %v2766 = vunpack.c.l.b16 %v2694
        %v2767 = vunpack.c.h.b16 %v2694
        %v2768 = vunpack.c.l.b16 %v2695
        %v2769 = vunpack.c.h.b16 %v2695
        %v2770 = vunpack.c.l.b16 %v2696
        %v2771 = vunpack.c.h.b16 %v2696
        %v2772 = vunpack.c.l.b16 %v2697
        %v2773 = vunpack.c.h.b16 %v2697
        %v2774 = vunpack.c.l.b16 %v2698
        %v2775 = vunpack.c.h.b16 %v2698
        %v2776 = vunpack.c.l.b16 %v2699
        %v2777 = vunpack.c.h.b16 %v2699
        %v2778 = vunpack.c.l.b16 %v2700
        %v2779 = vunpack.c.h.b16 %v2700
        %v2780 = vunpack.c.l.b16 %v2701
        %v2781 = vunpack.c.h.b16 %v2701
        %v2782 = vunpack.c.l.b16 %v2702
        %v2783 = vunpack.c.h.b16 %v2702
        %v2784 = vunpack.c.l.b16 %v2703
        %v2785 = vunpack.c.h.b16 %v2703
        %v2786 = vunpack.c.l.b16 %v2704
        %v2787 = vunpack.c.h.b16 %v2704
        %v2788 = vunpack.c.l.b16 %v2705
        %v2789 = vunpack.c.h.b16 %v2705
        %v2790 = vunpack.c.l.b16 %v2706
        %v2791 = vunpack.c.h.b16 %v2706
        %v2792 = vunpack.c.l.b16 %v2707
        %v2793 = vunpack.c.h.b16 %v2707
        %v2794 = vunpack.c.l.b16 %v2708
        %v2795 = vunpack.c.h.b16 %v2708
        %v2796 = vunpack.c.l.b16 %v2709
        %v2797 = vunpack.c.h.b16 %v2709
        %v2798 = vunpack.c.l.b16 %v2710
        %v2799 = vunpack.c.h.b16 %v2710
        %v2800 = vunpack.c.l.b16 %v2711
        %v2801 = vunpack.c.h.b16 %v2711
        %v2802 = vunpack.c.l.b16 %v2712
        %v2803 = vunpack.c.h.b16 %v2712
        %v2804 = vunpack.c.l.b16 %v2713
        %v2805 = vunpack.c.h.b16 %v2713
        %v2806 = vunpack.c.l.b16 %v2714
        %v2807 = vunpack.c.h.b16 %v2714
        %v2808 = vunpack.c.l.b16 %v2715
        %v2809 = vunpack.c.h.b16 %v2715
        %v2810 = vunpack.c.l.b16 %v2716
        %v2811 = vunpack.c.h.b16 %v2716
        %v2812 = vunpack.c.l.b16 %v2717
        %v2813 = vunpack.c.h.b16 %v2717
        %v2814 = vpack.c.b16 %v2754, %v2750
        %v2815 = vpack.c.b16 %v2755, %v2751
        %v2816 = vpack.c.b16 %v2756, %v2752
        %v2817 = vpack.c.b16 %v2757, %v2753
        %v2818 = vpack.c.b16 %v2762, %v2758
        %v2819 = vpack.c.b16 %v2763, %v2759
        %v2820 = vpack.c.b16 %v2764, %v2760
        %v2821 = vpack.c.b16 %v2765, %v2761
        %v2822 = vpack.c.b16 %v2770, %v2766
        %v2823 = vpack.c.b16 %v2771, %v2767
        %v2824 = vpack.c.b16 %v2772, %v2768
        %v2825 = vpack.c.b16 %v2773, %v2769
        %v2826 = vpack.c.b16 %v2778, %v2774
        %v2827 = vpack.c.b16 %v2779, %v2775
        %v2828 = vpack.c.b16 %v2780, %v2776
        %v2829 = vpack.c.b16 %v2781, %v2777
        %v2830 = vpack.c.b16 %v2786, %v2782
        %v2831 = vpack.c.b16 %v2787, %v2783
        %v2832 = vpack.c.b16 %v2788, %v2784
        %v2833 = vpack.c.b16 %v2789, %v2785
        %v2834 = vpack.c.b16 %v2794, %v2790
        %v2835 = vpack.c.b16 %v2795, %v2791
        %v2836 = vpack.c.b16 %v2796, %v2792
        %v2837 = vpack.c.b16 %v2797, %v2793
        %v2838 = vpack.c.b16 %v2802, %v2798
        %v2839 = vpack.c.b16 %v2803, %v2799
        %v2840 = vpack.c.b16 %v2804, %v2800
        %v2841 = vpack.c.b16 %v2805, %v2801
        %v2842 = vpack.c.b16 %v2810, %v2806
        %v2843 = vpack.c.b16 %v2811, %v2807
        %v2844 = vpack.c.b16 %v2812, %v2808
        %v2845 = vpack.c.b16 %v2813, %v2809
        %2878 = vmatprep.subr.bf16.mxu0 %v2815
        %2879 = vmatpush1.bf16.msra.mxu0 %v2814
        %2880 = vmatprep.subr.bf16.mxu0 %v2819
        %2881 = vmatpush1.bf16.msra.mxu0 %v2818
        %2882 = vmatprep.subr.bf16.mxu0 %v2823
        %2883 = vmatpush1.bf16.msra.mxu0 %v2822
        %2884 = vmatprep.subr.bf16.mxu0 %v2827
        %2885 = vmatpush1.bf16.msra.mxu0 %v2826
        %2886 = vmatprep.subr.bf16.mxu0 %v2831
        %2887 = vmatpush1.bf16.msra.mxu0 %v2830
        %2888 = vmatprep.subr.bf16.mxu0 %v2835
        %2889 = vmatpush1.bf16.msra.mxu0 %v2834
        %2890 = vmatprep.subr.bf16.mxu0 %v2839
        %2891 = vmatpush1.bf16.msra.mxu0 %v2838
        %2892 = vmatprep.subr.bf16.mxu0 %v2843
        %2893 = vmatpush1.bf16.msra.mxu0 %v2842
        %2894 = vmatprep.subr.bf16.mxu0 0
        %2895 = vmatpush1.bf16.msra.mxu0 0
        %2896 = vmatprep.subr.bf16.mxu0 0
        %2897 = vmatpush1.bf16.msra.mxu0 0
        %2898 = vmatprep.subr.bf16.mxu0 0
        %2899 = vmatpush1.bf16.msra.mxu0 0
        %2900 = vmatprep.subr.bf16.mxu0 0
        %2901 = vmatpush1.bf16.msra.mxu0 0
        %2902 = vmatprep.subr.bf16.mxu0 0
        %2903 = vmatpush1.bf16.msra.mxu0 0
        %2904 = vmatprep.subr.bf16.mxu0 0
        %2905 = vmatpush1.bf16.msra.mxu0 0
        %2906 = vmatprep.subr.bf16.mxu0 0
        %2907 = vmatpush1.bf16.msra.mxu0 0
        %2908 = vmatprep.subr.bf16.mxu0 0
        %2909 = vmatpush1.bf16.msra.mxu0 0
        %2910 = vmatprep.mubr.bf16.mxu0 0
        %2911 = vmatmul.mubr.bf16.gmra.mrb[0].mxu0 %v2685
        %v2912 = vpop.f32.mrb[0].mxu0
        %v2913 = vadd.f32 0.0, %v2912
        %v2914 = vpop.f32.mrb[0].mxu0
        %v2915 = vadd.f32 0.0, %v2914
        %v2916 = vpop.f32.mrb[0].mxu0
        %v2917 = vpop.f32.mrb[0].mxu0
        %2918 = vdwg.mxu0
        %2919 = vmatprep.subr.bf16.mxu0 %v2817
        %2920 = vmatpush1.bf16.msra.mxu0 %v2816
        %2921 = vmatprep.subr.bf16.mxu0 %v2821
        %2922 = vmatpush1.bf16.msra.mxu0 %v2820
        %2923 = vmatprep.subr.bf16.mxu0 %v2825
        %2924 = vmatpush1.bf16.msra.mxu0 %v2824
        %2925 = vmatprep.subr.bf16.mxu0 %v2829
        %2926 = vmatpush1.bf16.msra.mxu0 %v2828
        %2927 = vmatprep.subr.bf16.mxu0 %v2833
        %2928 = vmatpush1.bf16.msra.mxu0 %v2832
        %2929 = vmatprep.subr.bf16.mxu0 %v2837
        %2930 = vmatpush1.bf16.msra.mxu0 %v2836
        %2931 = vmatprep.subr.bf16.mxu0 %v2841
        %2932 = vmatpush1.bf16.msra.mxu0 %v2840
        %2933 = vmatprep.subr.bf16.mxu0 %v2845
        %2934 = vmatpush1.bf16.msra.mxu0 %v2844
        %2935 = vmatprep.subr.bf16.mxu0 0
        %2936 = vmatpush1.bf16.msra.mxu0 0
        %2937 = vmatprep.subr.bf16.mxu0 0
        %2938 = vmatpush1.bf16.msra.mxu0 0
        %2939 = vmatprep.subr.bf16.mxu0 0
        %2940 = vmatpush1.bf16.msra.mxu0 0
        %2941 = vmatprep.subr.bf16.mxu0 0
        %2942 = vmatpush1.bf16.msra.mxu0 0
        %2943 = vmatprep.subr.bf16.mxu0 0
        %2944 = vmatpush1.bf16.msra.mxu0 0
        %2945 = vmatprep.subr.bf16.mxu0 0
        %2946 = vmatpush1.bf16.msra.mxu0 0
        %2947 = vmatprep.subr.bf16.mxu0 0
        %2948 = vmatpush1.bf16.msra.mxu0 0
        %2949 = vmatprep.subr.bf16.mxu0 0
        %2950 = vmatpush1.bf16.msra.mxu0 0
        %2951 = vmatprep.mubr.bf16.mxu0 0
        %2952 = vmatmul.mubr.bf16.gmra.mrb[0].mxu0 %v2685
        %v2953 = vpop.f32.mrb[0].mxu0
        %v2954 = vadd.f32 0.0, %v2953
        %v2955 = vpop.f32.mrb[0].mxu0
        %v2956 = vadd.f32 0.0, %v2955
        %v2957 = vpop.f32.mrb[0].mxu0
        %v2958 = vpop.f32.mrb[0].mxu0
        %2959 = vdwg.mxu0
        %v2960 = vadd.f32 %v2681, %v2913
        %v2961 = vadd.f32 %v2682, %v2915
        %v2962 = vadd.f32 %v2683, %v2954
        %v2963 = vadd.f32 %v2684, %v2956
        %v2964 = vxor.u32 %v2960, 2147483648
        %v2965 = vmul.f32 %v2964, 1.442695
        %v2966 = vpow.pop %v2965
        %v2967 = vadd.f32 %v2966, 1.0
        %v2968 = vrcp.pop %v2967
        %v2969 = vmul.f32 1.0, %v2968
        %v2970 = vxor.u32 %v2961, 2147483648
        %v2971 = vmul.f32 %v2970, 1.442695
        %v2972 = vpow.pop %v2971
        %v2973 = vadd.f32 %v2972, 1.0
        %v2974 = vrcp.pop %v2973
        %v2975 = vmul.f32 1.0, %v2974
        %v2976 = vtanh.pop %v2962
        %v2977 = vxor.u32 %v2963, 2147483648
        %v2978 = vmul.f32 %v2977, 1.442695
        %v2979 = vpow.pop %v2978
        %v2980 = vadd.f32 %v2979, 1.0
        %v2981 = vrcp.pop %v2980
        %v2982 = vmul.f32 1.0, %v2981
        %v2983 = vmul.f32 %v2975, %v2677
        %v2984 = vmul.f32 %v2969, %v2976
        %v2985 = vadd.f32 %v2983, %v2984
        %v2986 = vtanh.pop %v2985
        %v2987 = vmul.f32 %v2982, %v2986
        %2988 = vst [vmem:[%s1405] sm:$0xff] %v2987
        %v2989 = vld [vmem:[%s1407] sm:$0xff]
        %v2990 = vld [vmem:[%s1407 + $0x8] sm:$0xff]
        %v2991 = vld [vmem:[%s1407 + $0x10] sm:$0xff]
        %v2992 = vld [vmem:[%s1407 + $0x18] sm:$0xff]
        %v2993 = vpack.c.bf16 %v2987, %v2987
        %v2994 = vld [vmem:[#allocation16] sm:$0xff]
        %v2995 = vld [vmem:[#allocation16 + $0x8] sm:$0xff]
        %v2996 = vld [vmem:[#allocation16 + $0x10] sm:$0xff]
        %v2997 = vld [vmem:[#allocation16 + $0x18] sm:$0xff]
        %v2998 = vld [vmem:[#allocation16 + $0x20] sm:$0xff]
        %v2999 = vld [vmem:[#allocation16 + $0x28] sm:$0xff]
        %v3000 = vld [vmem:[#allocation16 + $0x30] sm:$0xff]
        %v3001 = vld [vmem:[#allocation16 + $0x38] sm:$0xff]
        %v3002 = vld [vmem:[#allocation16 + $0x40] sm:$0xff]
        %v3003 = vld [vmem:[#allocation16 + $0x48] sm:$0xff]
        %v3004 = vld [vmem:[#allocation16 + $0x50] sm:$0xff]
        %v3005 = vld [vmem:[#allocation16 + $0x58] sm:$0xff]
        %v3006 = vld [vmem:[#allocation16 + $0x60] sm:$0xff]
        %v3007 = vld [vmem:[#allocation16 + $0x68] sm:$0xff]
        %v3008 = vld [vmem:[#allocation16 + $0x70] sm:$0xff]
        %v3009 = vld [vmem:[#allocation16 + $0x78] sm:$0xff]
        %v3010 = vld [vmem:[#allocation16 + $0x80] sm:$0xff]
        %v3011 = vld [vmem:[#allocation16 + $0x88] sm:$0xff]
        %v3012 = vld [vmem:[#allocation16 + $0x90] sm:$0xff]
        %v3013 = vld [vmem:[#allocation16 + $0x98] sm:$0xff]
        %v3014 = vld [vmem:[#allocation16 + $0xa0] sm:$0xff]
        %v3015 = vld [vmem:[#allocation16 + $0xa8] sm:$0xff]
        %v3016 = vld [vmem:[#allocation16 + $0xb0] sm:$0xff]
        %v3017 = vld [vmem:[#allocation16 + $0xb8] sm:$0xff]
        %v3018 = vld [vmem:[#allocation16 + $0xc0] sm:$0xff]
        %v3019 = vld [vmem:[#allocation16 + $0xc8] sm:$0xff]
        %v3020 = vld [vmem:[#allocation16 + $0xd0] sm:$0xff]
        %v3021 = vld [vmem:[#allocation16 + $0xd8] sm:$0xff]
        %v3022 = vld [vmem:[#allocation16 + $0xe0] sm:$0xff]
        %v3023 = vld [vmem:[#allocation16 + $0xe8] sm:$0xff]
        %v3024 = vld [vmem:[#allocation16 + $0xf0] sm:$0xff]
        %v3025 = vld [vmem:[#allocation16 + $0xf8] sm:$0xff]
        %v3058 = vunpack.c.l.b16 %v2994
        %v3059 = vunpack.c.h.b16 %v2994
        %v3060 = vunpack.c.l.b16 %v2995
        %v3061 = vunpack.c.h.b16 %v2995
        %v3062 = vunpack.c.l.b16 %v2996
        %v3063 = vunpack.c.h.b16 %v2996
        %v3064 = vunpack.c.l.b16 %v2997
        %v3065 = vunpack.c.h.b16 %v2997
        %v3066 = vunpack.c.l.b16 %v2998
        %v3067 = vunpack.c.h.b16 %v2998
        %v3068 = vunpack.c.l.b16 %v2999
        %v3069 = vunpack.c.h.b16 %v2999
        %v3070 = vunpack.c.l.b16 %v3000
        %v3071 = vunpack.c.h.b16 %v3000
        %v3072 = vunpack.c.l.b16 %v3001
        %v3073 = vunpack.c.h.b16 %v3001
        %v3074 = vunpack.c.l.b16 %v3002
        %v3075 = vunpack.c.h.b16 %v3002
        %v3076 = vunpack.c.l.b16 %v3003
        %v3077 = vunpack.c.h.b16 %v3003
        %v3078 = vunpack.c.l.b16 %v3004
        %v3079 = vunpack.c.h.b16 %v3004
        %v3080 = vunpack.c.l.b16 %v3005
        %v3081 = vunpack.c.h.b16 %v3005
        %v3082 = vunpack.c.l.b16 %v3006
        %v3083 = vunpack.c.h.b16 %v3006
        %v3084 = vunpack.c.l.b16 %v3007
        %v3085 = vunpack.c.h.b16 %v3007
        %v3086 = vunpack.c.l.b16 %v3008
        %v3087 = vunpack.c.h.b16 %v3008
        %v3088 = vunpack.c.l.b16 %v3009
        %v3089 = vunpack.c.h.b16 %v3009
        %v3090 = vunpack.c.l.b16 %v3010
        %v3091 = vunpack.c.h.b16 %v3010
        %v3092 = vunpack.c.l.b16 %v3011
        %v3093 = vunpack.c.h.b16 %v3011
        %v3094 = vunpack.c.l.b16 %v3012
        %v3095 = vunpack.c.h.b16 %v3012
        %v3096 = vunpack.c.l.b16 %v3013
        %v3097 = vunpack.c.h.b16 %v3013
        %v3098 = vunpack.c.l.b16 %v3014
        %v3099 = vunpack.c.h.b16 %v3014
        %v3100 = vunpack.c.l.b16 %v3015
        %v3101 = vunpack.c.h.b16 %v3015
        %v3102 = vunpack.c.l.b16 %v3016
        %v3103 = vunpack.c.h.b16 %v3016
        %v3104 = vunpack.c.l.b16 %v3017
        %v3105 = vunpack.c.h.b16 %v3017
        %v3106 = vunpack.c.l.b16 %v3018
        %v3107 = vunpack.c.h.b16 %v3018
        %v3108 = vunpack.c.l.b16 %v3019
        %v3109 = vunpack.c.h.b16 %v3019
        %v3110 = vunpack.c.l.b16 %v3020
        %v3111 = vunpack.c.h.b16 %v3020
        %v3112 = vunpack.c.l.b16 %v3021
        %v3113 = vunpack.c.h.b16 %v3021
        %v3114 = vunpack.c.l.b16 %v3022
        %v3115 = vunpack.c.h.b16 %v3022
        %v3116 = vunpack.c.l.b16 %v3023
        %v3117 = vunpack.c.h.b16 %v3023
        %v3118 = vunpack.c.l.b16 %v3024
        %v3119 = vunpack.c.h.b16 %v3024
        %v3120 = vunpack.c.l.b16 %v3025
        %v3121 = vunpack.c.h.b16 %v3025
        %v3122 = vpack.c.b16 %v3062, %v3058
        %v3123 = vpack.c.b16 %v3063, %v3059
        %v3124 = vpack.c.b16 %v3064, %v3060
        %v3125 = vpack.c.b16 %v3065, %v3061
        %v3126 = vpack.c.b16 %v3070, %v3066
        %v3127 = vpack.c.b16 %v3071, %v3067
        %v3128 = vpack.c.b16 %v3072, %v3068
        %v3129 = vpack.c.b16 %v3073, %v3069
        %v3130 = vpack.c.b16 %v3078, %v3074
        %v3131 = vpack.c.b16 %v3079, %v3075
        %v3132 = vpack.c.b16 %v3080, %v3076
        %v3133 = vpack.c.b16 %v3081, %v3077
        %v3134 = vpack.c.b16 %v3086, %v3082
        %v3135 = vpack.c.b16 %v3087, %v3083
        %v3136 = vpack.c.b16 %v3088, %v3084
        %v3137 = vpack.c.b16 %v3089, %v3085
        %v3138 = vpack.c.b16 %v3094, %v3090
        %v3139 = vpack.c.b16 %v3095, %v3091
        %v3140 = vpack.c.b16 %v3096, %v3092
        %v3141 = vpack.c.b16 %v3097, %v3093
        %v3142 = vpack.c.b16 %v3102, %v3098
        %v3143 = vpack.c.b16 %v3103, %v3099
        %v3144 = vpack.c.b16 %v3104, %v3100
        %v3145 = vpack.c.b16 %v3105, %v3101
        %v3146 = vpack.c.b16 %v3110, %v3106
        %v3147 = vpack.c.b16 %v3111, %v3107
        %v3148 = vpack.c.b16 %v3112, %v3108
        %v3149 = vpack.c.b16 %v3113, %v3109
        %v3150 = vpack.c.b16 %v3118, %v3114
        %v3151 = vpack.c.b16 %v3119, %v3115
        %v3152 = vpack.c.b16 %v3120, %v3116
        %v3153 = vpack.c.b16 %v3121, %v3117
        %3186 = vmatprep.subr.bf16.mxu0 %v3123
        %3187 = vmatpush1.bf16.msra.mxu0 %v3122
        %3188 = vmatprep.subr.bf16.mxu0 %v3127
        %3189 = vmatpush1.bf16.msra.mxu0 %v3126
        %3190 = vmatprep.subr.bf16.mxu0 %v3131
        %3191 = vmatpush1.bf16.msra.mxu0 %v3130
        %3192 = vmatprep.subr.bf16.mxu0 %v3135
        %3193 = vmatpush1.bf16.msra.mxu0 %v3134
        %3194 = vmatprep.subr.bf16.mxu0 %v3139
        %3195 = vmatpush1.bf16.msra.mxu0 %v3138
        %3196 = vmatprep.subr.bf16.mxu0 %v3143
        %3197 = vmatpush1.bf16.msra.mxu0 %v3142
        %3198 = vmatprep.subr.bf16.mxu0 %v3147
        %3199 = vmatpush1.bf16.msra.mxu0 %v3146
        %3200 = vmatprep.subr.bf16.mxu0 %v3151
        %3201 = vmatpush1.bf16.msra.mxu0 %v3150
        %3202 = vmatprep.subr.bf16.mxu0 0
        %3203 = vmatpush1.bf16.msra.mxu0 0
        %3204 = vmatprep.subr.bf16.mxu0 0
        %3205 = vmatpush1.bf16.msra.mxu0 0
        %3206 = vmatprep.subr.bf16.mxu0 0
        %3207 = vmatpush1.bf16.msra.mxu0 0
        %3208 = vmatprep.subr.bf16.mxu0 0
        %3209 = vmatpush1.bf16.msra.mxu0 0
        %3210 = vmatprep.subr.bf16.mxu0 0
        %3211 = vmatpush1.bf16.msra.mxu0 0
        %3212 = vmatprep.subr.bf16.mxu0 0
        %3213 = vmatpush1.bf16.msra.mxu0 0
        %3214 = vmatprep.subr.bf16.mxu0 0
        %3215 = vmatpush1.bf16.msra.mxu0 0
        %3216 = vmatprep.subr.bf16.mxu0 0
        %3217 = vmatpush1.bf16.msra.mxu0 0
        %3218 = vmatprep.mubr.bf16.mxu0 0
        %3219 = vmatmul.mubr.bf16.gmra.mrb[0].mxu0 %v2993
        %v3220 = vpop.f32.mrb[0].mxu0
        %v3221 = vadd.f32 0.0, %v3220
        %v3222 = vpop.f32.mrb[0].mxu0
        %v3223 = vadd.f32 0.0, %v3222
        %v3224 = vpop.f32.mrb[0].mxu0
        %v3225 = vpop.f32.mrb[0].mxu0
        %3226 = vdwg.mxu0
        %3227 = vmatprep.subr.bf16.mxu0 %v3125
        %3228 = vmatpush1.bf16.msra.mxu0 %v3124
        %3229 = vmatprep.subr.bf16.mxu0 %v3129
        %3230 = vmatpush1.bf16.msra.mxu0 %v3128
        %3231 = vmatprep.subr.bf16.mxu0 %v3133
        %3232 = vmatpush1.bf16.msra.mxu0 %v3132
        %3233 = vmatprep.subr.bf16.mxu0 %v3137
        %3234 = vmatpush1.bf16.msra.mxu0 %v3136
        %3235 = vmatprep.subr.bf16.mxu0 %v3141
        %3236 = vmatpush1.bf16.msra.mxu0 %v3140
        %3237 = vmatprep.subr.bf16.mxu0 %v3145
        %3238 = vmatpush1.bf16.msra.mxu0 %v3144
        %3239 = vmatprep.subr.bf16.mxu0 %v3149
        %3240 = vmatpush1.bf16.msra.mxu0 %v3148
        %3241 = vmatprep.subr.bf16.mxu0 %v3153
        %3242 = vmatpush1.bf16.msra.mxu0 %v3152
        %3243 = vmatprep.subr.bf16.mxu0 0
        %3244 = vmatpush1.bf16.msra.mxu0 0
        %3245 = vmatprep.subr.bf16.mxu0 0
        %3246 = vmatpush1.bf16.msra.mxu0 0
        %3247 = vmatprep.subr.bf16.mxu0 0
        %3248 = vmatpush1.bf16.msra.mxu0 0
        %3249 = vmatprep.subr.bf16.mxu0 0
        %3250 = vmatpush1.bf16.msra.mxu0 0
        %3251 = vmatprep.subr.bf16.mxu0 0
        %3252 = vmatpush1.bf16.msra.mxu0 0
        %3253 = vmatprep.subr.bf16.mxu0 0
        %3254 = vmatpush1.bf16.msra.mxu0 0
        %3255 = vmatprep.subr.bf16.mxu0 0
        %3256 = vmatpush1.bf16.msra.mxu0 0
        %3257 = vmatprep.subr.bf16.mxu0 0
        %3258 = vmatpush1.bf16.msra.mxu0 0
        %3259 = vmatprep.mubr.bf16.mxu0 0
        %3260 = vmatmul.mubr.bf16.gmra.mrb[0].mxu0 %v2993
        %v3261 = vpop.f32.mrb[0].mxu0
        %v3262 = vadd.f32 0.0, %v3261
        %v3263 = vpop.f32.mrb[0].mxu0
        %v3264 = vadd.f32 0.0, %v3263
        %v3265 = vpop.f32.mrb[0].mxu0
        %v3266 = vpop.f32.mrb[0].mxu0
        %3267 = vdwg.mxu0
        %v3268 = vadd.f32 %v2989, %v3221
        %v3269 = vadd.f32 %v2990, %v3223
        %v3270 = vadd.f32 %v2991, %v3262
        %v3271 = vadd.f32 %v2992, %v3264
        %v3272 = vxor.u32 %v3268, 2147483648
        %v3273 = vmul.f32 %v3272, 1.442695
        %v3274 = vpow.pop %v3273
        %v3275 = vadd.f32 %v3274, 1.0
        %v3276 = vrcp.pop %v3275
        %v3277 = vmul.f32 1.0, %v3276
        %v3278 = vxor.u32 %v3269, 2147483648
        %v3279 = vmul.f32 %v3278, 1.442695
        %v3280 = vpow.pop %v3279
        %v3281 = vadd.f32 %v3280, 1.0
        %v3282 = vrcp.pop %v3281
        %v3283 = vmul.f32 1.0, %v3282
        %v3284 = vtanh.pop %v3270
        %v3285 = vxor.u32 %v3271, 2147483648
        %v3286 = vmul.f32 %v3285, 1.442695
        %v3287 = vpow.pop %v3286
        %v3288 = vadd.f32 %v3287, 1.0
        %v3289 = vrcp.pop %v3288
        %v3290 = vmul.f32 1.0, %v3289
        %v3291 = vmul.f32 %v3283, %v2985
        %v3292 = vmul.f32 %v3277, %v3284
        %v3293 = vadd.f32 %v3291, %v3292
        %v3294 = vtanh.pop %v3293
        %v3295 = vmul.f32 %v3290, %v3294
        %3296 = vst [vmem:[%s1715] sm:$0xff] %v3295
        %v3297 = vld [vmem:[%s1717] sm:$0xff]
        %v3298 = vld [vmem:[%s1717 + $0x8] sm:$0xff]
        %v3299 = vld [vmem:[%s1717 + $0x10] sm:$0xff]
        %v3300 = vld [vmem:[%s1717 + $0x18] sm:$0xff]
        %v3301 = vpack.c.bf16 %v3295, %v3295
        %v3302 = vld [vmem:[#allocation16] sm:$0xff]
        %v3303 = vld [vmem:[#allocation16 + $0x8] sm:$0xff]
        %v3304 = vld [vmem:[#allocation16 + $0x10] sm:$0xff]
        %v3305 = vld [vmem:[#allocation16 + $0x18] sm:$0xff]
        %v3306 = vld [vmem:[#allocation16 + $0x20] sm:$0xff]
        %v3307 = vld [vmem:[#allocation16 + $0x28] sm:$0xff]
        %v3308 = vld [vmem:[#allocation16 + $0x30] sm:$0xff]
        %v3309 = vld [vmem:[#allocation16 + $0x38] sm:$0xff]
        %v3310 = vld [vmem:[#allocation16 + $0x40] sm:$0xff]
        %v3311 = vld [vmem:[#allocation16 + $0x48] sm:$0xff]
        %v3312 = vld [vmem:[#allocation16 + $0x50] sm:$0xff]
        %v3313 = vld [vmem:[#allocation16 + $0x58] sm:$0xff]
        %v3314 = vld [vmem:[#allocation16 + $0x60] sm:$0xff]
        %v3315 = vld [vmem:[#allocation16 + $0x68] sm:$0xff]
        %v3316 = vld [vmem:[#allocation16 + $0x70] sm:$0xff]
        %v3317 = vld [vmem:[#allocation16 + $0x78] sm:$0xff]
        %v3318 = vld [vmem:[#allocation16 + $0x80] sm:$0xff]
        %v3319 = vld [vmem:[#allocation16 + $0x88] sm:$0xff]
        %v3320 = vld [vmem:[#allocation16 + $0x90] sm:$0xff]
        %v3321 = vld [vmem:[#allocation16 + $0x98] sm:$0xff]
        %v3322 = vld [vmem:[#allocation16 + $0xa0] sm:$0xff]
        %v3323 = vld [vmem:[#allocation16 + $0xa8] sm:$0xff]
        %v3324 = vld [vmem:[#allocation16 + $0xb0] sm:$0xff]
        %v3325 = vld [vmem:[#allocation16 + $0xb8] sm:$0xff]
        %v3326 = vld [vmem:[#allocation16 + $0xc0] sm:$0xff]
        %v3327 = vld [vmem:[#allocation16 + $0xc8] sm:$0xff]
        %v3328 = vld [vmem:[#allocation16 + $0xd0] sm:$0xff]
        %v3329 = vld [vmem:[#allocation16 + $0xd8] sm:$0xff]
        %v3330 = vld [vmem:[#allocation16 + $0xe0] sm:$0xff]
        %v3331 = vld [vmem:[#allocation16 + $0xe8] sm:$0xff]
        %v3332 = vld [vmem:[#allocation16 + $0xf0] sm:$0xff]
        %v3333 = vld [vmem:[#allocation16 + $0xf8] sm:$0xff]
        %v3366 = vunpack.c.l.b16 %v3302
        %v3367 = vunpack.c.h.b16 %v3302
        %v3368 = vunpack.c.l.b16 %v3303
        %v3369 = vunpack.c.h.b16 %v3303
        %v3370 = vunpack.c.l.b16 %v3304
        %v3371 = vunpack.c.h.b16 %v3304
        %v3372 = vunpack.c.l.b16 %v3305
        %v3373 = vunpack.c.h.b16 %v3305
        %v3374 = vunpack.c.l.b16 %v3306
        %v3375 = vunpack.c.h.b16 %v3306
        %v3376 = vunpack.c.l.b16 %v3307
        %v3377 = vunpack.c.h.b16 %v3307
        %v3378 = vunpack.c.l.b16 %v3308
        %v3379 = vunpack.c.h.b16 %v3308
        %v3380 = vunpack.c.l.b16 %v3309
        %v3381 = vunpack.c.h.b16 %v3309
        %v3382 = vunpack.c.l.b16 %v3310
        %v3383 = vunpack.c.h.b16 %v3310
        %v3384 = vunpack.c.l.b16 %v3311
        %v3385 = vunpack.c.h.b16 %v3311
        %v3386 = vunpack.c.l.b16 %v3312
        %v3387 = vunpack.c.h.b16 %v3312
        %v3388 = vunpack.c.l.b16 %v3313
        %v3389 = vunpack.c.h.b16 %v3313
        %v3390 = vunpack.c.l.b16 %v3314
        %v3391 = vunpack.c.h.b16 %v3314
        %v3392 = vunpack.c.l.b16 %v3315
        %v3393 = vunpack.c.h.b16 %v3315
        %v3394 = vunpack.c.l.b16 %v3316
        %v3395 = vunpack.c.h.b16 %v3316
        %v3396 = vunpack.c.l.b16 %v3317
        %v3397 = vunpack.c.h.b16 %v3317
        %v3398 = vunpack.c.l.b16 %v3318
        %v3399 = vunpack.c.h.b16 %v3318
        %v3400 = vunpack.c.l.b16 %v3319
        %v3401 = vunpack.c.h.b16 %v3319
        %v3402 = vunpack.c.l.b16 %v3320
        %v3403 = vunpack.c.h.b16 %v3320
        %v3404 = vunpack.c.l.b16 %v3321
        %v3405 = vunpack.c.h.b16 %v3321
        %v3406 = vunpack.c.l.b16 %v3322
        %v3407 = vunpack.c.h.b16 %v3322
        %v3408 = vunpack.c.l.b16 %v3323
        %v3409 = vunpack.c.h.b16 %v3323
        %v3410 = vunpack.c.l.b16 %v3324
        %v3411 = vunpack.c.h.b16 %v3324
        %v3412 = vunpack.c.l.b16 %v3325
        %v3413 = vunpack.c.h.b16 %v3325
        %v3414 = vunpack.c.l.b16 %v3326
        %v3415 = vunpack.c.h.b16 %v3326
        %v3416 = vunpack.c.l.b16 %v3327
        %v3417 = vunpack.c.h.b16 %v3327
        %v3418 = vunpack.c.l.b16 %v3328
        %v3419 = vunpack.c.h.b16 %v3328
        %v3420 = vunpack.c.l.b16 %v3329
        %v3421 = vunpack.c.h.b16 %v3329
        %v3422 = vunpack.c.l.b16 %v3330
        %v3423 = vunpack.c.h.b16 %v3330
        %v3424 = vunpack.c.l.b16 %v3331
        %v3425 = vunpack.c.h.b16 %v3331
        %v3426 = vunpack.c.l.b16 %v3332
        %v3427 = vunpack.c.h.b16 %v3332
        %v3428 = vunpack.c.l.b16 %v3333
        %v3429 = vunpack.c.h.b16 %v3333
        %v3430 = vpack.c.b16 %v3370, %v3366
        %v3431 = vpack.c.b16 %v3371, %v3367
        %v3432 = vpack.c.b16 %v3372, %v3368
        %v3433 = vpack.c.b16 %v3373, %v3369
        %v3434 = vpack.c.b16 %v3378, %v3374
        %v3435 = vpack.c.b16 %v3379, %v3375
        %v3436 = vpack.c.b16 %v3380, %v3376
        %v3437 = vpack.c.b16 %v3381, %v3377
        %v3438 = vpack.c.b16 %v3386, %v3382
        %v3439 = vpack.c.b16 %v3387, %v3383
        %v3440 = vpack.c.b16 %v3388, %v3384
        %v3441 = vpack.c.b16 %v3389, %v3385
        %v3442 = vpack.c.b16 %v3394, %v3390
        %v3443 = vpack.c.b16 %v3395, %v3391
        %v3444 = vpack.c.b16 %v3396, %v3392
        %v3445 = vpack.c.b16 %v3397, %v3393
        %v3446 = vpack.c.b16 %v3402, %v3398
        %v3447 = vpack.c.b16 %v3403, %v3399
        %v3448 = vpack.c.b16 %v3404, %v3400
        %v3449 = vpack.c.b16 %v3405, %v3401
        %v3450 = vpack.c.b16 %v3410, %v3406
        %v3451 = vpack.c.b16 %v3411, %v3407
        %v3452 = vpack.c.b16 %v3412, %v3408
        %v3453 = vpack.c.b16 %v3413, %v3409
        %v3454 = vpack.c.b16 %v3418, %v3414
        %v3455 = vpack.c.b16 %v3419, %v3415
        %v3456 = vpack.c.b16 %v3420, %v3416
        %v3457 = vpack.c.b16 %v3421, %v3417
        %v3458 = vpack.c.b16 %v3426, %v3422
        %v3459 = vpack.c.b16 %v3427, %v3423
        %v3460 = vpack.c.b16 %v3428, %v3424
        %v3461 = vpack.c.b16 %v3429, %v3425
        %3494 = vmatprep.subr.bf16.mxu0 %v3431
        %3495 = vmatpush1.bf16.msra.mxu0 %v3430
        %3496 = vmatprep.subr.bf16.mxu0 %v3435
        %3497 = vmatpush1.bf16.msra.mxu0 %v3434
        %3498 = vmatprep.subr.bf16.mxu0 %v3439
        %3499 = vmatpush1.bf16.msra.mxu0 %v3438
        %3500 = vmatprep.subr.bf16.mxu0 %v3443
        %3501 = vmatpush1.bf16.msra.mxu0 %v3442
        %3502 = vmatprep.subr.bf16.mxu0 %v3447
        %3503 = vmatpush1.bf16.msra.mxu0 %v3446
        %3504 = vmatprep.subr.bf16.mxu0 %v3451
        %3505 = vmatpush1.bf16.msra.mxu0 %v3450
        %3506 = vmatprep.subr.bf16.mxu0 %v3455
        %3507 = vmatpush1.bf16.msra.mxu0 %v3454
        %3508 = vmatprep.subr.bf16.mxu0 %v3459
        %3509 = vmatpush1.bf16.msra.mxu0 %v3458
        %3510 = vmatprep.subr.bf16.mxu0 0
        %3511 = vmatpush1.bf16.msra.mxu0 0
        %3512 = vmatprep.subr.bf16.mxu0 0
        %3513 = vmatpush1.bf16.msra.mxu0 0
        %3514 = vmatprep.subr.bf16.mxu0 0
        %3515 = vmatpush1.bf16.msra.mxu0 0
        %3516 = vmatprep.subr.bf16.mxu0 0
        %3517 = vmatpush1.bf16.msra.mxu0 0
        %3518 = vmatprep.subr.bf16.mxu0 0
        %3519 = vmatpush1.bf16.msra.mxu0 0
        %3520 = vmatprep.subr.bf16.mxu0 0
        %3521 = vmatpush1.bf16.msra.mxu0 0
        %3522 = vmatprep.subr.bf16.mxu0 0
        %3523 = vmatpush1.bf16.msra.mxu0 0
        %3524 = vmatprep.subr.bf16.mxu0 0
        %3525 = vmatpush1.bf16.msra.mxu0 0
        %3526 = vmatprep.mubr.bf16.mxu0 0
        %3527 = vmatmul.mubr.bf16.gmra.mrb[0].mxu0 %v3301
        %v3528 = vpop.f32.mrb[0].mxu0
        %v3529 = vadd.f32 0.0, %v3528
        %v3530 = vpop.f32.mrb[0].mxu0
        %v3531 = vadd.f32 0.0, %v3530
        %v3532 = vpop.f32.mrb[0].mxu0
        %v3533 = vpop.f32.mrb[0].mxu0
        %3534 = vdwg.mxu0
        %3535 = vmatprep.subr.bf16.mxu0 %v3433
        %3536 = vmatpush1.bf16.msra.mxu0 %v3432
        %3537 = vmatprep.subr.bf16.mxu0 %v3437
        %3538 = vmatpush1.bf16.msra.mxu0 %v3436
        %3539 = vmatprep.subr.bf16.mxu0 %v3441
        %3540 = vmatpush1.bf16.msra.mxu0 %v3440
        %3541 = vmatprep.subr.bf16.mxu0 %v3445
        %3542 = vmatpush1.bf16.msra.mxu0 %v3444
        %3543 = vmatprep.subr.bf16.mxu0 %v3449
        %3544 = vmatpush1.bf16.msra.mxu0 %v3448
        %3545 = vmatprep.subr.bf16.mxu0 %v3453
        %3546 = vmatpush1.bf16.msra.mxu0 %v3452
        %3547 = vmatprep.subr.bf16.mxu0 %v3457
        %3548 = vmatpush1.bf16.msra.mxu0 %v3456
        %3549 = vmatprep.subr.bf16.mxu0 %v3461
        %3550 = vmatpush1.bf16.msra.mxu0 %v3460
        %3551 = vmatprep.subr.bf16.mxu0 0
        %3552 = vmatpush1.bf16.msra.mxu0 0
        %3553 = vmatprep.subr.bf16.mxu0 0
        %3554 = vmatpush1.bf16.msra.mxu0 0
        %3555 = vmatprep.subr.bf16.mxu0 0
        %3556 = vmatpush1.bf16.msra.mxu0 0
        %3557 = vmatprep.subr.bf16.mxu0 0
        %3558 = vmatpush1.bf16.msra.mxu0 0
        %3559 = vmatprep.subr.bf16.mxu0 0
        %3560 = vmatpush1.bf16.msra.mxu0 0
        %3561 = vmatprep.subr.bf16.mxu0 0
        %3562 = vmatpush1.bf16.msra.mxu0 0
        %3563 = vmatprep.subr.bf16.mxu0 0
        %3564 = vmatpush1.bf16.msra.mxu0 0
        %3565 = vmatprep.subr.bf16.mxu0 0
        %3566 = vmatpush1.bf16.msra.mxu0 0
        %3567 = vmatprep.mubr.bf16.mxu0 0
        %3568 = vmatmul.mubr.bf16.gmra.mrb[0].mxu0 %v3301
        %v3569 = vpop.f32.mrb[0].mxu0
        %v3570 = vadd.f32 0.0, %v3569
        %v3571 = vpop.f32.mrb[0].mxu0
        %v3572 = vadd.f32 0.0, %v3571
        %v3573 = vpop.f32.mrb[0].mxu0
        %v3574 = vpop.f32.mrb[0].mxu0
        %3575 = vdwg.mxu0
        %v3576 = vadd.f32 %v3297, %v3529
        %v3577 = vadd.f32 %v3298, %v3531
        %v3578 = vadd.f32 %v3299, %v3570
        %v3579 = vadd.f32 %v3300, %v3572
        %v3580 = vxor.u32 %v3576, 2147483648
        %v3581 = vmul.f32 %v3580, 1.442695
        %v3582 = vpow.pop %v3581
        %v3583 = vadd.f32 %v3582, 1.0
        %v3584 = vrcp.pop %v3583
        %v3585 = vmul.f32 1.0, %v3584
        %v3586 = vxor.u32 %v3577, 2147483648
        %v3587 = vmul.f32 %v3586, 1.442695
        %v3588 = vpow.pop %v3587
        %v3589 = vadd.f32 %v3588, 1.0
        %v3590 = vrcp.pop %v3589
        %v3591 = vmul.f32 1.0, %v3590
        %v3592 = vtanh.pop %v3578
        %v3593 = vxor.u32 %v3579, 2147483648
        %v3594 = vmul.f32 %v3593, 1.442695
        %v3595 = vpow.pop %v3594
        %v3596 = vadd.f32 %v3595, 1.0
        %v3597 = vrcp.pop %v3596
        %v3598 = vmul.f32 1.0, %v3597
        %v3599 = vmul.f32 %v3591, %v3293
        %v3600 = vmul.f32 %v3585, %v3592
        %v3601 = vadd.f32 %v3599, %v3600
        %v3602 = vtanh.pop %v3601
        %v3603 = vmul.f32 %v3598, %v3602
        %3604 = vst [vmem:[%s2025] sm:$0xff] %v3603
        %3605 = vst [vmem:[#allocation6] sm:$0xff] %v3603
        %3606 = vst [vmem:[#allocation7] sm:$0xff] %v3601
        %v3607 = vld [vmem:[#allocation3] sm:$0xff]
        %v3608 = vld [vmem:[#allocation3 + $0x8] sm:$0xff]
        %v3609 = vld [vmem:[#allocation3 + $0x10] sm:$0xff]
        %v3610 = vld [vmem:[#allocation3 + $0x18] sm:$0xff]
        %v3611 = vpack.c.bf16 %v3608, %v3607
        %v3612 = vpack.c.bf16 %v3610, %v3609
        %v3613 = vld [vmem:[#allocation17] sm:$0xf]
        %v3614 = vld [vmem:[#allocation17 + $0x4] sm:$0xf]
        %v3615 = vld [vmem:[#allocation17 + $0x8] sm:$0xf]
        %v3616 = vld [vmem:[#allocation17 + $0xc] sm:$0xf]
        %v3617 = vld [vmem:[#allocation17 + $0x10] sm:$0xf]
        %v3618 = vld [vmem:[#allocation17 + $0x14] sm:$0xf]
        %v3619 = vld [vmem:[#allocation17 + $0x18] sm:$0xf]
        %v3620 = vld [vmem:[#allocation17 + $0x1c] sm:$0xf]
        %v3621 = vld [vmem:[#allocation17 + $0x20] sm:$0xf]
        %v3622 = vld [vmem:[#allocation17 + $0x24] sm:$0xf]
        %v3623 = vld [vmem:[#allocation17 + $0x28] sm:$0xf]
        %v3624 = vld [vmem:[#allocation17 + $0x2c] sm:$0xf]
        %v3625 = vld [vmem:[#allocation17 + $0x30] sm:$0xf]
        %v3626 = vld [vmem:[#allocation17 + $0x34] sm:$0xf]
        %v3627 = vld [vmem:[#allocation17 + $0x38] sm:$0xf]
        %v3628 = vld [vmem:[#allocation17 + $0x3c] sm:$0xf]
        %v3629 = vld [vmem:[%s8] sm:$0x1]
        %v3631 = vlaneseq
        %v3632 = vshrl.u32 %v3631, 7
        %v3633 = vsub.s32 0, %v3632
        %v3634 = vrot.slane %v3629, %v3633
        %v3652 = vunpack.c.l.b16 %v3613
        %v3653 = vunpack.c.l.b16 %v3614
        %v3654 = vunpack.c.l.b16 %v3615
        %v3655 = vunpack.c.l.b16 %v3616
        %v3656 = vunpack.c.l.b16 %v3617
        %v3657 = vunpack.c.l.b16 %v3618
        %v3658 = vunpack.c.l.b16 %v3619
        %v3659 = vunpack.c.l.b16 %v3620
        %v3660 = vunpack.c.l.b16 %v3621
        %v3661 = vunpack.c.l.b16 %v3622
        %v3662 = vunpack.c.l.b16 %v3623
        %v3663 = vunpack.c.l.b16 %v3624
        %v3664 = vunpack.c.l.b16 %v3625
        %v3665 = vunpack.c.l.b16 %v3626
        %v3666 = vunpack.c.l.b16 %v3627
        %v3667 = vunpack.c.l.b16 %v3628
        %v3668 = vpack.c.b16 %v3653, %v3652
        %v3669 = vpack.c.b16 %v3655, %v3654
        %v3670 = vpack.c.b16 %v3657, %v3656
        %v3671 = vpack.c.b16 %v3659, %v3658
        %v3672 = vpack.c.b16 %v3661, %v3660
        %v3673 = vpack.c.b16 %v3663, %v3662
        %v3674 = vpack.c.b16 %v3665, %v3664
        %v3675 = vpack.c.b16 %v3667, %v3666
        %3684 = vmatprep.subr.bf16.mxu0 0
        %3685 = vmatpush1.bf16.msra.mxu0 %v3668
        %3686 = vmatprep.subr.bf16.mxu0 0
        %3687 = vmatpush1.bf16.msra.mxu0 %v3669
        %3688 = vmatprep.subr.bf16.mxu0 0
        %3689 = vmatpush1.bf16.msra.mxu0 %v3670
        %3690 = vmatprep.subr.bf16.mxu0 0
        %3691 = vmatpush1.bf16.msra.mxu0 %v3671
        %3692 = vmatprep.subr.bf16.mxu0 0
        %3693 = vmatpush1.bf16.msra.mxu0 %v3672
        %3694 = vmatprep.subr.bf16.mxu0 0
        %3695 = vmatpush1.bf16.msra.mxu0 %v3673
        %3696 = vmatprep.subr.bf16.mxu0 0
        %3697 = vmatpush1.bf16.msra.mxu0 %v3674
        %3698 = vmatprep.subr.bf16.mxu0 0
        %3699 = vmatpush1.bf16.msra.mxu0 %v3675
        %3700 = vmatprep.subr.bf16.mxu0 0
        %3701 = vmatpush1.bf16.msra.mxu0 0
        %3702 = vmatprep.subr.bf16.mxu0 0
        %3703 = vmatpush1.bf16.msra.mxu0 0
        %3704 = vmatprep.subr.bf16.mxu0 0
        %3705 = vmatpush1.bf16.msra.mxu0 0
        %3706 = vmatprep.subr.bf16.mxu0 0
        %3707 = vmatpush1.bf16.msra.mxu0 0
        %3708 = vmatprep.subr.bf16.mxu0 0
        %3709 = vmatpush1.bf16.msra.mxu0 0
        %3710 = vmatprep.subr.bf16.mxu0 0
        %3711 = vmatpush1.bf16.msra.mxu0 0
        %3712 = vmatprep.subr.bf16.mxu0 0
        %3713 = vmatpush1.bf16.msra.mxu0 0
        %3714 = vmatprep.subr.bf16.mxu0 0
        %3715 = vmatpush1.bf16.msra.mxu0 0
        %3716 = vmatprep.mubr.bf16.mxu0 0
        %3717 = vmatmul.mubr.bf16.gmra.mrb[0].mxu0 %v3611
        %v3718 = vpop.f32.mrb[0].mxu0
        %v3719 = vadd.f32 %v3634, %v3718
        %v3720 = vpop.f32.mrb[0].mxu0
        %v3721 = vpop.f32.mrb[0].mxu0
        %v3722 = vadd.f32 %v3634, %v3721
        %v3723 = vpop.f32.mrb[0].mxu0
        %3724 = vmatprep.mubr.bf16.mxu0 0
        %3725 = vmatmul.mubr.bf16.gmra.mrb[0].mxu0 %v3612
        %v3726 = vpop.f32.mrb[0].mxu0
        %v3727 = vadd.f32 %v3634, %v3726
        %v3728 = vpop.f32.mrb[0].mxu0
        %v3729 = vpop.f32.mrb[0].mxu0
        %v3730 = vadd.f32 %v3634, %v3729
        %v3731 = vpop.f32.mrb[0].mxu0
        %3732 = vdwg.mxu0
        %3733 = vst [vmem:[%s423] sm:$0xff] %v3719
        %3734 = vst [vmem:[%s423 + $0x8] sm:$0xff] %v3722
        %3735 = vst [vmem:[%s423 + $0x10] sm:$0xff] %v3727
        %3736 = vst [vmem:[%s423 + $0x18] sm:$0xff] %v3730
        %s3737 = sand.u32 %s231, 1
        %s3738 = scalar_lea.sflag [#allocation10], %s3737
        %s3739 = sand.u32 %s231, 1
        %s3740 = smul.addr %s3739, 32
        %s3741 = scalar_lea.vmem [#allocation19], %s3740
        // Predicated region
        $region85: #{tpu_custom_call.1} parent=55 // pred_check
          %p3742 = pneg %p241
        $region86: #{tpu_custom_call.1} parent=55 // pred_check_branch
          %3744 = sbr.rel (%p3742) target = $region88
        $region87: #{tpu_custom_call.1} parent=55 // pred_region
          %s3745 = smul.u32 4, %s29
          %s3747 = ssub.s32 512, 512
          %3748 = vsyncadd %s3738, %s3747
          %s3749 = smul.addr %s3745, 128
          %s3750 = scalar_lea.hbm %s9, %s3749
          %s3751 = sshll.u32 %s3741, 4
          %s3752 = int_to_ptr.vmem [resolvable:$true] %s3751
          %3757 = dma.vmem_to_hbm [thread:$0]  %s3752, 512, %s3750, %s3738, 128, 128, 8
        $region88: #{tpu_custom_call.1} parent=55 // pred_fallthru
          _
      $region56: #{tpu_custom_call.1} parent=5 // pred_fallthru
        _
      %p3758 = scmp.le.s32.totalorder 2, %s24
      // Predicated region
      $region89: #{tpu_custom_call.1} parent=5 // pred_check
        %p3759 = pneg %p3758
      $region90: #{tpu_custom_call.1} parent=5 // pred_check_branch
        %3761 = sbr.rel (%p3759) target = $region92
      $region91: #{tpu_custom_call.1} parent=5 // pred_region
        %s3762 = ssub.s32 %s24, 2
        // Predicated region
        $region93: #{tpu_custom_call.1} parent=91 // pred_check
          %p3763 = pneg %p247
        $region94: #{tpu_custom_call.1} parent=91 // pred_check_branch
          %3765 = sbr.rel (%p3763) target = $region96
        $region95: #{tpu_custom_call.1} parent=91 // pred_region
          %s3766 = sand.u32 %s232, 1
          %s3767 = scalar_lea.sflag [#allocation10], %s3766
          %s3768 = sand.u32 %s232, 1
          %s3769 = smul.addr %s3768, 32
          %s3770 = scalar_lea.vmem [#allocation19], %s3769
          %3771 = dma.done %s3767, 512
        $region96: #{tpu_custom_call.1} parent=91 // pred_fallthru
          _
      $region92: #{tpu_custom_call.1} parent=5 // pred_fallthru
        _
    $region6: #{tpu_custom_call.1} parent=1 // loop_footer
      %s28 = sadd.s32 1, %s24
    $region7: #{tpu_custom_call.1} parent=1 // loop_footer_branch
      %23 = sbr.rel target = $region3
    $region8: #{tpu_custom_call.1} parent=1 // loop_exit
      _
    %3772 = vsyncpa [#allocation9], 1
    %s3773 = scalar_lea.sflag [#allocation9], 1
    %3774 = vsyncpa %s3773, 1
    %3775 = vsyncpa [#allocation12], 1
    %3776 = vsyncpa [#allocation15], 1
    %3777 = vsyncpa [#allocation18], 1
    %3778 = vsyncpa [#allocation10], 1
    %s3779 = scalar_lea.sflag [#allocation10], 1
    %3780 = vsyncpa %s3779, 1

</llo_original>
